<compile_context>
chip_gen: v7x
topology: tpu7x:2x2x1
jax: 0.10.0
libtpu: 0.0.40
codegen_flags: <defaults>
</compile_context>

<pallas_src>
import functools
import math

import jax
import jax.numpy as jnp
from jax.experimental import pallas as pl
from jax.experimental.pallas import tpu as pltpu

GELU_C = math.sqrt(2.0 / math.pi)
VMEM_LIMIT_BYTES = 32 * 1024 * 1024   # safe on v5e/v6e/v7x; tiles sized well below
ATTN_TILE = 128                       # q / kv tile length on the sequence axis
ROW_TILE = 256                        # token-row tile for matmul kernels
COL_TILE = 512                        # output-feature tile for matmul kernels
HID_TILE = 512                        # hidden (4C) reduction tile in fused MLP


# ------------------------------ tiling utils ------------------------------- #

def _round_up(x, m):
    return ((x + m - 1) // m) * m


def _tiles(dim, max_tile, align):
    """Return (tile, padded_dim) with padded_dim % tile == 0 and tile % align == 0."""
    p = _round_up(dim, align)
    if p <= max_tile:
        return p, p
    for t in range(max_tile, align - 1, -align):
        if p % t == 0:
            return t, p
    return max_tile, _round_up(p, max_tile)


def _pad2(a, rows, cols):
    r, c = rows - a.shape[0], cols - a.shape[1]
    if r == 0 and c == 0:
        return a
    return jnp.pad(a, ((0, r), (0, c)))


# ----------------------------- Pallas kernels ------------------------------ #

def _ln_linear_kernel(x_ref, g_ref, b_ref, w_ref, bias_ref, o_ref):
    """out = LayerNorm(x) @ W + bias, one (tm, tn) output tile per grid step."""
    x = x_ref[...].astype(jnp.float32)
    mu = jnp.mean(x, axis=-1, keepdims=True)
    var = jnp.mean(jnp.square(x - mu), axis=-1, keepdims=True)
    xn = (x - mu) * jax.lax.rsqrt(var + 1e-5)
    xn = (xn * g_ref[...] + b_ref[...]).astype(w_ref.dtype)     # bf16 for the MXU
    y = jnp.dot(xn, w_ref[...], preferred_element_type=jnp.float32)
    o_ref[...] = (y + bias_ref[...]).astype(o_ref.dtype)


def _linear_residual_kernel(y_ref, w_ref, bias_ref, r_ref, o_ref):
    """out = residual + y @ W + bias, one (tm, tn) output tile per grid step."""
    acc = jnp.dot(y_ref[...], w_ref[...], preferred_element_type=jnp.float32)
    o_ref[...] = (acc + bias_ref[...] + r_ref[...].astype(jnp.float32)).astype(o_ref.dtype)


def _ln_mlp_residual_kernel(x_ref, g_ref, b_ref, wfc_ref, bfc_ref, wpr_ref,
                            bpr_ref, o_ref, ln_s, acc_s):
    """out = x + gelu(LayerNorm(x) @ Wfc + bfc) @ Wproj + bproj.

    Grid axis 1 tiles the hidden (4C) dimension; acc_s is the f32 accumulator.
    LN is computed once (j == 0) into a bf16 VMEM scratch and reused.
    """
    j = pl.program_id(1)

    @pl.when(j == 0)
    def _init():
        x = x_ref[...].astype(jnp.float32)
        mu = jnp.mean(x, axis=-1, keepdims=True)
        var = jnp.mean(jnp.square(x - mu), axis=-1, keepdims=True)
        xn = (x - mu) * jax.lax.rsqrt(var + 1e-5)
        ln_s[...] = (xn * g_ref[...] + b_ref[...]).astype(ln_s.dtype)
        acc_s[...] = jnp.zeros_like(acc_s)

    h = jnp.dot(ln_s[...], wfc_ref[...], preferred_element_type=jnp.float32)
    h = h + bfc_ref[...]
    # new_gelu (tanh approximation), kept in f32 (v5e has no bf16 VPU/EUP path).
    h = 0.5 * h * (1.0 + jnp.tanh(GELU_C * (h + 0.044715 * h * h * h)))
    acc_s[...] += jnp.dot(h.astype(wpr_ref.dtype), wpr_ref[...],
                          preferred_element_type=jnp.float32)

    @pl.when(j == pl.num_programs(1) - 1)
    def _finalize():
        o_ref[...] = (acc_s[...] + bpr_ref[...]
                      + x_ref[...].astype(jnp.float32)).astype(o_ref.dtype)


def _ln_lm_head_kernel(x_ref, g_ref, b_ref, w_ref, o_ref):
    """logits tile = LayerNorm(x) @ wte_tile^T (contraction on C, no transpose in HBM)."""
    x = x_ref[...].astype(jnp.float32)
    mu = jnp.mean(x, axis=-1, keepdims=True)
    var = jnp.mean(jnp.square(x - mu), axis=-1, keepdims=True)
    xn = (x - mu) * jax.lax.rsqrt(var + 1e-5)
    xn = (xn * g_ref[...] + b_ref[...]).astype(w_ref.dtype)
    y = jax.lax.dot_general(xn, w_ref[...], (((1,), (1,)), ((), ())),
                            preferred_element_type=jnp.float32)
    o_ref[...] = y.astype(o_ref.dtype)


def _flash_attn_kernel(q_ref, k_ref, v_ref, o_ref, m_ref, l_ref, acc_ref, *,
                       n_head, sm_scale):
    """Flash-style causal attention; q/k/v are lane-dense (tq|tk, C) slices of QKV."""
    qi = pl.program_id(1)
    ki = pl.program_id(2)
    nk = pl.num_programs(2)
    tq = q_ref.shape[1]
    tk = k_ref.shape[1]
    C = q_ref.shape[2]
    Dh = C // n_head

    @pl.when(ki == 0)
    def _init():
        m_ref[...] = jnp.full_like(m_ref, -jnp.inf)
        l_ref[...] = jnp.zeros_like(l_ref)
        acc_ref[...] = jnp.zeros_like(acc_ref)

    # Skip KV tiles that lie entirely in the causally-masked future of this q tile.
    @pl.when(ki * tk <= qi * tq + (tq - 1))
    def _compute():
        row = qi * tq + jax.lax.broadcasted_iota(jnp.int32, (tq, tk), 0)
        col = ki * tk + jax.lax.broadcasted_iota(jnp.int32, (tq, tk), 1)
        mask = col <= row
        for h in range(n_head):                       # static unroll over heads
            sl = pl.ds(h * Dh, Dh)
            q = q_ref[0, :, sl]                       # (tq, Dh) bf16
            k = k_ref[0, :, sl]                       # (tk, Dh) bf16
            v = v_ref[0, :, sl]                       # (tk, Dh) bf16
            s = jax.lax.dot_general(q, k, (((1,), (1,)), ((), ())),
                                    preferred_element_type=jnp.float32) * sm_scale
            m_prev = m_ref[h]                         # (tq, 1)
            m_new = jnp.maximum(m_prev, jnp.max(s, axis=-1, keepdims=True))
            p = jnp.where(mask, jnp.exp(s - m_new), 0.0)
            alpha = jnp.exp(m_prev - m_new)
            l_ref[h] = alpha * l_ref[h] + jnp.sum(p, axis=-1, keepdims=True)
            acc_ref[h] = alpha * acc_ref[h] + jnp.dot(
                p.astype(v.dtype), v, preferred_element_type=jnp.float32)
            m_ref[h] = m_new

    @pl.when(ki == nk - 1)
    def _finalize():
        outs = []
        for h in range(n_head):
            inv = pl.reciprocal(l_ref[h], approx=True)
            outs.append(acc_ref[h] * inv)
        # single lane-dense (tq, C) store
        o_ref[0] = jnp.concatenate(outs, axis=-1).astype(o_ref.dtype)


# ------------------------------ Wrappers ----------------------------------- #

def ln_linear(x, gamma, beta, w, bias, out_dtype):
    M, C = x.shape
    N = w.shape[1]
    tm, Mp = _tiles(M, ROW_TILE, 8)
    tn, Np = _tiles(N, COL_TILE, 128)
    x_p = _pad2(x, Mp, C)
    w_p = _pad2(w, C, Np)
    b_p = bias if Np == N else jnp.pad(bias, (0, Np - N))
    out = pl.pallas_call(
        _ln_linear_kernel,
        out_shape=jax.ShapeDtypeStruct((Mp, Np), out_dtype),
        grid=(Mp // tm, Np // tn),
        in_specs=[
            pl.BlockSpec((tm, C), lambda i, j: (i, 0)),
            pl.BlockSpec((1, C), lambda i, j: (0, 0)),
            pl.BlockSpec((1, C), lambda i, j: (0, 0)),
            pl.BlockSpec((C, tn), lambda i, j: (0, j)),
            pl.BlockSpec((1, tn), lambda i, j: (0, j)),
        ],
        out_specs=pl.BlockSpec((tm, tn), lambda i, j: (i, j)),
        compiler_params=pltpu.CompilerParams(
            dimension_semantics=("parallel", "parallel"),
            vmem_limit_bytes=VMEM_LIMIT_BYTES),
    )(x_p, gamma.reshape(1, C), beta.reshape(1, C), w_p, b_p.reshape(1, Np))
    if Mp != M or Np != N:
        out = out[:M, :N]
    return out


def linear_residual(y, w, bias, resid):
    M, K = y.shape
    N = w.shape[1]
    tm, Mp = _tiles(M, ROW_TILE, 8)
    tn, Np = _tiles(N, COL_TILE, 128)
    y_p = _pad2(y, Mp, K)
    w_p = _pad2(w, K, Np)
    b_p = bias if Np == N else jnp.pad(bias, (0, Np - N))
    r_p = _pad2(resid, Mp, Np)
    out = pl.pallas_call(
        _linear_residual_kernel,
        out_shape=jax.ShapeDtypeStruct((Mp, Np), jnp.float32),
        grid=(Mp // tm, Np // tn),
        in_specs=[
            pl.BlockSpec((tm, K), lambda i, j: (i, 0)),
            pl.BlockSpec((K, tn), lambda i, j: (0, j)),
            pl.BlockSpec((1, tn), lambda i, j: (0, j)),
            pl.BlockSpec((tm, tn), lambda i, j: (i, j)),
        ],
        out_specs=pl.BlockSpec((tm, tn), lambda i, j: (i, j)),
        compiler_params=pltpu.CompilerParams(
            dimension_semantics=("parallel", "parallel"),
            vmem_limit_bytes=VMEM_LIMIT_BYTES),
    )(y_p, w_p, b_p.reshape(1, Np), r_p)
    if Mp != M or Np != N:
        out = out[:M, :N]
    return out


def ln_mlp_residual(x, gamma, beta, wfc, bfc, wproj, bproj):
    M, C = x.shape
    H = wfc.shape[1]
    tm, Mp = _tiles(M, ROW_TILE, 8)
    th, Hp = _tiles(H, HID_TILE, 128)
    x_p = _pad2(x, Mp, C)
    wfc_p = _pad2(wfc, C, Hp)
    bfc_p = bfc if Hp == H else jnp.pad(bfc, (0, Hp - H))
    wpr_p = _pad2(wproj, Hp, C)
    out = pl.pallas_call(
        _ln_mlp_residual_kernel,
        out_shape=jax.ShapeDtypeStruct((Mp, C), jnp.float32),
        grid=(Mp // tm, Hp // th),
        in_specs=[
            pl.BlockSpec((tm, C), lambda i, j: (i, 0)),
            pl.BlockSpec((1, C), lambda i, j: (0, 0)),
            pl.BlockSpec((1, C), lambda i, j: (0, 0)),
            pl.BlockSpec((C, th), lambda i, j: (0, j)),
            pl.BlockSpec((1, th), lambda i, j: (0, j)),
            pl.BlockSpec((th, C), lambda i, j: (j, 0)),
            pl.BlockSpec((1, C), lambda i, j: (0, 0)),
        ],
        out_specs=pl.BlockSpec((tm, C), lambda i, j: (i, 0)),
        scratch_shapes=[
            pltpu.VMEM((tm, C), jnp.bfloat16),   # LayerNorm(x), reused across hidden tiles
            pltpu.VMEM((tm, C), jnp.float32),    # f32 output accumulator
        ],
        compiler_params=pltpu.CompilerParams(
            dimension_semantics=("parallel", "arbitrary"),
            vmem_limit_bytes=VMEM_LIMIT_BYTES),
    )(x_p, gamma.reshape(1, C), beta.reshape(1, C), wfc_p,
      bfc_p.reshape(1, Hp), wpr_p, bproj.reshape(1, C))
    if Mp != M:
        out = out[:M]
    return out


def ln_lm_head(x, gamma, beta, wte_b):
    M, C = x.shape
    V = wte_b.shape[0]
    tm, Mp = _tiles(M, ROW_TILE, 8)
    tn, Vp = _tiles(V, COL_TILE, 128)
    x_p = _pad2(x, Mp, C)
    w_p = _pad2(wte_b, Vp, C)
    out = pl.pallas_call(
        _ln_lm_head_kernel,
        out_shape=jax.ShapeDtypeStruct((Mp, Vp), jnp.float32),
        grid=(Mp // tm, Vp // tn),
        in_specs=[
            pl.BlockSpec((tm, C), lambda i, j: (i, 0)),
            pl.BlockSpec((1, C), lambda i, j: (0, 0)),
            pl.BlockSpec((1, C), lambda i, j: (0, 0)),
            pl.BlockSpec((tn, C), lambda i, j: (j, 0)),
        ],
        out_specs=pl.BlockSpec((tm, tn), lambda i, j: (i, j)),
        compiler_params=pltpu.CompilerParams(
            dimension_semantics=("parallel", "parallel"),
            vmem_limit_bytes=VMEM_LIMIT_BYTES),
    )(x_p, gamma.reshape(1, C), beta.reshape(1, C), w_p)
    if Mp != M or Vp != V:
        out = out[:M, :V]
    return out


def flash_attention(qkv, n_head):
    """qkv: (B, Tp, 3C) bf16 from the fused LN+QKV linear. Returns (B, Tp, C) bf16."""
    B, Tp, C3 = qkv.shape
    C = C3 // 3
    # TODO(synk): attention path assumes C % 128 == 0 (true for 768/1024/1280 GPT-2s).
    assert C % 128 == 0 and C % n_head == 0
    Dh = C // n_head
    tq = min(ATTN_TILE, Tp)
    tk = tq
    sm_scale = 1.0 / math.sqrt(Dh)
    kern = functools.partial(_flash_attn_kernel, n_head=n_head, sm_scale=sm_scale)
    return pl.pallas_call(
        kern,
        out_shape=jax.ShapeDtypeStruct((B, Tp, C), qkv.dtype),
        grid=(B, Tp // tq, Tp // tk),
        in_specs=[
            pl.BlockSpec((1, tq, C), lambda b, qi, ki: (b, qi, 0)),   # Q slice of QKV
            pl.BlockSpec((1, tk, C), lambda b, qi, ki: (b, ki, 1)),   # K slice of QKV
            pl.BlockSpec((1, tk, C), lambda b, qi, ki: (b, ki, 2)),   # V slice of QKV
        ],
        out_specs=pl.BlockSpec((1, tq, C), lambda b, qi, ki: (b, qi, 0)),
        scratch_shapes=[
            pltpu.VMEM((n_head, tq, 1), jnp.float32),    # running max m
            pltpu.VMEM((n_head, tq, 1), jnp.float32),    # running sum l
            pltpu.VMEM((n_head, tq, Dh), jnp.float32),   # output accumulator
        ],
        compiler_params=pltpu.CompilerParams(
            dimension_semantics=("parallel", "parallel", "arbitrary"),
            vmem_limit_bytes=VMEM_LIMIT_BYTES),
    )(qkv, qkv, qkv)


# ------------------------------ GPT model ---------------------------------- #

def gpt_forward(params, idx, n_head):
    B, T = idx.shape
    C = params["wpe"].shape[1]

    # TODO(synk): token embedding is a data-dependent gather; kept as XLA glue.
    tok_emb = jnp.take(params["wte"], idx, axis=0)          # (B, T, C) f32
    pos_emb = params["wpe"][:T][None, :, :]
    x = tok_emb + pos_emb                                   # dropout=0.0 -> no-op

    tq = min(ATTN_TILE, _round_up(T, 8))
    Tp = _round_up(T, tq)
    if Tp != T:
        x = jnp.pad(x, ((0, 0), (0, Tp - T), (0, 0)))       # pad seq for attention tiles
    x2d = x.reshape(B * Tp, C)                              # f32 residual stream

    for bp in params["blocks"]:
        qkv = ln_linear(x2d, bp["ln1_w"], bp["ln1_b"], bp["attn_w"], bp["attn_b"],
                        out_dtype=jnp.bfloat16)             # (B*Tp, 3C)
        y = flash_attention(qkv.reshape(B, Tp, 3 * C), n_head)   # (B, Tp, C) bf16
        x2d = linear_residual(y.reshape(B * Tp, C), bp["proj_w"], bp["proj_b"], x2d)
        x2d = ln_mlp_residual(x2d, bp["ln2_w"], bp["ln2_b"], bp["fc_w"], bp["fc_b"],
                              bp["mproj_w"], bp["mproj_b"])

    logits = ln_lm_head(x2d, params["lnf_w"], params["lnf_b"], params["wte_lm"])
    logits = logits.reshape(B, Tp, -1)
    if Tp != T:
        logits = logits[:, :T, :]
    return logits


# ------------------------- Deterministic init ------------------------------ #

def init_params(key, *, vocab_size, block_size, n_layer, n_head, n_embd):
    def normal(k, shape, std=0.02):
        return std * jax.random.normal(k, shape, jnp.float32)

    keys = iter(jax.random.split(key, 2 + 4 * n_layer))
    proj_std = 0.02 / math.sqrt(2 * n_layer)

    wte = normal(next(keys), (vocab_size, n_embd))
    params = {
        "wte": wte,                                  # f32 table for the embedding gather
        "wte_lm": wte.astype(jnp.bfloat16),          # tied lm_head weight in MXU dtype
        "wpe": normal(next(keys), (block_size, n_embd)),
        "lnf_w": jnp.ones((n_embd,), jnp.float32),
        "lnf_b": jnp.zeros((n_embd,), jnp.float32),
        "blocks": [],
    }
    for _ in range(n_layer):
        bp = {
            "ln1_w": jnp.ones((n_embd,), jnp.float32),
            "ln1_b": jnp.zeros((n_embd,), jnp.float32),
            "attn_w": normal(next(keys), (n_embd, 3 * n_embd)).astype(jnp.bfloat16),
            "attn_b": jnp.zeros((3 * n_embd,), jnp.float32),
            "proj_w": normal(next(keys), (n_embd, n_embd), proj_std).astype(jnp.bfloat16),
            "proj_b": jnp.zeros((n_embd,), jnp.float32),
            "ln2_w": jnp.ones((n_embd,), jnp.float32),
            "ln2_b": jnp.zeros((n_embd,), jnp.float32),
            "fc_w": normal(next(keys), (n_embd, 4 * n_embd)).astype(jnp.bfloat16),
            "fc_b": jnp.zeros((4 * n_embd,), jnp.float32),
            "mproj_w": normal(next(keys), (4 * n_embd, n_embd), proj_std).astype(jnp.bfloat16),
            "mproj_b": jnp.zeros((n_embd,), jnp.float32),
        }
        params["blocks"].append(bp)
    return params


# --------------------------------- Main ------------------------------------ #

if __name__ == "__main__":
    VOCAB = 512
    BLOCK_SIZE = 64
    N_LAYER = 2
    N_HEAD = 4
    N_EMBD = 128          # multiple of 128 so the attention QKV slices are lane-aligned
    B, T = 2, 8

    key = jax.random.PRNGKey(0)
    pkey, ikey = jax.random.split(key)
    params = init_params(pkey, vocab_size=VOCAB, block_size=BLOCK_SIZE,
                         n_layer=N_LAYER, n_head=N_HEAD, n_embd=N_EMBD)
    idx = jax.random.randint(ikey, (B, T), 0, VOCAB, dtype=jnp.int32)

    fwd = jax.jit(functools.partial(gpt_forward, n_head=N_HEAD))
    logits = jax.block_until_ready(fwd(params, idx))
    assert logits.shape == (B, T, VOCAB)
    assert bool(jnp.all(jnp.isfinite(logits)))
    print("KERNEL_OK")
</pallas_src>

<mosaic_0001>
module attributes {stable_mosaic.version = 11 : i64} {
  func.func @_ln_linear_kernel(%arg0: i32, %arg1: i32, %arg2: memref<16x128xf32, #tpu.memory_space<vmem>>, %arg3: memref<1x128xf32, #tpu.memory_space<vmem>>, %arg4: memref<1x128xf32, #tpu.memory_space<vmem>>, %arg5: memref<128x384xbf16, #tpu.memory_space<vmem>>, %arg6: memref<1x384xf32, #tpu.memory_space<vmem>>, %arg7: memref<16x384xbf16, #tpu.memory_space<vmem>>) attributes {dimension_semantics = [#tpu.dimension_semantics<parallel>, #tpu.dimension_semantics<parallel>], iteration_bounds = array<i64: 1, 1>, scalar_prefetch = 0 : i64, scratch_operands = 0 : i64, tpu.core_type = #tpu.core_type<tc>, window_params = [{transform_indices = @transform_0, window_bounds = array<i64: 16, 128>}, {pipeline_mode = #tpu.pipeline_mode<synchronous>, transform_indices = @transform_1, window_bounds = array<i64: 1, 128>}, {pipeline_mode = #tpu.pipeline_mode<synchronous>, transform_indices = @transform_2, window_bounds = array<i64: 1, 128>}, {transform_indices = @transform_3, window_bounds = array<i64: 128, 384>}, {transform_indices = @transform_4, window_bounds = array<i64: 1, 384>}, {transform_indices = @transform_5, window_bounds = array<i64: 16, 384>}]} {
    %c0 = arith.constant 0 : index
    %c0_0 = arith.constant 0 : index
    %0 = vector.load %arg2[%c0, %c0_0] : memref<16x128xf32, #tpu.memory_space<vmem>>, vector<16x128xf32>
    %cst = arith.constant dense<0.000000e+00> : vector<16xf32>
    %1 = vector.multi_reduction <add>, %0, %cst [1] : vector<16x128xf32> to vector<16xf32>
    %2 = vector.shape_cast %1 : vector<16xf32> to vector<16x1xf32>
    %cst_1 = arith.constant 1.280000e+02 : f32
    %3 = vector.broadcast %cst_1 : f32 to vector<16x1xf32>
    %4 = arith.divf %2, %3 : vector<16x1xf32>
    %5 = vector.broadcast %4 : vector<16x1xf32> to vector<16x128xf32>
    %6 = arith.subf %0, %5 : vector<16x128xf32>
    %7 = arith.mulf %6, %6 : vector<16x128xf32>
    %cst_2 = arith.constant dense<0.000000e+00> : vector<16xf32>
    %8 = vector.multi_reduction <add>, %7, %cst_2 [1] : vector<16x128xf32> to vector<16xf32>
    %9 = vector.shape_cast %8 : vector<16xf32> to vector<16x1xf32>
    %cst_3 = arith.constant 1.280000e+02 : f32
    %10 = vector.broadcast %cst_3 : f32 to vector<16x1xf32>
    %11 = arith.divf %9, %10 : vector<16x1xf32>
    %12 = vector.broadcast %4 : vector<16x1xf32> to vector<16x128xf32>
    %13 = arith.subf %0, %12 : vector<16x128xf32>
    %cst_4 = arith.constant 9.99999974E-6 : f32
    %14 = vector.broadcast %cst_4 : f32 to vector<16x1xf32>
    %15 = arith.addf %11, %14 : vector<16x1xf32>
    %16 = math.rsqrt %15 : vector<16x1xf32>
    %17 = vector.broadcast %16 : vector<16x1xf32> to vector<16x128xf32>
    %18 = arith.mulf %13, %17 : vector<16x128xf32>
    %c0_5 = arith.constant 0 : index
    %c0_6 = arith.constant 0 : index
    %19 = vector.load %arg3[%c0_5, %c0_6] : memref<1x128xf32, #tpu.memory_space<vmem>>, vector<1x128xf32>
    %20 = vector.broadcast %19 : vector<1x128xf32> to vector<16x128xf32>
    %21 = arith.mulf %18, %20 : vector<16x128xf32>
    %c0_7 = arith.constant 0 : index
    %c0_8 = arith.constant 0 : index
    %22 = vector.load %arg4[%c0_7, %c0_8] : memref<1x128xf32, #tpu.memory_space<vmem>>, vector<1x128xf32>
    %23 = vector.broadcast %22 : vector<1x128xf32> to vector<16x128xf32>
    %24 = arith.addf %21, %23 : vector<16x128xf32>
    %25 = arith.truncf %24 : vector<16x128xf32> to vector<16x128xbf16>
    %c0_9 = arith.constant 0 : index
    %c0_10 = arith.constant 0 : index
    %26 = vector.load %arg5[%c0_9, %c0_10] : memref<128x384xbf16, #tpu.memory_space<vmem>>, vector<128x384xbf16>
    %cst_11 = arith.constant dense<0.000000e+00> : vector<16x384xf32>
    %27 = tpu.matmul %25, %26, %cst_11 {dimension_numbers = #tpu.dot_dimension_numbers<[1], [0], [0], [1], [0, 0, 1, 1], [], []>} : vector<16x128xbf16>, vector<128x384xbf16>, vector<16x384xf32> -> vector<16x384xf32>
    %c0_12 = arith.constant 0 : index
    %c0_13 = arith.constant 0 : index
    %28 = vector.load %arg6[%c0_12, %c0_13] : memref<1x384xf32, #tpu.memory_space<vmem>>, vector<1x384xf32>
    %29 = vector.broadcast %28 : vector<1x384xf32> to vector<16x384xf32>
    %30 = arith.addf %27, %29 : vector<16x384xf32>
    %31 = arith.truncf %30 : vector<16x384xf32> to vector<16x384xbf16>
    %c0_14 = arith.constant 0 : index
    %c0_15 = arith.constant 0 : index
    %32 = vector.load %arg7[%c0_14, %c0_15] : memref<16x384xbf16, #tpu.memory_space<vmem>>, vector<16x384xbf16>
    tpu.vector_store %arg7[%c0_14, %c0_15], %31 {strides = array<i32>} : memref<16x384xbf16, #tpu.memory_space<vmem>>, vector<16x384xbf16>,
    return
  }
  func.func @transform_0(%arg0: i32, %arg1: i32) -> (i32, i32) {
    %c0_i32 = arith.constant 0 : i32
    %c0_i32_0 = arith.constant 0 : i32
    return %arg0, %c0_i32 : i32, i32
  }
  func.func @transform_1(%arg0: i32, %arg1: i32) -> (i32, i32) {
    %c0_i32 = arith.constant 0 : i32
    %c0_i32_0 = arith.constant 0 : i32
    %c0_i32_1 = arith.constant 0 : i32
    return %c0_i32, %c0_i32_0 : i32, i32
  }
  func.func @transform_2(%arg0: i32, %arg1: i32) -> (i32, i32) {
    %c0_i32 = arith.constant 0 : i32
    %c0_i32_0 = arith.constant 0 : i32
    %c0_i32_1 = arith.constant 0 : i32
    return %c0_i32, %c0_i32_0 : i32, i32
  }
  func.func @transform_3(%arg0: i32, %arg1: i32) -> (i32, i32) {
    %c0_i32 = arith.constant 0 : i32
    %c0_i32_0 = arith.constant 0 : i32
    return %c0_i32, %arg1 : i32, i32
  }
  func.func @transform_4(%arg0: i32, %arg1: i32) -> (i32, i32) {
    %c0_i32 = arith.constant 0 : i32
    %c0_i32_0 = arith.constant 0 : i32
    return %c0_i32, %arg1 : i32, i32
  }
  func.func @transform_5(%arg0: i32, %arg1: i32) -> (i32, i32) {
    %c0_i32 = arith.constant 0 : i32
    return %arg0, %arg1 : i32, i32
  }
}

module attributes {stable_mosaic.version = 11 : i64} {
  func.func @_linear_residual_kernel(%arg0: i32, %arg1: i32, %arg2: memref<16x128xbf16, #tpu.memory_space<vmem>>, %arg3: memref<128x128xbf16, #tpu.memory_space<vmem>>, %arg4: memref<1x128xf32, #tpu.memory_space<vmem>>, %arg5: memref<16x128xf32, #tpu.memory_space<vmem>>, %arg6: memref<16x128xf32, #tpu.memory_space<vmem>>) attributes {dimension_semantics = [#tpu.dimension_semantics<parallel>, #tpu.dimension_semantics<parallel>], iteration_bounds = array<i64: 1, 1>, scalar_prefetch = 0 : i64, scratch_operands = 0 : i64, tpu.core_type = #tpu.core_type<tc>, window_params = [{transform_indices = @transform_0, window_bounds = array<i64: 16, 128>}, {transform_indices = @transform_1, window_bounds = array<i64: 128, 128>}, {transform_indices = @transform_2, window_bounds = array<i64: 1, 128>}, {transform_indices = @transform_3, window_bounds = array<i64: 16, 128>}, {transform_indices = @transform_4, window_bounds = array<i64: 16, 128>}]} {
    %c0 = arith.constant 0 : index
    %c0_0 = arith.constant 0 : index
    %0 = vector.load %arg2[%c0, %c0_0] : memref<16x128xbf16, #tpu.memory_space<vmem>>, vector<16x128xbf16>
    %c0_1 = arith.constant 0 : index
    %c0_2 = arith.constant 0 : index
    %1 = vector.load %arg3[%c0_1, %c0_2] : memref<128x128xbf16, #tpu.memory_space<vmem>>, vector<128x128xbf16>
    %cst = arith.constant dense<0.000000e+00> : vector<16x128xf32>
    %2 = tpu.matmul %0, %1, %cst {dimension_numbers = #tpu.dot_dimension_numbers<[1], [0], [0], [1], [0, 0, 1, 1], [], []>} : vector<16x128xbf16>, vector<128x128xbf16>, vector<16x128xf32> -> vector<16x128xf32>
    %c0_3 = arith.constant 0 : index
    %c0_4 = arith.constant 0 : index
    %3 = vector.load %arg4[%c0_3, %c0_4] : memref<1x128xf32, #tpu.memory_space<vmem>>, vector<1x128xf32>
    %4 = vector.broadcast %3 : vector<1x128xf32> to vector<16x128xf32>
    %5 = arith.addf %2, %4 : vector<16x128xf32>
    %c0_5 = arith.constant 0 : index
    %c0_6 = arith.constant 0 : index
    %6 = vector.load %arg5[%c0_5, %c0_6] : memref<16x128xf32, #tpu.memory_space<vmem>>, vector<16x128xf32>
    %7 = arith.addf %5, %6 : vector<16x128xf32>
    %c0_7 = arith.constant 0 : index
    %c0_8 = arith.constant 0 : index
    %8 = vector.load %arg6[%c0_7, %c0_8] : memref<16x128xf32, #tpu.memory_space<vmem>>, vector<16x128xf32>
    tpu.vector_store %arg6[%c0_7, %c0_8], %7 {strides = array<i32>} : memref<16x128xf32, #tpu.memory_space<vmem>>, vector<16x128xf32>,
    return
  }
  func.func @transform_0(%arg0: i32, %arg1: i32) -> (i32, i32) {
    %c0_i32 = arith.constant 0 : i32
    %c0_i32_0 = arith.constant 0 : i32
    return %arg0, %c0_i32 : i32, i32
  }
  func.func @transform_1(%arg0: i32, %arg1: i32) -> (i32, i32) {
    %c0_i32 = arith.constant 0 : i32
    %c0_i32_0 = arith.constant 0 : i32
    return %c0_i32, %arg1 : i32, i32
  }
  func.func @transform_2(%arg0: i32, %arg1: i32) -> (i32, i32) {
    %c0_i32 = arith.constant 0 : i32
    %c0_i32_0 = arith.constant 0 : i32
    return %c0_i32, %arg1 : i32, i32
  }
  func.func @transform_3(%arg0: i32, %arg1: i32) -> (i32, i32) {
    %c0_i32 = arith.constant 0 : i32
    return %arg0, %arg1 : i32, i32
  }
  func.func @transform_4(%arg0: i32, %arg1: i32) -> (i32, i32) {
    %c0_i32 = arith.constant 0 : i32
    return %arg0, %arg1 : i32, i32
  }
}

module attributes {stable_mosaic.version = 11 : i64} {
  func.func @_ln_mlp_residual_kernel(%arg0: i32, %arg1: i32, %arg2: memref<16x128xf32, #tpu.memory_space<vmem>>, %arg3: memref<1x128xf32, #tpu.memory_space<vmem>>, %arg4: memref<1x128xf32, #tpu.memory_space<vmem>>, %arg5: memref<128x512xbf16, #tpu.memory_space<vmem>>, %arg6: memref<1x512xf32, #tpu.memory_space<vmem>>, %arg7: memref<512x128xbf16, #tpu.memory_space<vmem>>, %arg8: memref<1x128xf32, #tpu.memory_space<vmem>>, %arg9: memref<16x128xf32, #tpu.memory_space<vmem>>, %arg10: memref<16x128xbf16, #tpu.memory_space<vmem>>, %arg11: memref<16x128xf32, #tpu.memory_space<vmem>>) attributes {dimension_semantics = [#tpu.dimension_semantics<parallel>, #tpu.dimension_semantics<arbitrary>], iteration_bounds = array<i64: 1, 1>, scalar_prefetch = 0 : i64, scratch_operands = 2 : i64, tpu.core_type = #tpu.core_type<tc>, window_params = [{transform_indices = @transform_0, window_bounds = array<i64: 16, 128>}, {pipeline_mode = #tpu.pipeline_mode<synchronous>, transform_indices = @transform_1, window_bounds = array<i64: 1, 128>}, {pipeline_mode = #tpu.pipeline_mode<synchronous>, transform_indices = @transform_2, window_bounds = array<i64: 1, 128>}, {transform_indices = @transform_3, window_bounds = array<i64: 128, 512>}, {transform_indices = @transform_4, window_bounds = array<i64: 1, 512>}, {transform_indices = @transform_5, window_bounds = array<i64: 512, 128>}, {pipeline_mode = #tpu.pipeline_mode<synchronous>, transform_indices = @transform_6, window_bounds = array<i64: 1, 128>}, {transform_indices = @transform_7, window_bounds = array<i64: 16, 128>}]} {
    %c0_i32 = arith.constant 0 : i32
    %0 = arith.cmpi eq, %arg1, %c0_i32 : i32
    %1 = arith.extui %0 : i1 to i32
    %c0_i32_0 = arith.constant 0 : i32
    %2 = arith.cmpi ne, %1, %c0_i32_0 : i32
    scf.if %2 {
      %c0_19 = arith.constant 0 : index
      %c0_20 = arith.constant 0 : index
      %31 = vector.load %arg2[%c0_19, %c0_20] : memref<16x128xf32, #tpu.memory_space<vmem>>, vector<16x128xf32>
      %cst_21 = arith.constant dense<0.000000e+00> : vector<16xf32>
      %32 = vector.multi_reduction <add>, %31, %cst_21 [1] : vector<16x128xf32> to vector<16xf32>
      %33 = vector.shape_cast %32 : vector<16xf32> to vector<16x1xf32>
      %cst_22 = arith.constant 1.280000e+02 : f32
      %34 = vector.broadcast %cst_22 : f32 to vector<16x1xf32>
      %35 = arith.divf %33, %34 : vector<16x1xf32>
      %36 = vector.broadcast %35 : vector<16x1xf32> to vector<16x128xf32>
      %37 = arith.subf %31, %36 : vector<16x128xf32>
      %38 = arith.mulf %37, %37 : vector<16x128xf32>
      %cst_23 = arith.constant dense<0.000000e+00> : vector<16xf32>
      %39 = vector.multi_reduction <add>, %38, %cst_23 [1] : vector<16x128xf32> to vector<16xf32>
      %40 = vector.shape_cast %39 : vector<16xf32> to vector<16x1xf32>
      %cst_24 = arith.constant 1.280000e+02 : f32
      %41 = vector.broadcast %cst_24 : f32 to vector<16x1xf32>
      %42 = arith.divf %40, %41 : vector<16x1xf32>
      %43 = vector.broadcast %35 : vector<16x1xf32> to vector<16x128xf32>
      %44 = arith.subf %31, %43 : vector<16x128xf32>
      %cst_25 = arith.constant 9.99999974E-6 : f32
      %45 = vector.broadcast %cst_25 : f32 to vector<16x1xf32>
      %46 = arith.addf %42, %45 : vector<16x1xf32>
      %47 = math.rsqrt %46 : vector<16x1xf32>
      %48 = vector.broadcast %47 : vector<16x1xf32> to vector<16x128xf32>
      %49 = arith.mulf %44, %48 : vector<16x128xf32>
      %c0_26 = arith.constant 0 : index
      %c0_27 = arith.constant 0 : index
      %50 = vector.load %arg3[%c0_26, %c0_27] : memref<1x128xf32, #tpu.memory_space<vmem>>, vector<1x128xf32>
      %51 = vector.broadcast %50 : vector<1x128xf32> to vector<16x128xf32>
      %52 = arith.mulf %49, %51 : vector<16x128xf32>
      %c0_28 = arith.constant 0 : index
      %c0_29 = arith.constant 0 : index
      %53 = vector.load %arg4[%c0_28, %c0_29] : memref<1x128xf32, #tpu.memory_space<vmem>>, vector<1x128xf32>
      %54 = vector.broadcast %53 : vector<1x128xf32> to vector<16x128xf32>
      %55 = arith.addf %52, %54 : vector<16x128xf32>
      %56 = arith.truncf %55 : vector<16x128xf32> to vector<16x128xbf16>
      %c0_30 = arith.constant 0 : index
      %c0_31 = arith.constant 0 : index
      %57 = vector.load %arg10[%c0_30, %c0_31] : memref<16x128xbf16, #tpu.memory_space<vmem>>, vector<16x128xbf16>
      tpu.vector_store %arg10[%c0_30, %c0_31], %56 {strides = array<i32>} : memref<16x128xbf16, #tpu.memory_space<vmem>>, vector<16x128xbf16>,
      %cst_32 = arith.constant 0.000000e+00 : f32
      %58 = vector.broadcast %cst_32 : f32 to vector<16x128xf32>
      %c0_33 = arith.constant 0 : index
      %c0_34 = arith.constant 0 : index
      %59 = vector.load %arg11[%c0_33, %c0_34] : memref<16x128xf32, #tpu.memory_space<vmem>>, vector<16x128xf32>
      tpu.vector_store %arg11[%c0_33, %c0_34], %58 {strides = array<i32>} : memref<16x128xf32, #tpu.memory_space<vmem>>, vector<16x128xf32>,
    } else {
    }
    %c0 = arith.constant 0 : index
    %c0_1 = arith.constant 0 : index
    %3 = vector.load %arg10[%c0, %c0_1] : memref<16x128xbf16, #tpu.memory_space<vmem>>, vector<16x128xbf16>
    %c0_2 = arith.constant 0 : index
    %c0_3 = arith.constant 0 : index
    %4 = vector.load %arg5[%c0_2, %c0_3] : memref<128x512xbf16, #tpu.memory_space<vmem>>, vector<128x512xbf16>
    %cst = arith.constant dense<0.000000e+00> : vector<16x512xf32>
    %5 = tpu.matmul %3, %4, %cst {dimension_numbers = #tpu.dot_dimension_numbers<[1], [0], [0], [1], [0, 0, 1, 1], [], []>} : vector<16x128xbf16>, vector<128x512xbf16>, vector<16x512xf32> -> vector<16x512xf32>
    %c0_4 = arith.constant 0 : index
    %c0_5 = arith.constant 0 : index
    %6 = vector.load %arg6[%c0_4, %c0_5] : memref<1x512xf32, #tpu.memory_space<vmem>>, vector<1x512xf32>
    %7 = vector.broadcast %6 : vector<1x512xf32> to vector<16x512xf32>
    %8 = arith.addf %5, %7 : vector<16x512xf32>
    %cst_6 = arith.constant 5.000000e-01 : f32
    %9 = vector.broadcast %cst_6 : f32 to vector<16x512xf32>
    %10 = arith.mulf %9, %8 : vector<16x512xf32>
    %cst_7 = arith.constant 4.471500e-02 : f32
    %11 = vector.broadcast %cst_7 : f32 to vector<16x512xf32>
    %12 = arith.mulf %11, %8 : vector<16x512xf32>
    %13 = arith.mulf %12, %8 : vector<16x512xf32>
    %14 = arith.mulf %13, %8 : vector<16x512xf32>
    %15 = arith.addf %8, %14 : vector<16x512xf32>
    %cst_8 = arith.constant 0.797884583 : f32
    %16 = vector.broadcast %cst_8 : f32 to vector<16x512xf32>
    %17 = arith.mulf %16, %15 : vector<16x512xf32>
    %18 = math.tanh %17 : vector<16x512xf32>
    %cst_9 = arith.constant 1.000000e+00 : f32
    %19 = vector.broadcast %cst_9 : f32 to vector<16x512xf32>
    %20 = arith.addf %19, %18 : vector<16x512xf32>
    %21 = arith.mulf %10, %20 : vector<16x512xf32>
    %c0_10 = arith.constant 0 : index
    %c0_11 = arith.constant 0 : index
    %22 = vector.load %arg11[%c0_10, %c0_11] : memref<16x128xf32, #tpu.memory_space<vmem>>, vector<16x128xf32>
    %23 = arith.truncf %21 : vector<16x512xf32> to vector<16x512xbf16>
    %c0_12 = arith.constant 0 : index
    %c0_13 = arith.constant 0 : index
    %24 = vector.load %arg7[%c0_12, %c0_13] : memref<512x128xbf16, #tpu.memory_space<vmem>>, vector<512x128xbf16>
    %cst_14 = arith.constant dense<0.000000e+00> : vector<16x128xf32>
    %25 = tpu.matmul %23, %24, %cst_14 {dimension_numbers = #tpu.dot_dimension_numbers<[1], [0], [0], [1], [0, 0, 1, 1], [], []>} : vector<16x512xbf16>, vector<512x128xbf16>, vector<16x128xf32> -> vector<16x128xf32>
    %26 = arith.addf %22, %25 : vector<16x128xf32>
    %c0_15 = arith.constant 0 : index
    %c0_16 = arith.constant 0 : index
    %27 = vector.load %arg11[%c0_15, %c0_16] : memref<16x128xf32, #tpu.memory_space<vmem>>, vector<16x128xf32>
    tpu.vector_store %arg11[%c0_15, %c0_16], %26 {strides = array<i32>} : memref<16x128xf32, #tpu.memory_space<vmem>>, vector<16x128xf32>,
    %c0_i32_17 = arith.constant 0 : i32
    %28 = arith.cmpi eq, %arg1, %c0_i32_17 : i32
    %29 = arith.extui %28 : i1 to i32
    %c0_i32_18 = arith.constant 0 : i32
    %30 = arith.cmpi ne, %29, %c0_i32_18 : i32
    scf.if %30 {
      %c0_19 = arith.constant 0 : index
      %c0_20 = arith.constant 0 : index
      %31 = vector.load %arg11[%c0_19, %c0_20] : memref<16x128xf32, #tpu.memory_space<vmem>>, vector<16x128xf32>
      %c0_21 = arith.constant 0 : index
      %c0_22 = arith.constant 0 : index
      %32 = vector.load %arg8[%c0_21, %c0_22] : memref<1x128xf32, #tpu.memory_space<vmem>>, vector<1x128xf32>
      %33 = vector.broadcast %32 : vector<1x128xf32> to vector<16x128xf32>
      %34 = arith.addf %31, %33 : vector<16x128xf32>
      %c0_23 = arith.constant 0 : index
      %c0_24 = arith.constant 0 : index
      %35 = vector.load %arg2[%c0_23, %c0_24] : memref<16x128xf32, #tpu.memory_space<vmem>>, vector<16x128xf32>
      %36 = arith.addf %34, %35 : vector<16x128xf32>
      %c0_25 = arith.constant 0 : index
      %c0_26 = arith.constant 0 : index
      %37 = vector.load %arg9[%c0_25, %c0_26] : memref<16x128xf32, #tpu.memory_space<vmem>>, vector<16x128xf32>
      tpu.vector_store %arg9[%c0_25, %c0_26], %36 {strides = array<i32>} : memref<16x128xf32, #tpu.memory_space<vmem>>, vector<16x128xf32>,
    } else {
    }
    return
  }
  func.func @transform_0(%arg0: i32, %arg1: i32) -> (i32, i32) {
    %c0_i32 = arith.constant 0 : i32
    %c0_i32_0 = arith.constant 0 : i32
    return %arg0, %c0_i32 : i32, i32
  }
  func.func @transform_1(%arg0: i32, %arg1: i32) -> (i32, i32) {
    %c0_i32 = arith.constant 0 : i32
    %c0_i32_0 = arith.constant 0 : i32
    %c0_i32_1 = arith.constant 0 : i32
    return %c0_i32, %c0_i32_0 : i32, i32
  }
  func.func @transform_2(%arg0: i32, %arg1: i32) -> (i32, i32) {
    %c0_i32 = arith.constant 0 : i32
    %c0_i32_0 = arith.constant 0 : i32
    %c0_i32_1 = arith.constant 0 : i32
    return %c0_i32, %c0_i32_0 : i32, i32
  }
  func.func @transform_3(%arg0: i32, %arg1: i32) -> (i32, i32) {
    %c0_i32 = arith.constant 0 : i32
    %c0_i32_0 = arith.constant 0 : i32
    return %c0_i32, %arg1 : i32, i32
  }
  func.func @transform_4(%arg0: i32, %arg1: i32) -> (i32, i32) {
    %c0_i32 = arith.constant 0 : i32
    %c0_i32_0 = arith.constant 0 : i32
    return %c0_i32, %arg1 : i32, i32
  }
  func.func @transform_5(%arg0: i32, %arg1: i32) -> (i32, i32) {
    %c0_i32 = arith.constant 0 : i32
    %c0_i32_0 = arith.constant 0 : i32
    return %arg1, %c0_i32 : i32, i32
  }
  func.func @transform_6(%arg0: i32, %arg1: i32) -> (i32, i32) {
    %c0_i32 = arith.constant 0 : i32
    %c0_i32_0 = arith.constant 0 : i32
    %c0_i32_1 = arith.constant 0 : i32
    return %c0_i32, %c0_i32_0 : i32, i32
  }
  func.func @transform_7(%arg0: i32, %arg1: i32) -> (i32, i32) {
    %c0_i32 = arith.constant 0 : i32
    %c0_i32_0 = arith.constant 0 : i32
    return %arg0, %c0_i32 : i32, i32
  }
}

module attributes {stable_mosaic.version = 11 : i64} {
  func.func @_flash_attn_kernel(%arg0: i32, %arg1: i32, %arg2: i32, %arg3: memref<1x8x128xbf16, #tpu.memory_space<vmem>>, %arg4: memref<1x8x128xbf16, #tpu.memory_space<vmem>>, %arg5: memref<1x8x128xbf16, #tpu.memory_space<vmem>>, %arg6: memref<1x8x128xbf16, #tpu.memory_space<vmem>>, %arg7: memref<4x8x1xf32, #tpu.memory_space<vmem>>, %arg8: memref<4x8x1xf32, #tpu.memory_space<vmem>>, %arg9: memref<4x8x32xf32, #tpu.memory_space<vmem>>) attributes {dimension_semantics = [#tpu.dimension_semantics<parallel>, #tpu.dimension_semantics<parallel>, #tpu.dimension_semantics<arbitrary>], iteration_bounds = array<i64: 2, 1, 1>, scalar_prefetch = 0 : i64, scratch_operands = 3 : i64, tpu.core_type = #tpu.core_type<tc>, window_params = [{transform_indices = @transform_0, window_bounds = array<i64: 1, 8, 128>}, {transform_indices = @transform_1, window_bounds = array<i64: 1, 8, 128>}, {transform_indices = @transform_2, window_bounds = array<i64: 1, 8, 128>}, {transform_indices = @transform_3, window_bounds = array<i64: 1, 8, 128>}]} {
    %c0_i32 = arith.constant 0 : i32
    %0 = arith.cmpi eq, %arg2, %c0_i32 : i32
    %1 = arith.extui %0 : i1 to i32
    %c0_i32_0 = arith.constant 0 : i32
    %2 = arith.cmpi ne, %1, %c0_i32_0 : i32
    scf.if %2 {
      %cst = arith.constant 0xFF800000 : f32
      %12 = vector.broadcast %cst : f32 to vector<4x8x1xf32>
      %c0 = arith.constant 0 : index
      %c0_5 = arith.constant 0 : index
      %c0_6 = arith.constant 0 : index
      %13 = vector.load %arg7[%c0, %c0_5, %c0_6] : memref<4x8x1xf32, #tpu.memory_space<vmem>>, vector<4x8x1xf32>
      tpu.vector_store %arg7[%c0, %c0_5, %c0_6], %12 {strides = array<i32>} : memref<4x8x1xf32, #tpu.memory_space<vmem>>, vector<4x8x1xf32>,
      %cst_7 = arith.constant 0.000000e+00 : f32
      %14 = vector.broadcast %cst_7 : f32 to vector<4x8x1xf32>
      %c0_8 = arith.constant 0 : index
      %c0_9 = arith.constant 0 : index
      %c0_10 = arith.constant 0 : index
      %15 = vector.load %arg8[%c0_8, %c0_9, %c0_10] : memref<4x8x1xf32, #tpu.memory_space<vmem>>, vector<4x8x1xf32>
      tpu.vector_store %arg8[%c0_8, %c0_9, %c0_10], %14 {strides = array<i32>} : memref<4x8x1xf32, #tpu.memory_space<vmem>>, vector<4x8x1xf32>,
      %cst_11 = arith.constant 0.000000e+00 : f32
      %16 = vector.broadcast %cst_11 : f32 to vector<4x8x32xf32>
      %c0_12 = arith.constant 0 : index
      %c0_13 = arith.constant 0 : index
      %c0_14 = arith.constant 0 : index
      %17 = vector.load %arg9[%c0_12, %c0_13, %c0_14] : memref<4x8x32xf32, #tpu.memory_space<vmem>>, vector<4x8x32xf32>
      tpu.vector_store %arg9[%c0_12, %c0_13, %c0_14], %16 {strides = array<i32>} : memref<4x8x32xf32, #tpu.memory_space<vmem>>, vector<4x8x32xf32>,
    } else {
    }
    %c8_i32 = arith.constant 8 : i32
    %3 = arith.muli %arg2, %c8_i32 : i32
    %c8_i32_1 = arith.constant 8 : i32
    %4 = arith.muli %arg1, %c8_i32_1 : i32
    %c7_i32 = arith.constant 7 : i32
    %5 = arith.addi %4, %c7_i32 : i32
    %6 = arith.cmpi sle, %3, %5 : i32
    %7 = arith.extui %6 : i1 to i32
    %c0_i32_2 = arith.constant 0 : i32
    %8 = arith.cmpi ne, %7, %c0_i32_2 : i32
    scf.if %8 {
      %c8_i32_5 = arith.constant 8 : i32
      %12 = arith.muli %arg1, %c8_i32_5 : i32
      %13 = tpu.iota {dimensions = array<i32: 0>} : vector<8x8xi32>
      %14 = vector.broadcast %12 : i32 to vector<8x8xi32>
      %15 = arith.addi %14, %13 : vector<8x8xi32>
      %c8_i32_6 = arith.constant 8 : i32
      %16 = arith.muli %arg2, %c8_i32_6 : i32
      %17 = tpu.iota {dimensions = array<i32: 1>} : vector<8x8xi32>
      %18 = vector.broadcast %16 : i32 to vector<8x8xi32>
      %19 = arith.addi %18, %17 : vector<8x8xi32>
      %20 = arith.cmpi sle, %19, %15 : vector<8x8xi32>
      %c0 = arith.constant 0 : index
      %c0_7 = arith.constant 0 : index
      %c0_8 = arith.constant 0 : index
      %21 = vector.load %arg3[%c0, %c0_7, %c0_8] : memref<1x8x128xbf16, #tpu.memory_space<vmem>>, vector<1x8x32xbf16>
      %22 = vector.shape_cast %21 : vector<1x8x32xbf16> to vector<8x32xbf16>
      %c0_9 = arith.constant 0 : index
      %c0_10 = arith.constant 0 : index
      %c0_11 = arith.constant 0 : index
      %23 = vector.load %arg4[%c0_9, %c0_10, %c0_11] : memref<1x8x128xbf16, #tpu.memory_space<vmem>>, vector<1x8x32xbf16>
      %24 = vector.shape_cast %23 : vector<1x8x32xbf16> to vector<8x32xbf16>
      %c0_12 = arith.constant 0 : index
      %c0_13 = arith.constant 0 : index
      %c0_14 = arith.constant 0 : index
      %25 = vector.load %arg5[%c0_12, %c0_13, %c0_14] : memref<1x8x128xbf16, #tpu.memory_space<vmem>>, vector<1x8x32xbf16>
      %26 = vector.shape_cast %25 : vector<1x8x32xbf16> to vector<8x32xbf16>
      %cst = arith.constant dense<0.000000e+00> : vector<8x8xf32>
      %27 = tpu.matmul %22, %24, %cst {dimension_numbers = #tpu.dot_dimension_numbers<[1], [1], [0], [0], [0, 0, 1, 0], [], []>} : vector<8x32xbf16>, vector<8x32xbf16>, vector<8x8xf32> -> vector<8x8xf32>
      %cst_15 = arith.constant 0.176776692 : f32
      %28 = vector.broadcast %cst_15 : f32 to vector<8x8xf32>
      %29 = arith.mulf %27, %28 : vector<8x8xf32>
      %c0_16 = arith.constant 0 : index
      %c0_17 = arith.constant 0 : index
      %c0_18 = arith.constant 0 : index
      %30 = vector.load %arg7[%c0_16, %c0_17, %c0_18] : memref<4x8x1xf32, #tpu.memory_space<vmem>>, vector<1x8x1xf32>
      %31 = vector.shape_cast %30 : vector<1x8x1xf32> to vector<8x1xf32>
      %cst_19 = arith.constant dense<0xFF800000> : vector<8xf32>
      %32 = vector.multi_reduction <maximumf>, %29, %cst_19 [1] : vector<8x8xf32> to vector<8xf32>
      %33 = vector.shape_cast %32 : vector<8xf32> to vector<8x1xf32>
      %34 = arith.maximumf %31, %33 : vector<8x1xf32>
      %35 = vector.broadcast %34 : vector<8x1xf32> to vector<8x8xf32>
      %36 = arith.subf %29, %35 : vector<8x8xf32>
      %37 = math.exp %36 : vector<8x8xf32>
      %cst_20 = arith.constant 0.000000e+00 : f32
      %38 = vector.broadcast %cst_20 : f32 to vector<8x8xf32>
      %39 = arith.select %20, %37, %38 : vector<8x8xi1>, vector<8x8xf32>
      %40 = arith.subf %31, %34 : vector<8x1xf32>
      %41 = math.exp %40 : vector<8x1xf32>
      %c0_21 = arith.constant 0 : index
      %c0_22 = arith.constant 0 : index
      %c0_23 = arith.constant 0 : index
      %42 = vector.load %arg8[%c0_21, %c0_22, %c0_23] : memref<4x8x1xf32, #tpu.memory_space<vmem>>, vector<1x8x1xf32>
      %43 = vector.shape_cast %42 : vector<1x8x1xf32> to vector<8x1xf32>
      %44 = arith.mulf %41, %43 : vector<8x1xf32>
      %cst_24 = arith.constant dense<0.000000e+00> : vector<8xf32>
      %45 = vector.multi_reduction <add>, %39, %cst_24 [1] : vector<8x8xf32> to vector<8xf32>
      %46 = vector.shape_cast %45 : vector<8xf32> to vector<8x1xf32>
      %47 = arith.addf %44, %46 : vector<8x1xf32>
      %c0_25 = arith.constant 0 : index
      %c0_26 = arith.constant 0 : index
      %c0_27 = arith.constant 0 : index
      %48 = vector.load %arg8[%c0_25, %c0_26, %c0_27] : memref<4x8x1xf32, #tpu.memory_space<vmem>>, vector<1x8x1xf32>
      %49 = vector.shape_cast %48 : vector<1x8x1xf32> to vector<8x1xf32>
      %50 = vector.shape_cast %47 : vector<8x1xf32> to vector<1x8x1xf32>
      tpu.vector_store %arg8[%c0_25, %c0_26, %c0_27], %50 {strides = array<i32>} : memref<4x8x1xf32, #tpu.memory_space<vmem>>, vector<1x8x1xf32>,
      %c0_28 = arith.constant 0 : index
      %c0_29 = arith.constant 0 : index
      %c0_30 = arith.constant 0 : index
      %51 = vector.load %arg9[%c0_28, %c0_29, %c0_30] : memref<4x8x32xf32, #tpu.memory_space<vmem>>, vector<1x8x32xf32>
      %52 = vector.shape_cast %51 : vector<1x8x32xf32> to vector<8x32xf32>
      %53 = vector.broadcast %41 : vector<8x1xf32> to vector<8x32xf32>
      %54 = arith.mulf %53, %52 : vector<8x32xf32>
      %55 = arith.truncf %39 : vector<8x8xf32> to vector<8x8xbf16>
      %cst_31 = arith.constant dense<0.000000e+00> : vector<8x32xf32>
      %56 = tpu.matmul %55, %26, %cst_31 {dimension_numbers = #tpu.dot_dimension_numbers<[1], [0], [0], [1], [0, 0, 1, 1], [], []>} : vector<8x8xbf16>, vector<8x32xbf16>, vector<8x32xf32> -> vector<8x32xf32>
      %57 = arith.addf %54, %56 : vector<8x32xf32>
      %c0_32 = arith.constant 0 : index
      %c0_33 = arith.constant 0 : index
      %c0_34 = arith.constant 0 : index
      %58 = vector.load %arg9[%c0_32, %c0_33, %c0_34] : memref<4x8x32xf32, #tpu.memory_space<vmem>>, vector<1x8x32xf32>
      %59 = vector.shape_cast %58 : vector<1x8x32xf32> to vector<8x32xf32>
      %60 = vector.shape_cast %57 : vector<8x32xf32> to vector<1x8x32xf32>
      tpu.vector_store %arg9[%c0_32, %c0_33, %c0_34], %60 {strides = array<i32>} : memref<4x8x32xf32, #tpu.memory_space<vmem>>, vector<1x8x32xf32>,
      %c0_35 = arith.constant 0 : index
      %c0_36 = arith.constant 0 : index
      %c0_37 = arith.constant 0 : index
      %61 = vector.load %arg7[%c0_35, %c0_36, %c0_37] : memref<4x8x1xf32, #tpu.memory_space<vmem>>, vector<1x8x1xf32>
      %62 = vector.shape_cast %61 : vector<1x8x1xf32> to vector<8x1xf32>
      %63 = vector.shape_cast %34 : vector<8x1xf32> to vector<1x8x1xf32>
      tpu.vector_store %arg7[%c0_35, %c0_36, %c0_37], %63 {strides = array<i32>} : memref<4x8x1xf32, #tpu.memory_space<vmem>>, vector<1x8x1xf32>,
      %c0_38 = arith.constant 0 : index
      %c0_39 = arith.constant 0 : index
      %c32 = arith.constant 32 : index
      %64 = vector.load %arg3[%c0_38, %c0_39, %c32] : memref<1x8x128xbf16, #tpu.memory_space<vmem>>, vector<1x8x32xbf16>
      %65 = vector.shape_cast %64 : vector<1x8x32xbf16> to vector<8x32xbf16>
      %c0_40 = arith.constant 0 : index
      %c0_41 = arith.constant 0 : index
      %c32_42 = arith.constant 32 : index
      %66 = vector.load %arg4[%c0_40, %c0_41, %c32_42] : memref<1x8x128xbf16, #tpu.memory_space<vmem>>, vector<1x8x32xbf16>
      %67 = vector.shape_cast %66 : vector<1x8x32xbf16> to vector<8x32xbf16>
      %c0_43 = arith.constant 0 : index
      %c0_44 = arith.constant 0 : index
      %c32_45 = arith.constant 32 : index
      %68 = vector.load %arg5[%c0_43, %c0_44, %c32_45] : memref<1x8x128xbf16, #tpu.memory_space<vmem>>, vector<1x8x32xbf16>
      %69 = vector.shape_cast %68 : vector<1x8x32xbf16> to vector<8x32xbf16>
      %cst_46 = arith.constant dense<0.000000e+00> : vector<8x8xf32>
      %70 = tpu.matmul %65, %67, %cst_46 {dimension_numbers = #tpu.dot_dimension_numbers<[1], [1], [0], [0], [0, 0, 1, 0], [], []>} : vector<8x32xbf16>, vector<8x32xbf16>, vector<8x8xf32> -> vector<8x8xf32>
      %cst_47 = arith.constant 0.176776692 : f32
      %71 = vector.broadcast %cst_47 : f32 to vector<8x8xf32>
      %72 = arith.mulf %70, %71 : vector<8x8xf32>
      %c1 = arith.constant 1 : index
      %c0_48 = arith.constant 0 : index
      %c0_49 = arith.constant 0 : index
      %73 = vector.load %arg7[%c1, %c0_48, %c0_49] : memref<4x8x1xf32, #tpu.memory_space<vmem>>, vector<1x8x1xf32>
      %74 = vector.shape_cast %73 : vector<1x8x1xf32> to vector<8x1xf32>
      %cst_50 = arith.constant dense<0xFF800000> : vector<8xf32>
      %75 = vector.multi_reduction <maximumf>, %72, %cst_50 [1] : vector<8x8xf32> to vector<8xf32>
      %76 = vector.shape_cast %75 : vector<8xf32> to vector<8x1xf32>
      %77 = arith.maximumf %74, %76 : vector<8x1xf32>
      %78 = vector.broadcast %77 : vector<8x1xf32> to vector<8x8xf32>
      %79 = arith.subf %72, %78 : vector<8x8xf32>
      %80 = math.exp %79 : vector<8x8xf32>
      %cst_51 = arith.constant 0.000000e+00 : f32
      %81 = vector.broadcast %cst_51 : f32 to vector<8x8xf32>
      %82 = arith.select %20, %80, %81 : vector<8x8xi1>, vector<8x8xf32>
      %83 = arith.subf %74, %77 : vector<8x1xf32>
      %84 = math.exp %83 : vector<8x1xf32>
      %c1_52 = arith.constant 1 : index
      %c0_53 = arith.constant 0 : index
      %c0_54 = arith.constant 0 : index
      %85 = vector.load %arg8[%c1_52, %c0_53, %c0_54] : memref<4x8x1xf32, #tpu.memory_space<vmem>>, vector<1x8x1xf32>
      %86 = vector.shape_cast %85 : vector<1x8x1xf32> to vector<8x1xf32>
      %87 = arith.mulf %84, %86 : vector<8x1xf32>
      %cst_55 = arith.constant dense<0.000000e+00> : vector<8xf32>
      %88 = vector.multi_reduction <add>, %82, %cst_55 [1] : vector<8x8xf32> to vector<8xf32>
      %89 = vector.shape_cast %88 : vector<8xf32> to vector<8x1xf32>
      %90 = arith.addf %87, %89 : vector<8x1xf32>
      %c1_56 = arith.constant 1 : index
      %c0_57 = arith.constant 0 : index
      %c0_58 = arith.constant 0 : index
      %91 = vector.load %arg8[%c1_56, %c0_57, %c0_58] : memref<4x8x1xf32, #tpu.memory_space<vmem>>, vector<1x8x1xf32>
      %92 = vector.shape_cast %91 : vector<1x8x1xf32> to vector<8x1xf32>
      %93 = vector.shape_cast %90 : vector<8x1xf32> to vector<1x8x1xf32>
      tpu.vector_store %arg8[%c1_56, %c0_57, %c0_58], %93 {strides = array<i32>} : memref<4x8x1xf32, #tpu.memory_space<vmem>>, vector<1x8x1xf32>,
      %c1_59 = arith.constant 1 : index
      %c0_60 = arith.constant 0 : index
      %c0_61 = arith.constant 0 : index
      %94 = vector.load %arg9[%c1_59, %c0_60, %c0_61] : memref<4x8x32xf32, #tpu.memory_space<vmem>>, vector<1x8x32xf32>
      %95 = vector.shape_cast %94 : vector<1x8x32xf32> to vector<8x32xf32>
      %96 = vector.broadcast %84 : vector<8x1xf32> to vector<8x32xf32>
      %97 = arith.mulf %96, %95 : vector<8x32xf32>
      %98 = arith.truncf %82 : vector<8x8xf32> to vector<8x8xbf16>
      %cst_62 = arith.constant dense<0.000000e+00> : vector<8x32xf32>
      %99 = tpu.matmul %98, %69, %cst_62 {dimension_numbers = #tpu.dot_dimension_numbers<[1], [0], [0], [1], [0, 0, 1, 1], [], []>} : vector<8x8xbf16>, vector<8x32xbf16>, vector<8x32xf32> -> vector<8x32xf32>
      %100 = arith.addf %97, %99 : vector<8x32xf32>
      %c1_63 = arith.constant 1 : index
      %c0_64 = arith.constant 0 : index
      %c0_65 = arith.constant 0 : index
      %101 = vector.load %arg9[%c1_63, %c0_64, %c0_65] : memref<4x8x32xf32, #tpu.memory_space<vmem>>, vector<1x8x32xf32>
      %102 = vector.shape_cast %101 : vector<1x8x32xf32> to vector<8x32xf32>
      %103 = vector.shape_cast %100 : vector<8x32xf32> to vector<1x8x32xf32>
      tpu.vector_store %arg9[%c1_63, %c0_64, %c0_65], %103 {strides = array<i32>} : memref<4x8x32xf32, #tpu.memory_space<vmem>>, vector<1x8x32xf32>,
      %c1_66 = arith.constant 1 : index
      %c0_67 = arith.constant 0 : index
      %c0_68 = arith.constant 0 : index
      %104 = vector.load %arg7[%c1_66, %c0_67, %c0_68] : memref<4x8x1xf32, #tpu.memory_space<vmem>>, vector<1x8x1xf32>
      %105 = vector.shape_cast %104 : vector<1x8x1xf32> to vector<8x1xf32>
      %106 = vector.shape_cast %77 : vector<8x1xf32> to vector<1x8x1xf32>
      tpu.vector_store %arg7[%c1_66, %c0_67, %c0_68], %106 {strides = array<i32>} : memref<4x8x1xf32, #tpu.memory_space<vmem>>, vector<1x8x1xf32>,
      %c0_69 = arith.constant 0 : index
      %c0_70 = arith.constant 0 : index
      %c64 = arith.constant 64 : index
      %107 = vector.load %arg3[%c0_69, %c0_70, %c64] : memref<1x8x128xbf16, #tpu.memory_space<vmem>>, vector<1x8x32xbf16>
      %108 = vector.shape_cast %107 : vector<1x8x32xbf16> to vector<8x32xbf16>
      %c0_71 = arith.constant 0 : index
      %c0_72 = arith.constant 0 : index
      %c64_73 = arith.constant 64 : index
      %109 = vector.load %arg4[%c0_71, %c0_72, %c64_73] : memref<1x8x128xbf16, #tpu.memory_space<vmem>>, vector<1x8x32xbf16>
      %110 = vector.shape_cast %109 : vector<1x8x32xbf16> to vector<8x32xbf16>
      %c0_74 = arith.constant 0 : index
      %c0_75 = arith.constant 0 : index
      %c64_76 = arith.constant 64 : index
      %111 = vector.load %arg5[%c0_74, %c0_75, %c64_76] : memref<1x8x128xbf16, #tpu.memory_space<vmem>>, vector<1x8x32xbf16>
      %112 = vector.shape_cast %111 : vector<1x8x32xbf16> to vector<8x32xbf16>
      %cst_77 = arith.constant dense<0.000000e+00> : vector<8x8xf32>
      %113 = tpu.matmul %108, %110, %cst_77 {dimension_numbers = #tpu.dot_dimension_numbers<[1], [1], [0], [0], [0, 0, 1, 0], [], []>} : vector<8x32xbf16>, vector<8x32xbf16>, vector<8x8xf32> -> vector<8x8xf32>
      %cst_78 = arith.constant 0.176776692 : f32
      %114 = vector.broadcast %cst_78 : f32 to vector<8x8xf32>
      %115 = arith.mulf %113, %114 : vector<8x8xf32>
      %c2 = arith.constant 2 : index
      %c0_79 = arith.constant 0 : index
      %c0_80 = arith.constant 0 : index
      %116 = vector.load %arg7[%c2, %c0_79, %c0_80] : memref<4x8x1xf32, #tpu.memory_space<vmem>>, vector<1x8x1xf32>
      %117 = vector.shape_cast %116 : vector<1x8x1xf32> to vector<8x1xf32>
      %cst_81 = arith.constant dense<0xFF800000> : vector<8xf32>
      %118 = vector.multi_reduction <maximumf>, %115, %cst_81 [1] : vector<8x8xf32> to vector<8xf32>
      %119 = vector.shape_cast %118 : vector<8xf32> to vector<8x1xf32>
      %120 = arith.maximumf %117, %119 : vector<8x1xf32>
      %121 = vector.broadcast %120 : vector<8x1xf32> to vector<8x8xf32>
      %122 = arith.subf %115, %121 : vector<8x8xf32>
      %123 = math.exp %122 : vector<8x8xf32>
      %cst_82 = arith.constant 0.000000e+00 : f32
      %124 = vector.broadcast %cst_82 : f32 to vector<8x8xf32>
      %125 = arith.select %20, %123, %124 : vector<8x8xi1>, vector<8x8xf32>
      %126 = arith.subf %117, %120 : vector<8x1xf32>
      %127 = math.exp %126 : vector<8x1xf32>
      %c2_83 = arith.constant 2 : index
      %c0_84 = arith.constant 0 : index
      %c0_85 = arith.constant 0 : index
      %128 = vector.load %arg8[%c2_83, %c0_84, %c0_85] : memref<4x8x1xf32, #tpu.memory_space<vmem>>, vector<1x8x1xf32>
      %129 = vector.shape_cast %128 : vector<1x8x1xf32> to vector<8x1xf32>
      %130 = arith.mulf %127, %129 : vector<8x1xf32>
      %cst_86 = arith.constant dense<0.000000e+00> : vector<8xf32>
      %131 = vector.multi_reduction <add>, %125, %cst_86 [1] : vector<8x8xf32> to vector<8xf32>
      %132 = vector.shape_cast %131 : vector<8xf32> to vector<8x1xf32>
      %133 = arith.addf %130, %132 : vector<8x1xf32>
      %c2_87 = arith.constant 2 : index
      %c0_88 = arith.constant 0 : index
      %c0_89 = arith.constant 0 : index
      %134 = vector.load %arg8[%c2_87, %c0_88, %c0_89] : memref<4x8x1xf32, #tpu.memory_space<vmem>>, vector<1x8x1xf32>
      %135 = vector.shape_cast %134 : vector<1x8x1xf32> to vector<8x1xf32>
      %136 = vector.shape_cast %133 : vector<8x1xf32> to vector<1x8x1xf32>
      tpu.vector_store %arg8[%c2_87, %c0_88, %c0_89], %136 {strides = array<i32>} : memref<4x8x1xf32, #tpu.memory_space<vmem>>, vector<1x8x1xf32>,
      %c2_90 = arith.constant 2 : index
      %c0_91 = arith.constant 0 : index
      %c0_92 = arith.constant 0 : index
      %137 = vector.load %arg9[%c2_90, %c0_91, %c0_92] : memref<4x8x32xf32, #tpu.memory_space<vmem>>, vector<1x8x32xf32>
      %138 = vector.shape_cast %137 : vector<1x8x32xf32> to vector<8x32xf32>
      %139 = vector.broadcast %127 : vector<8x1xf32> to vector<8x32xf32>
      %140 = arith.mulf %139, %138 : vector<8x32xf32>
      %141 = arith.truncf %125 : vector<8x8xf32> to vector<8x8xbf16>
      %cst_93 = arith.constant dense<0.000000e+00> : vector<8x32xf32>
      %142 = tpu.matmul %141, %112, %cst_93 {dimension_numbers = #tpu.dot_dimension_numbers<[1], [0], [0], [1], [0, 0, 1, 1], [], []>} : vector<8x8xbf16>, vector<8x32xbf16>, vector<8x32xf32> -> vector<8x32xf32>
      %143 = arith.addf %140, %142 : vector<8x32xf32>
      %c2_94 = arith.constant 2 : index
      %c0_95 = arith.constant 0 : index
      %c0_96 = arith.constant 0 : index
      %144 = vector.load %arg9[%c2_94, %c0_95, %c0_96] : memref<4x8x32xf32, #tpu.memory_space<vmem>>, vector<1x8x32xf32>
      %145 = vector.shape_cast %144 : vector<1x8x32xf32> to vector<8x32xf32>
      %146 = vector.shape_cast %143 : vector<8x32xf32> to vector<1x8x32xf32>
      tpu.vector_store %arg9[%c2_94, %c0_95, %c0_96], %146 {strides = array<i32>} : memref<4x8x32xf32, #tpu.memory_space<vmem>>, vector<1x8x32xf32>,
      %c2_97 = arith.constant 2 : index
      %c0_98 = arith.constant 0 : index
      %c0_99 = arith.constant 0 : index
      %147 = vector.load %arg7[%c2_97, %c0_98, %c0_99] : memref<4x8x1xf32, #tpu.memory_space<vmem>>, vector<1x8x1xf32>
      %148 = vector.shape_cast %147 : vector<1x8x1xf32> to vector<8x1xf32>
      %149 = vector.shape_cast %120 : vector<8x1xf32> to vector<1x8x1xf32>
      tpu.vector_store %arg7[%c2_97, %c0_98, %c0_99], %149 {strides = array<i32>} : memref<4x8x1xf32, #tpu.memory_space<vmem>>, vector<1x8x1xf32>,
      %c0_100 = arith.constant 0 : index
      %c0_101 = arith.constant 0 : index
      %c96 = arith.constant 96 : index
      %150 = vector.load %arg3[%c0_100, %c0_101, %c96] : memref<1x8x128xbf16, #tpu.memory_space<vmem>>, vector<1x8x32xbf16>
      %151 = vector.shape_cast %150 : vector<1x8x32xbf16> to vector<8x32xbf16>
      %c0_102 = arith.constant 0 : index
      %c0_103 = arith.constant 0 : index
      %c96_104 = arith.constant 96 : index
      %152 = vector.load %arg4[%c0_102, %c0_103, %c96_104] : memref<1x8x128xbf16, #tpu.memory_space<vmem>>, vector<1x8x32xbf16>
      %153 = vector.shape_cast %152 : vector<1x8x32xbf16> to vector<8x32xbf16>
      %c0_105 = arith.constant 0 : index
      %c0_106 = arith.constant 0 : index
      %c96_107 = arith.constant 96 : index
      %154 = vector.load %arg5[%c0_105, %c0_106, %c96_107] : memref<1x8x128xbf16, #tpu.memory_space<vmem>>, vector<1x8x32xbf16>
      %155 = vector.shape_cast %154 : vector<1x8x32xbf16> to vector<8x32xbf16>
      %cst_108 = arith.constant dense<0.000000e+00> : vector<8x8xf32>
      %156 = tpu.matmul %151, %153, %cst_108 {dimension_numbers = #tpu.dot_dimension_numbers<[1], [1], [0], [0], [0, 0, 1, 0], [], []>} : vector<8x32xbf16>, vector<8x32xbf16>, vector<8x8xf32> -> vector<8x8xf32>
      %cst_109 = arith.constant 0.176776692 : f32
      %157 = vector.broadcast %cst_109 : f32 to vector<8x8xf32>
      %158 = arith.mulf %156, %157 : vector<8x8xf32>
      %c3 = arith.constant 3 : index
      %c0_110 = arith.constant 0 : index
      %c0_111 = arith.constant 0 : index
      %159 = vector.load %arg7[%c3, %c0_110, %c0_111] : memref<4x8x1xf32, #tpu.memory_space<vmem>>, vector<1x8x1xf32>
      %160 = vector.shape_cast %159 : vector<1x8x1xf32> to vector<8x1xf32>
      %cst_112 = arith.constant dense<0xFF800000> : vector<8xf32>
      %161 = vector.multi_reduction <maximumf>, %158, %cst_112 [1] : vector<8x8xf32> to vector<8xf32>
      %162 = vector.shape_cast %161 : vector<8xf32> to vector<8x1xf32>
      %163 = arith.maximumf %160, %162 : vector<8x1xf32>
      %164 = vector.broadcast %163 : vector<8x1xf32> to vector<8x8xf32>
      %165 = arith.subf %158, %164 : vector<8x8xf32>
      %166 = math.exp %165 : vector<8x8xf32>
      %cst_113 = arith.constant 0.000000e+00 : f32
      %167 = vector.broadcast %cst_113 : f32 to vector<8x8xf32>
      %168 = arith.select %20, %166, %167 : vector<8x8xi1>, vector<8x8xf32>
      %169 = arith.subf %160, %163 : vector<8x1xf32>
      %170 = math.exp %169 : vector<8x1xf32>
      %c3_114 = arith.constant 3 : index
      %c0_115 = arith.constant 0 : index
      %c0_116 = arith.constant 0 : index
      %171 = vector.load %arg8[%c3_114, %c0_115, %c0_116] : memref<4x8x1xf32, #tpu.memory_space<vmem>>, vector<1x8x1xf32>
      %172 = vector.shape_cast %171 : vector<1x8x1xf32> to vector<8x1xf32>
      %173 = arith.mulf %170, %172 : vector<8x1xf32>
      %cst_117 = arith.constant dense<0.000000e+00> : vector<8xf32>
      %174 = vector.multi_reduction <add>, %168, %cst_117 [1] : vector<8x8xf32> to vector<8xf32>
      %175 = vector.shape_cast %174 : vector<8xf32> to vector<8x1xf32>
      %176 = arith.addf %173, %175 : vector<8x1xf32>
      %c3_118 = arith.constant 3 : index
      %c0_119 = arith.constant 0 : index
      %c0_120 = arith.constant 0 : index
      %177 = vector.load %arg8[%c3_118, %c0_119, %c0_120] : memref<4x8x1xf32, #tpu.memory_space<vmem>>, vector<1x8x1xf32>
      %178 = vector.shape_cast %177 : vector<1x8x1xf32> to vector<8x1xf32>
      %179 = vector.shape_cast %176 : vector<8x1xf32> to vector<1x8x1xf32>
      tpu.vector_store %arg8[%c3_118, %c0_119, %c0_120], %179 {strides = array<i32>} : memref<4x8x1xf32, #tpu.memory_space<vmem>>, vector<1x8x1xf32>,
      %c3_121 = arith.constant 3 : index
      %c0_122 = arith.constant 0 : index
      %c0_123 = arith.constant 0 : index
      %180 = vector.load %arg9[%c3_121, %c0_122, %c0_123] : memref<4x8x32xf32, #tpu.memory_space<vmem>>, vector<1x8x32xf32>
      %181 = vector.shape_cast %180 : vector<1x8x32xf32> to vector<8x32xf32>
      %182 = vector.broadcast %170 : vector<8x1xf32> to vector<8x32xf32>
      %183 = arith.mulf %182, %181 : vector<8x32xf32>
      %184 = arith.truncf %168 : vector<8x8xf32> to vector<8x8xbf16>
      %cst_124 = arith.constant dense<0.000000e+00> : vector<8x32xf32>
      %185 = tpu.matmul %184, %155, %cst_124 {dimension_numbers = #tpu.dot_dimension_numbers<[1], [0], [0], [1], [0, 0, 1, 1], [], []>} : vector<8x8xbf16>, vector<8x32xbf16>, vector<8x32xf32> -> vector<8x32xf32>
      %186 = arith.addf %183, %185 : vector<8x32xf32>
      %c3_125 = arith.constant 3 : index
      %c0_126 = arith.constant 0 : index
      %c0_127 = arith.constant 0 : index
      %187 = vector.load %arg9[%c3_125, %c0_126, %c0_127] : memref<4x8x32xf32, #tpu.memory_space<vmem>>, vector<1x8x32xf32>
      %188 = vector.shape_cast %187 : vector<1x8x32xf32> to vector<8x32xf32>
      %189 = vector.shape_cast %186 : vector<8x32xf32> to vector<1x8x32xf32>
      tpu.vector_store %arg9[%c3_125, %c0_126, %c0_127], %189 {strides = array<i32>} : memref<4x8x32xf32, #tpu.memory_space<vmem>>, vector<1x8x32xf32>,
      %c3_128 = arith.constant 3 : index
      %c0_129 = arith.constant 0 : index
      %c0_130 = arith.constant 0 : index
      %190 = vector.load %arg7[%c3_128, %c0_129, %c0_130] : memref<4x8x1xf32, #tpu.memory_space<vmem>>, vector<1x8x1xf32>
      %191 = vector.shape_cast %190 : vector<1x8x1xf32> to vector<8x1xf32>
      %192 = vector.shape_cast %163 : vector<8x1xf32> to vector<1x8x1xf32>
      tpu.vector_store %arg7[%c3_128, %c0_129, %c0_130], %192 {strides = array<i32>} : memref<4x8x1xf32, #tpu.memory_space<vmem>>, vector<1x8x1xf32>,
    } else {
    }
    %c0_i32_3 = arith.constant 0 : i32
    %9 = arith.cmpi eq, %arg2, %c0_i32_3 : i32
    %10 = arith.extui %9 : i1 to i32
    %c0_i32_4 = arith.constant 0 : i32
    %11 = arith.cmpi ne, %10, %c0_i32_4 : i32
    scf.if %11 {
      %c0 = arith.constant 0 : index
      %c0_5 = arith.constant 0 : index
      %c0_6 = arith.constant 0 : index
      %12 = vector.load %arg8[%c0, %c0_5, %c0_6] : memref<4x8x1xf32, #tpu.memory_space<vmem>>, vector<1x8x1xf32>
      %13 = vector.shape_cast %12 : vector<1x8x1xf32> to vector<8x1xf32>
      %14 = tpu.reciprocal %13 {approx = true} : vector<8x1xf32> -> vector<8x1xf32>
      %c0_7 = arith.constant 0 : index
      %c0_8 = arith.constant 0 : index
      %c0_9 = arith.constant 0 : index
      %15 = vector.load %arg9[%c0_7, %c0_8, %c0_9] : memref<4x8x32xf32, #tpu.memory_space<vmem>>, vector<1x8x32xf32>
      %16 = vector.shape_cast %15 : vector<1x8x32xf32> to vector<8x32xf32>
      %17 = vector.broadcast %14 : vector<8x1xf32> to vector<8x32xf32>
      %18 = arith.mulf %16, %17 : vector<8x32xf32>
      %c1 = arith.constant 1 : index
      %c0_10 = arith.constant 0 : index
      %c0_11 = arith.constant 0 : index
      %19 = vector.load %arg8[%c1, %c0_10, %c0_11] : memref<4x8x1xf32, #tpu.memory_space<vmem>>, vector<1x8x1xf32>
      %20 = vector.shape_cast %19 : vector<1x8x1xf32> to vector<8x1xf32>
      %21 = tpu.reciprocal %20 {approx = true} : vector<8x1xf32> -> vector<8x1xf32>
      %c1_12 = arith.constant 1 : index
      %c0_13 = arith.constant 0 : index
      %c0_14 = arith.constant 0 : index
      %22 = vector.load %arg9[%c1_12, %c0_13, %c0_14] : memref<4x8x32xf32, #tpu.memory_space<vmem>>, vector<1x8x32xf32>
      %23 = vector.shape_cast %22 : vector<1x8x32xf32> to vector<8x32xf32>
      %24 = vector.broadcast %21 : vector<8x1xf32> to vector<8x32xf32>
      %25 = arith.mulf %23, %24 : vector<8x32xf32>
      %c2 = arith.constant 2 : index
      %c0_15 = arith.constant 0 : index
      %c0_16 = arith.constant 0 : index
      %26 = vector.load %arg8[%c2, %c0_15, %c0_16] : memref<4x8x1xf32, #tpu.memory_space<vmem>>, vector<1x8x1xf32>
      %27 = vector.shape_cast %26 : vector<1x8x1xf32> to vector<8x1xf32>
      %28 = tpu.reciprocal %27 {approx = true} : vector<8x1xf32> -> vector<8x1xf32>
      %c2_17 = arith.constant 2 : index
      %c0_18 = arith.constant 0 : index
      %c0_19 = arith.constant 0 : index
      %29 = vector.load %arg9[%c2_17, %c0_18, %c0_19] : memref<4x8x32xf32, #tpu.memory_space<vmem>>, vector<1x8x32xf32>
      %30 = vector.shape_cast %29 : vector<1x8x32xf32> to vector<8x32xf32>
      %31 = vector.broadcast %28 : vector<8x1xf32> to vector<8x32xf32>
      %32 = arith.mulf %30, %31 : vector<8x32xf32>
      %c3 = arith.constant 3 : index
      %c0_20 = arith.constant 0 : index
      %c0_21 = arith.constant 0 : index
      %33 = vector.load %arg8[%c3, %c0_20, %c0_21] : memref<4x8x1xf32, #tpu.memory_space<vmem>>, vector<1x8x1xf32>
      %34 = vector.shape_cast %33 : vector<1x8x1xf32> to vector<8x1xf32>
      %35 = tpu.reciprocal %34 {approx = true} : vector<8x1xf32> -> vector<8x1xf32>
      %c3_22 = arith.constant 3 : index
      %c0_23 = arith.constant 0 : index
      %c0_24 = arith.constant 0 : index
      %36 = vector.load %arg9[%c3_22, %c0_23, %c0_24] : memref<4x8x32xf32, #tpu.memory_space<vmem>>, vector<1x8x32xf32>
      %37 = vector.shape_cast %36 : vector<1x8x32xf32> to vector<8x32xf32>
      %38 = vector.broadcast %35 : vector<8x1xf32> to vector<8x32xf32>
      %39 = arith.mulf %37, %38 : vector<8x32xf32>
      %40 = tpu.concatenate %18, %25, %32, %39 in 1 : vector<8x32xf32>, vector<8x32xf32>, vector<8x32xf32>, vector<8x32xf32> -> vector<8x128xf32>
      %41 = arith.truncf %40 : vector<8x128xf32> to vector<8x128xbf16>
      %c0_25 = arith.constant 0 : index
      %c0_26 = arith.constant 0 : index
      %c0_27 = arith.constant 0 : index
      %42 = vector.load %arg6[%c0_25, %c0_26, %c0_27] : memref<1x8x128xbf16, #tpu.memory_space<vmem>>, vector<1x8x128xbf16>
      %43 = vector.shape_cast %42 : vector<1x8x128xbf16> to vector<8x128xbf16>
      %44 = vector.shape_cast %41 : vector<8x128xbf16> to vector<1x8x128xbf16>
      tpu.vector_store %arg6[%c0_25, %c0_26, %c0_27], %44 {strides = array<i32>} : memref<1x8x128xbf16, #tpu.memory_space<vmem>>, vector<1x8x128xbf16>,
    } else {
    }
    return
  }
  func.func @transform_0(%arg0: i32, %arg1: i32, %arg2: i32) -> (i32, i32, i32) {
    %c0_i32 = arith.constant 0 : i32
    %c0_i32_0 = arith.constant 0 : i32
    return %arg0, %arg1, %c0_i32 : i32, i32, i32
  }
  func.func @transform_1(%arg0: i32, %arg1: i32, %arg2: i32) -> (i32, i32, i32) {
    %c1_i32 = arith.constant 1 : i32
    %c0_i32 = arith.constant 0 : i32
    return %arg0, %arg2, %c1_i32 : i32, i32, i32
  }
  func.func @transform_2(%arg0: i32, %arg1: i32, %arg2: i32) -> (i32, i32, i32) {
    %c2_i32 = arith.constant 2 : i32
    %c0_i32 = arith.constant 0 : i32
    return %arg0, %arg2, %c2_i32 : i32, i32, i32
  }
  func.func @transform_3(%arg0: i32, %arg1: i32, %arg2: i32) -> (i32, i32, i32) {
    %c0_i32 = arith.constant 0 : i32
    %c0_i32_0 = arith.constant 0 : i32
    return %arg0, %arg1, %c0_i32 : i32, i32, i32
  }
}

module attributes {stable_mosaic.version = 11 : i64} {
  func.func @_linear_residual_kernel(%arg0: i32, %arg1: i32, %arg2: memref<16x128xbf16, #tpu.memory_space<vmem>>, %arg3: memref<128x128xbf16, #tpu.memory_space<vmem>>, %arg4: memref<1x128xf32, #tpu.memory_space<vmem>>, %arg5: memref<16x128xf32, #tpu.memory_space<vmem>>, %arg6: memref<16x128xf32, #tpu.memory_space<vmem>>) attributes {dimension_semantics = [#tpu.dimension_semantics<parallel>, #tpu.dimension_semantics<parallel>], iteration_bounds = array<i64: 1, 1>, scalar_prefetch = 0 : i64, scratch_operands = 0 : i64, tpu.core_type = #tpu.core_type<tc>, window_params = [{transform_indices = @transform_0, window_bounds = array<i64: 16, 128>}, {transform_indices = @transform_1, window_bounds = array<i64: 128, 128>}, {transform_indices = @transform_2, window_bounds = array<i64: 1, 128>}, {transform_indices = @transform_3, window_bounds = array<i64: 16, 128>}, {transform_indices = @transform_4, window_bounds = array<i64: 16, 128>}]} {
    %c0 = arith.constant 0 : index
    %c0_0 = arith.constant 0 : index
    %0 = vector.load %arg2[%c0, %c0_0] : memref<16x128xbf16, #tpu.memory_space<vmem>>, vector<16x128xbf16>
    %c0_1 = arith.constant 0 : index
    %c0_2 = arith.constant 0 : index
    %1 = vector.load %arg3[%c0_1, %c0_2] : memref<128x128xbf16, #tpu.memory_space<vmem>>, vector<128x128xbf16>
    %cst = arith.constant dense<0.000000e+00> : vector<16x128xf32>
    %2 = tpu.matmul %0, %1, %cst {dimension_numbers = #tpu.dot_dimension_numbers<[1], [0], [0], [1], [0, 0, 1, 1], [], []>} : vector<16x128xbf16>, vector<128x128xbf16>, vector<16x128xf32> -> vector<16x128xf32>
    %c0_3 = arith.constant 0 : index
    %c0_4 = arith.constant 0 : index
    %3 = vector.load %arg4[%c0_3, %c0_4] : memref<1x128xf32, #tpu.memory_space<vmem>>, vector<1x128xf32>
    %4 = vector.broadcast %3 : vector<1x128xf32> to vector<16x128xf32>
    %5 = arith.addf %2, %4 : vector<16x128xf32>
    %c0_5 = arith.constant 0 : index
    %c0_6 = arith.constant 0 : index
    %6 = vector.load %arg5[%c0_5, %c0_6] : memref<16x128xf32, #tpu.memory_space<vmem>>, vector<16x128xf32>
    %7 = arith.addf %5, %6 : vector<16x128xf32>
    %c0_7 = arith.constant 0 : index
    %c0_8 = arith.constant 0 : index
    %8 = vector.load %arg6[%c0_7, %c0_8] : memref<16x128xf32, #tpu.memory_space<vmem>>, vector<16x128xf32>
    tpu.vector_store %arg6[%c0_7, %c0_8], %7 {strides = array<i32>} : memref<16x128xf32, #tpu.memory_space<vmem>>, vector<16x128xf32>,
    return
  }
  func.func @transform_0(%arg0: i32, %arg1: i32) -> (i32, i32) {
    %c0_i32 = arith.constant 0 : i32
    %c0_i32_0 = arith.constant 0 : i32
    return %arg0, %c0_i32 : i32, i32
  }
  func.func @transform_1(%arg0: i32, %arg1: i32) -> (i32, i32) {
    %c0_i32 = arith.constant 0 : i32
    %c0_i32_0 = arith.constant 0 : i32
    return %c0_i32, %arg1 : i32, i32
  }
  func.func @transform_2(%arg0: i32, %arg1: i32) -> (i32, i32) {
    %c0_i32 = arith.constant 0 : i32
    %c0_i32_0 = arith.constant 0 : i32
    return %c0_i32, %arg1 : i32, i32
  }
  func.func @transform_3(%arg0: i32, %arg1: i32) -> (i32, i32) {
    %c0_i32 = arith.constant 0 : i32
    return %arg0, %arg1 : i32, i32
  }
  func.func @transform_4(%arg0: i32, %arg1: i32) -> (i32, i32) {
    %c0_i32 = arith.constant 0 : i32
    return %arg0, %arg1 : i32, i32
  }
}

module attributes {stable_mosaic.version = 11 : i64} {
  func.func @_ln_linear_kernel(%arg0: i32, %arg1: i32, %arg2: memref<16x128xf32, #tpu.memory_space<vmem>>, %arg3: memref<1x128xf32, #tpu.memory_space<vmem>>, %arg4: memref<1x128xf32, #tpu.memory_space<vmem>>, %arg5: memref<128x384xbf16, #tpu.memory_space<vmem>>, %arg6: memref<1x384xf32, #tpu.memory_space<vmem>>, %arg7: memref<16x384xbf16, #tpu.memory_space<vmem>>) attributes {dimension_semantics = [#tpu.dimension_semantics<parallel>, #tpu.dimension_semantics<parallel>], iteration_bounds = array<i64: 1, 1>, scalar_prefetch = 0 : i64, scratch_operands = 0 : i64, tpu.core_type = #tpu.core_type<tc>, window_params = [{transform_indices = @transform_0, window_bounds = array<i64: 16, 128>}, {pipeline_mode = #tpu.pipeline_mode<synchronous>, transform_indices = @transform_1, window_bounds = array<i64: 1, 128>}, {pipeline_mode = #tpu.pipeline_mode<synchronous>, transform_indices = @transform_2, window_bounds = array<i64: 1, 128>}, {transform_indices = @transform_3, window_bounds = array<i64: 128, 384>}, {transform_indices = @transform_4, window_bounds = array<i64: 1, 384>}, {transform_indices = @transform_5, window_bounds = array<i64: 16, 384>}]} {
    %c0 = arith.constant 0 : index
    %c0_0 = arith.constant 0 : index
    %0 = vector.load %arg2[%c0, %c0_0] : memref<16x128xf32, #tpu.memory_space<vmem>>, vector<16x128xf32>
    %cst = arith.constant dense<0.000000e+00> : vector<16xf32>
    %1 = vector.multi_reduction <add>, %0, %cst [1] : vector<16x128xf32> to vector<16xf32>
    %2 = vector.shape_cast %1 : vector<16xf32> to vector<16x1xf32>
    %cst_1 = arith.constant 1.280000e+02 : f32
    %3 = vector.broadcast %cst_1 : f32 to vector<16x1xf32>
    %4 = arith.divf %2, %3 : vector<16x1xf32>
    %5 = vector.broadcast %4 : vector<16x1xf32> to vector<16x128xf32>
    %6 = arith.subf %0, %5 : vector<16x128xf32>
    %7 = arith.mulf %6, %6 : vector<16x128xf32>
    %cst_2 = arith.constant dense<0.000000e+00> : vector<16xf32>
    %8 = vector.multi_reduction <add>, %7, %cst_2 [1] : vector<16x128xf32> to vector<16xf32>
    %9 = vector.shape_cast %8 : vector<16xf32> to vector<16x1xf32>
    %cst_3 = arith.constant 1.280000e+02 : f32
    %10 = vector.broadcast %cst_3 : f32 to vector<16x1xf32>
    %11 = arith.divf %9, %10 : vector<16x1xf32>
    %12 = vector.broadcast %4 : vector<16x1xf32> to vector<16x128xf32>
    %13 = arith.subf %0, %12 : vector<16x128xf32>
    %cst_4 = arith.constant 9.99999974E-6 : f32
    %14 = vector.broadcast %cst_4 : f32 to vector<16x1xf32>
    %15 = arith.addf %11, %14 : vector<16x1xf32>
    %16 = math.rsqrt %15 : vector<16x1xf32>
    %17 = vector.broadcast %16 : vector<16x1xf32> to vector<16x128xf32>
    %18 = arith.mulf %13, %17 : vector<16x128xf32>
    %c0_5 = arith.constant 0 : index
    %c0_6 = arith.constant 0 : index
    %19 = vector.load %arg3[%c0_5, %c0_6] : memref<1x128xf32, #tpu.memory_space<vmem>>, vector<1x128xf32>
    %20 = vector.broadcast %19 : vector<1x128xf32> to vector<16x128xf32>
    %21 = arith.mulf %18, %20 : vector<16x128xf32>
    %c0_7 = arith.constant 0 : index
    %c0_8 = arith.constant 0 : index
    %22 = vector.load %arg4[%c0_7, %c0_8] : memref<1x128xf32, #tpu.memory_space<vmem>>, vector<1x128xf32>
    %23 = vector.broadcast %22 : vector<1x128xf32> to vector<16x128xf32>
    %24 = arith.addf %21, %23 : vector<16x128xf32>
    %25 = arith.truncf %24 : vector<16x128xf32> to vector<16x128xbf16>
    %c0_9 = arith.constant 0 : index
    %c0_10 = arith.constant 0 : index
    %26 = vector.load %arg5[%c0_9, %c0_10] : memref<128x384xbf16, #tpu.memory_space<vmem>>, vector<128x384xbf16>
    %cst_11 = arith.constant dense<0.000000e+00> : vector<16x384xf32>
    %27 = tpu.matmul %25, %26, %cst_11 {dimension_numbers = #tpu.dot_dimension_numbers<[1], [0], [0], [1], [0, 0, 1, 1], [], []>} : vector<16x128xbf16>, vector<128x384xbf16>, vector<16x384xf32> -> vector<16x384xf32>
    %c0_12 = arith.constant 0 : index
    %c0_13 = arith.constant 0 : index
    %28 = vector.load %arg6[%c0_12, %c0_13] : memref<1x384xf32, #tpu.memory_space<vmem>>, vector<1x384xf32>
    %29 = vector.broadcast %28 : vector<1x384xf32> to vector<16x384xf32>
    %30 = arith.addf %27, %29 : vector<16x384xf32>
    %31 = arith.truncf %30 : vector<16x384xf32> to vector<16x384xbf16>
    %c0_14 = arith.constant 0 : index
    %c0_15 = arith.constant 0 : index
    %32 = vector.load %arg7[%c0_14, %c0_15] : memref<16x384xbf16, #tpu.memory_space<vmem>>, vector<16x384xbf16>
    tpu.vector_store %arg7[%c0_14, %c0_15], %31 {strides = array<i32>} : memref<16x384xbf16, #tpu.memory_space<vmem>>, vector<16x384xbf16>,
    return
  }
  func.func @transform_0(%arg0: i32, %arg1: i32) -> (i32, i32) {
    %c0_i32 = arith.constant 0 : i32
    %c0_i32_0 = arith.constant 0 : i32
    return %arg0, %c0_i32 : i32, i32
  }
  func.func @transform_1(%arg0: i32, %arg1: i32) -> (i32, i32) {
    %c0_i32 = arith.constant 0 : i32
    %c0_i32_0 = arith.constant 0 : i32
    %c0_i32_1 = arith.constant 0 : i32
    return %c0_i32, %c0_i32_0 : i32, i32
  }
  func.func @transform_2(%arg0: i32, %arg1: i32) -> (i32, i32) {
    %c0_i32 = arith.constant 0 : i32
    %c0_i32_0 = arith.constant 0 : i32
    %c0_i32_1 = arith.constant 0 : i32
    return %c0_i32, %c0_i32_0 : i32, i32
  }
  func.func @transform_3(%arg0: i32, %arg1: i32) -> (i32, i32) {
    %c0_i32 = arith.constant 0 : i32
    %c0_i32_0 = arith.constant 0 : i32
    return %c0_i32, %arg1 : i32, i32
  }
  func.func @transform_4(%arg0: i32, %arg1: i32) -> (i32, i32) {
    %c0_i32 = arith.constant 0 : i32
    %c0_i32_0 = arith.constant 0 : i32
    return %c0_i32, %arg1 : i32, i32
  }
  func.func @transform_5(%arg0: i32, %arg1: i32) -> (i32, i32) {
    %c0_i32 = arith.constant 0 : i32
    return %arg0, %arg1 : i32, i32
  }
}

module attributes {stable_mosaic.version = 11 : i64} {
  func.func @_ln_lm_head_kernel(%arg0: i32, %arg1: i32, %arg2: memref<16x128xf32, #tpu.memory_space<vmem>>, %arg3: memref<1x128xf32, #tpu.memory_space<vmem>>, %arg4: memref<1x128xf32, #tpu.memory_space<vmem>>, %arg5: memref<512x128xbf16, #tpu.memory_space<vmem>>, %arg6: memref<16x512xf32, #tpu.memory_space<vmem>>) attributes {dimension_semantics = [#tpu.dimension_semantics<parallel>, #tpu.dimension_semantics<parallel>], iteration_bounds = array<i64: 1, 1>, scalar_prefetch = 0 : i64, scratch_operands = 0 : i64, tpu.core_type = #tpu.core_type<tc>, window_params = [{transform_indices = @transform_0, window_bounds = array<i64: 16, 128>}, {pipeline_mode = #tpu.pipeline_mode<synchronous>, transform_indices = @transform_1, window_bounds = array<i64: 1, 128>}, {pipeline_mode = #tpu.pipeline_mode<synchronous>, transform_indices = @transform_2, window_bounds = array<i64: 1, 128>}, {transform_indices = @transform_3, window_bounds = array<i64: 512, 128>}, {transform_indices = @transform_4, window_bounds = array<i64: 16, 512>}]} {
    %c0 = arith.constant 0 : index
    %c0_0 = arith.constant 0 : index
    %0 = vector.load %arg2[%c0, %c0_0] : memref<16x128xf32, #tpu.memory_space<vmem>>, vector<16x128xf32>
    %cst = arith.constant dense<0.000000e+00> : vector<16xf32>
    %1 = vector.multi_reduction <add>, %0, %cst [1] : vector<16x128xf32> to vector<16xf32>
    %2 = vector.shape_cast %1 : vector<16xf32> to vector<16x1xf32>
    %cst_1 = arith.constant 1.280000e+02 : f32
    %3 = vector.broadcast %cst_1 : f32 to vector<16x1xf32>
    %4 = arith.divf %2, %3 : vector<16x1xf32>
    %5 = vector.broadcast %4 : vector<16x1xf32> to vector<16x128xf32>
    %6 = arith.subf %0, %5 : vector<16x128xf32>
    %7 = arith.mulf %6, %6 : vector<16x128xf32>
    %cst_2 = arith.constant dense<0.000000e+00> : vector<16xf32>
    %8 = vector.multi_reduction <add>, %7, %cst_2 [1] : vector<16x128xf32> to vector<16xf32>
    %9 = vector.shape_cast %8 : vector<16xf32> to vector<16x1xf32>
    %cst_3 = arith.constant 1.280000e+02 : f32
    %10 = vector.broadcast %cst_3 : f32 to vector<16x1xf32>
    %11 = arith.divf %9, %10 : vector<16x1xf32>
    %12 = vector.broadcast %4 : vector<16x1xf32> to vector<16x128xf32>
    %13 = arith.subf %0, %12 : vector<16x128xf32>
    %cst_4 = arith.constant 9.99999974E-6 : f32
    %14 = vector.broadcast %cst_4 : f32 to vector<16x1xf32>
    %15 = arith.addf %11, %14 : vector<16x1xf32>
    %16 = math.rsqrt %15 : vector<16x1xf32>
    %17 = vector.broadcast %16 : vector<16x1xf32> to vector<16x128xf32>
    %18 = arith.mulf %13, %17 : vector<16x128xf32>
    %c0_5 = arith.constant 0 : index
    %c0_6 = arith.constant 0 : index
    %19 = vector.load %arg3[%c0_5, %c0_6] : memref<1x128xf32, #tpu.memory_space<vmem>>, vector<1x128xf32>
    %20 = vector.broadcast %19 : vector<1x128xf32> to vector<16x128xf32>
    %21 = arith.mulf %18, %20 : vector<16x128xf32>
    %c0_7 = arith.constant 0 : index
    %c0_8 = arith.constant 0 : index
    %22 = vector.load %arg4[%c0_7, %c0_8] : memref<1x128xf32, #tpu.memory_space<vmem>>, vector<1x128xf32>
    %23 = vector.broadcast %22 : vector<1x128xf32> to vector<16x128xf32>
    %24 = arith.addf %21, %23 : vector<16x128xf32>
    %25 = arith.truncf %24 : vector<16x128xf32> to vector<16x128xbf16>
    %c0_9 = arith.constant 0 : index
    %c0_10 = arith.constant 0 : index
    %26 = vector.load %arg5[%c0_9, %c0_10] : memref<512x128xbf16, #tpu.memory_space<vmem>>, vector<512x128xbf16>
    %cst_11 = arith.constant dense<0.000000e+00> : vector<16x512xf32>
    %27 = tpu.matmul %25, %26, %cst_11 {dimension_numbers = #tpu.dot_dimension_numbers<[1], [1], [0], [0], [0, 0, 1, 0], [], []>} : vector<16x128xbf16>, vector<512x128xbf16>, vector<16x512xf32> -> vector<16x512xf32>
    %c0_12 = arith.constant 0 : index
    %c0_13 = arith.constant 0 : index
    %28 = vector.load %arg6[%c0_12, %c0_13] : memref<16x512xf32, #tpu.memory_space<vmem>>, vector<16x512xf32>
    tpu.vector_store %arg6[%c0_12, %c0_13], %27 {strides = array<i32>} : memref<16x512xf32, #tpu.memory_space<vmem>>, vector<16x512xf32>,
    return
  }
  func.func @transform_0(%arg0: i32, %arg1: i32) -> (i32, i32) {
    %c0_i32 = arith.constant 0 : i32
    %c0_i32_0 = arith.constant 0 : i32
    return %arg0, %c0_i32 : i32, i32
  }
  func.func @transform_1(%arg0: i32, %arg1: i32) -> (i32, i32) {
    %c0_i32 = arith.constant 0 : i32
    %c0_i32_0 = arith.constant 0 : i32
    %c0_i32_1 = arith.constant 0 : i32
    return %c0_i32, %c0_i32_0 : i32, i32
  }
  func.func @transform_2(%arg0: i32, %arg1: i32) -> (i32, i32) {
    %c0_i32 = arith.constant 0 : i32
    %c0_i32_0 = arith.constant 0 : i32
    %c0_i32_1 = arith.constant 0 : i32
    return %c0_i32, %c0_i32_0 : i32, i32
  }
  func.func @transform_3(%arg0: i32, %arg1: i32) -> (i32, i32) {
    %c0_i32 = arith.constant 0 : i32
    %c0_i32_0 = arith.constant 0 : i32
    return %arg1, %c0_i32 : i32, i32
  }
  func.func @transform_4(%arg0: i32, %arg1: i32) -> (i32, i32) {
    %c0_i32 = arith.constant 0 : i32
    return %arg0, %arg1 : i32, i32
  }
}

module attributes {stable_mosaic.version = 11 : i64} {
  func.func @_ln_mlp_residual_kernel(%arg0: i32, %arg1: i32, %arg2: memref<16x128xf32, #tpu.memory_space<vmem>>, %arg3: memref<1x128xf32, #tpu.memory_space<vmem>>, %arg4: memref<1x128xf32, #tpu.memory_space<vmem>>, %arg5: memref<128x512xbf16, #tpu.memory_space<vmem>>, %arg6: memref<1x512xf32, #tpu.memory_space<vmem>>, %arg7: memref<512x128xbf16, #tpu.memory_space<vmem>>, %arg8: memref<1x128xf32, #tpu.memory_space<vmem>>, %arg9: memref<16x128xf32, #tpu.memory_space<vmem>>, %arg10: memref<16x128xbf16, #tpu.memory_space<vmem>>, %arg11: memref<16x128xf32, #tpu.memory_space<vmem>>) attributes {dimension_semantics = [#tpu.dimension_semantics<parallel>, #tpu.dimension_semantics<arbitrary>], iteration_bounds = array<i64: 1, 1>, scalar_prefetch = 0 : i64, scratch_operands = 2 : i64, tpu.core_type = #tpu.core_type<tc>, window_params = [{transform_indices = @transform_0, window_bounds = array<i64: 16, 128>}, {pipeline_mode = #tpu.pipeline_mode<synchronous>, transform_indices = @transform_1, window_bounds = array<i64: 1, 128>}, {pipeline_mode = #tpu.pipeline_mode<synchronous>, transform_indices = @transform_2, window_bounds = array<i64: 1, 128>}, {transform_indices = @transform_3, window_bounds = array<i64: 128, 512>}, {transform_indices = @transform_4, window_bounds = array<i64: 1, 512>}, {transform_indices = @transform_5, window_bounds = array<i64: 512, 128>}, {pipeline_mode = #tpu.pipeline_mode<synchronous>, transform_indices = @transform_6, window_bounds = array<i64: 1, 128>}, {transform_indices = @transform_7, window_bounds = array<i64: 16, 128>}]} {
    %c0_i32 = arith.constant 0 : i32
    %0 = arith.cmpi eq, %arg1, %c0_i32 : i32
    %1 = arith.extui %0 : i1 to i32
    %c0_i32_0 = arith.constant 0 : i32
    %2 = arith.cmpi ne, %1, %c0_i32_0 : i32
    scf.if %2 {
      %c0_19 = arith.constant 0 : index
      %c0_20 = arith.constant 0 : index
      %31 = vector.load %arg2[%c0_19, %c0_20] : memref<16x128xf32, #tpu.memory_space<vmem>>, vector<16x128xf32>
      %cst_21 = arith.constant dense<0.000000e+00> : vector<16xf32>
      %32 = vector.multi_reduction <add>, %31, %cst_21 [1] : vector<16x128xf32> to vector<16xf32>
      %33 = vector.shape_cast %32 : vector<16xf32> to vector<16x1xf32>
      %cst_22 = arith.constant 1.280000e+02 : f32
      %34 = vector.broadcast %cst_22 : f32 to vector<16x1xf32>
      %35 = arith.divf %33, %34 : vector<16x1xf32>
      %36 = vector.broadcast %35 : vector<16x1xf32> to vector<16x128xf32>
      %37 = arith.subf %31, %36 : vector<16x128xf32>
      %38 = arith.mulf %37, %37 : vector<16x128xf32>
      %cst_23 = arith.constant dense<0.000000e+00> : vector<16xf32>
      %39 = vector.multi_reduction <add>, %38, %cst_23 [1] : vector<16x128xf32> to vector<16xf32>
      %40 = vector.shape_cast %39 : vector<16xf32> to vector<16x1xf32>
      %cst_24 = arith.constant 1.280000e+02 : f32
      %41 = vector.broadcast %cst_24 : f32 to vector<16x1xf32>
      %42 = arith.divf %40, %41 : vector<16x1xf32>
      %43 = vector.broadcast %35 : vector<16x1xf32> to vector<16x128xf32>
      %44 = arith.subf %31, %43 : vector<16x128xf32>
      %cst_25 = arith.constant 9.99999974E-6 : f32
      %45 = vector.broadcast %cst_25 : f32 to vector<16x1xf32>
      %46 = arith.addf %42, %45 : vector<16x1xf32>
      %47 = math.rsqrt %46 : vector<16x1xf32>
      %48 = vector.broadcast %47 : vector<16x1xf32> to vector<16x128xf32>
      %49 = arith.mulf %44, %48 : vector<16x128xf32>
      %c0_26 = arith.constant 0 : index
      %c0_27 = arith.constant 0 : index
      %50 = vector.load %arg3[%c0_26, %c0_27] : memref<1x128xf32, #tpu.memory_space<vmem>>, vector<1x128xf32>
      %51 = vector.broadcast %50 : vector<1x128xf32> to vector<16x128xf32>
      %52 = arith.mulf %49, %51 : vector<16x128xf32>
      %c0_28 = arith.constant 0 : index
      %c0_29 = arith.constant 0 : index
      %53 = vector.load %arg4[%c0_28, %c0_29] : memref<1x128xf32, #tpu.memory_space<vmem>>, vector<1x128xf32>
      %54 = vector.broadcast %53 : vector<1x128xf32> to vector<16x128xf32>
      %55 = arith.addf %52, %54 : vector<16x128xf32>
      %56 = arith.truncf %55 : vector<16x128xf32> to vector<16x128xbf16>
      %c0_30 = arith.constant 0 : index
      %c0_31 = arith.constant 0 : index
      %57 = vector.load %arg10[%c0_30, %c0_31] : memref<16x128xbf16, #tpu.memory_space<vmem>>, vector<16x128xbf16>
      tpu.vector_store %arg10[%c0_30, %c0_31], %56 {strides = array<i32>} : memref<16x128xbf16, #tpu.memory_space<vmem>>, vector<16x128xbf16>,
      %cst_32 = arith.constant 0.000000e+00 : f32
      %58 = vector.broadcast %cst_32 : f32 to vector<16x128xf32>
      %c0_33 = arith.constant 0 : index
      %c0_34 = arith.constant 0 : index
      %59 = vector.load %arg11[%c0_33, %c0_34] : memref<16x128xf32, #tpu.memory_space<vmem>>, vector<16x128xf32>
      tpu.vector_store %arg11[%c0_33, %c0_34], %58 {strides = array<i32>} : memref<16x128xf32, #tpu.memory_space<vmem>>, vector<16x128xf32>,
    } else {
    }
    %c0 = arith.constant 0 : index
    %c0_1 = arith.constant 0 : index
    %3 = vector.load %arg10[%c0, %c0_1] : memref<16x128xbf16, #tpu.memory_space<vmem>>, vector<16x128xbf16>
    %c0_2 = arith.constant 0 : index
    %c0_3 = arith.constant 0 : index
    %4 = vector.load %arg5[%c0_2, %c0_3] : memref<128x512xbf16, #tpu.memory_space<vmem>>, vector<128x512xbf16>
    %cst = arith.constant dense<0.000000e+00> : vector<16x512xf32>
    %5 = tpu.matmul %3, %4, %cst {dimension_numbers = #tpu.dot_dimension_numbers<[1], [0], [0], [1], [0, 0, 1, 1], [], []>} : vector<16x128xbf16>, vector<128x512xbf16>, vector<16x512xf32> -> vector<16x512xf32>
    %c0_4 = arith.constant 0 : index
    %c0_5 = arith.constant 0 : index
    %6 = vector.load %arg6[%c0_4, %c0_5] : memref<1x512xf32, #tpu.memory_space<vmem>>, vector<1x512xf32>
    %7 = vector.broadcast %6 : vector<1x512xf32> to vector<16x512xf32>
    %8 = arith.addf %5, %7 : vector<16x512xf32>
    %cst_6 = arith.constant 5.000000e-01 : f32
    %9 = vector.broadcast %cst_6 : f32 to vector<16x512xf32>
    %10 = arith.mulf %9, %8 : vector<16x512xf32>
    %cst_7 = arith.constant 4.471500e-02 : f32
    %11 = vector.broadcast %cst_7 : f32 to vector<16x512xf32>
    %12 = arith.mulf %11, %8 : vector<16x512xf32>
    %13 = arith.mulf %12, %8 : vector<16x512xf32>
    %14 = arith.mulf %13, %8 : vector<16x512xf32>
    %15 = arith.addf %8, %14 : vector<16x512xf32>
    %cst_8 = arith.constant 0.797884583 : f32
    %16 = vector.broadcast %cst_8 : f32 to vector<16x512xf32>
    %17 = arith.mulf %16, %15 : vector<16x512xf32>
    %18 = math.tanh %17 : vector<16x512xf32>
    %cst_9 = arith.constant 1.000000e+00 : f32
    %19 = vector.broadcast %cst_9 : f32 to vector<16x512xf32>
    %20 = arith.addf %19, %18 : vector<16x512xf32>
    %21 = arith.mulf %10, %20 : vector<16x512xf32>
    %c0_10 = arith.constant 0 : index
    %c0_11 = arith.constant 0 : index
    %22 = vector.load %arg11[%c0_10, %c0_11] : memref<16x128xf32, #tpu.memory_space<vmem>>, vector<16x128xf32>
    %23 = arith.truncf %21 : vector<16x512xf32> to vector<16x512xbf16>
    %c0_12 = arith.constant 0 : index
    %c0_13 = arith.constant 0 : index
    %24 = vector.load %arg7[%c0_12, %c0_13] : memref<512x128xbf16, #tpu.memory_space<vmem>>, vector<512x128xbf16>
    %cst_14 = arith.constant dense<0.000000e+00> : vector<16x128xf32>
    %25 = tpu.matmul %23, %24, %cst_14 {dimension_numbers = #tpu.dot_dimension_numbers<[1], [0], [0], [1], [0, 0, 1, 1], [], []>} : vector<16x512xbf16>, vector<512x128xbf16>, vector<16x128xf32> -> vector<16x128xf32>
    %26 = arith.addf %22, %25 : vector<16x128xf32>
    %c0_15 = arith.constant 0 : index
    %c0_16 = arith.constant 0 : index
    %27 = vector.load %arg11[%c0_15, %c0_16] : memref<16x128xf32, #tpu.memory_space<vmem>>, vector<16x128xf32>
    tpu.vector_store %arg11[%c0_15, %c0_16], %26 {strides = array<i32>} : memref<16x128xf32, #tpu.memory_space<vmem>>, vector<16x128xf32>,
    %c0_i32_17 = arith.constant 0 : i32
    %28 = arith.cmpi eq, %arg1, %c0_i32_17 : i32
    %29 = arith.extui %28 : i1 to i32
    %c0_i32_18 = arith.constant 0 : i32
    %30 = arith.cmpi ne, %29, %c0_i32_18 : i32
    scf.if %30 {
      %c0_19 = arith.constant 0 : index
      %c0_20 = arith.constant 0 : index
      %31 = vector.load %arg11[%c0_19, %c0_20] : memref<16x128xf32, #tpu.memory_space<vmem>>, vector<16x128xf32>
      %c0_21 = arith.constant 0 : index
      %c0_22 = arith.constant 0 : index
      %32 = vector.load %arg8[%c0_21, %c0_22] : memref<1x128xf32, #tpu.memory_space<vmem>>, vector<1x128xf32>
      %33 = vector.broadcast %32 : vector<1x128xf32> to vector<16x128xf32>
      %34 = arith.addf %31, %33 : vector<16x128xf32>
      %c0_23 = arith.constant 0 : index
      %c0_24 = arith.constant 0 : index
      %35 = vector.load %arg2[%c0_23, %c0_24] : memref<16x128xf32, #tpu.memory_space<vmem>>, vector<16x128xf32>
      %36 = arith.addf %34, %35 : vector<16x128xf32>
      %c0_25 = arith.constant 0 : index
      %c0_26 = arith.constant 0 : index
      %37 = vector.load %arg9[%c0_25, %c0_26] : memref<16x128xf32, #tpu.memory_space<vmem>>, vector<16x128xf32>
      tpu.vector_store %arg9[%c0_25, %c0_26], %36 {strides = array<i32>} : memref<16x128xf32, #tpu.memory_space<vmem>>, vector<16x128xf32>,
    } else {
    }
    return
  }
  func.func @transform_0(%arg0: i32, %arg1: i32) -> (i32, i32) {
    %c0_i32 = arith.constant 0 : i32
    %c0_i32_0 = arith.constant 0 : i32
    return %arg0, %c0_i32 : i32, i32
  }
  func.func @transform_1(%arg0: i32, %arg1: i32) -> (i32, i32) {
    %c0_i32 = arith.constant 0 : i32
    %c0_i32_0 = arith.constant 0 : i32
    %c0_i32_1 = arith.constant 0 : i32
    return %c0_i32, %c0_i32_0 : i32, i32
  }
  func.func @transform_2(%arg0: i32, %arg1: i32) -> (i32, i32) {
    %c0_i32 = arith.constant 0 : i32
    %c0_i32_0 = arith.constant 0 : i32
    %c0_i32_1 = arith.constant 0 : i32
    return %c0_i32, %c0_i32_0 : i32, i32
  }
  func.func @transform_3(%arg0: i32, %arg1: i32) -> (i32, i32) {
    %c0_i32 = arith.constant 0 : i32
    %c0_i32_0 = arith.constant 0 : i32
    return %c0_i32, %arg1 : i32, i32
  }
  func.func @transform_4(%arg0: i32, %arg1: i32) -> (i32, i32) {
    %c0_i32 = arith.constant 0 : i32
    %c0_i32_0 = arith.constant 0 : i32
    return %c0_i32, %arg1 : i32, i32
  }
  func.func @transform_5(%arg0: i32, %arg1: i32) -> (i32, i32) {
    %c0_i32 = arith.constant 0 : i32
    %c0_i32_0 = arith.constant 0 : i32
    return %arg1, %c0_i32 : i32, i32
  }
  func.func @transform_6(%arg0: i32, %arg1: i32) -> (i32, i32) {
    %c0_i32 = arith.constant 0 : i32
    %c0_i32_0 = arith.constant 0 : i32
    %c0_i32_1 = arith.constant 0 : i32
    return %c0_i32, %c0_i32_0 : i32, i32
  }
  func.func @transform_7(%arg0: i32, %arg1: i32) -> (i32, i32) {
    %c0_i32 = arith.constant 0 : i32
    %c0_i32_0 = arith.constant 0 : i32
    return %arg0, %c0_i32 : i32, i32
  }
}

</mosaic_0001>

<llo_original>
// kernel: gpt_forward.11
$region0: #{gpt_forward.11}
  #allocation0 [shape = 'u32[]', space=smem, size = 0x4, offset = 0x4, fixed_abs, tag = 'smem constant byte address 0x4 - core index']
  #allocation1 [shape = 'u32[144,128]{1,0:T(1,128)}', space=vmem, size = 0x12000, scoped, tag = 'internal scratch']
  %s0 = inlined_call_operand.vmem [shape: bf16[16,128], index: 0, kind: input, shape index: {}]
  %s1 = inlined_call_operand.vmem [shape: bf16[128,128], index: 1, kind: input, shape index: {}]
  %s2 = inlined_call_operand.hbm [shape: f32[1,128], index: 2, kind: input, shape index: {}]
  %s3 = inlined_call_operand.vmem [shape: f32[16,128], index: 3, kind: input, shape index: {}]
  %s4 = inlined_call_operand.vmem [shape: f32[16,128], index: 4, kind: output, shape index: {}]
  %s5 = sld [smem:[#allocation0]]
  $region30: #{gpt_forward.11} parent=0
    _
  %s7 = ssub.s32 1, %s5
  %s8 = scalar_select 0, %s7, %s5
  $region1: #{gpt_forward.11} parent=0
    #allocation2 [shape = 'u8[512]{0}', space=vmem, size = 0x400, scoped, tag = 'input window, operand 2, single buffered']
    #allocation3 [shape = 's32[1]{0}', space=sflag, size = 0x4, scoped, tag = 'scoped memory for gpt_forward.11']
    %9 = vsyncpa [#allocation3], 0
    // Predicated region
    $region2: #{gpt_forward.11} parent=1 // pred_check
      _
    $region3: #{gpt_forward.11} parent=1 // pred_check_branch
      %11 = sbr.rel (0) target = $region5
    $region4: #{gpt_forward.11} parent=1 // pred_region
      _
    $region5: #{gpt_forward.11} parent=1 // pred_fallthru
      _
    // Predicated region
    $region6: #{gpt_forward.11} parent=1 // pred_check
      _
    $region7: #{gpt_forward.11} parent=1 // pred_check_branch
      %13 = sbr.rel (0) target = $region9
    $region8: #{gpt_forward.11} parent=1 // pred_region
      _
    $region9: #{gpt_forward.11} parent=1 // pred_fallthru
      _
    // Predicated region
    $region10: #{gpt_forward.11} parent=1 // pred_check
      _
    $region11: #{gpt_forward.11} parent=1 // pred_check_branch
      %15 = sbr.rel (0) target = $region13
    $region12: #{gpt_forward.11} parent=1 // pred_region
      %s17 = ssub.s32 16, 16
      %18 = vsyncadd [#allocation3], %s17
      %s20 = sshll.u32 [#allocation2], 4
      %s21 = int_to_ptr.vmem [resolvable:$true] %s20
      %23 = dma.hbm_to_vmem [thread:$0]  %s2, 16, %s21, [#allocation3]
    $region13: #{gpt_forward.11} parent=1 // pred_fallthru
      _
    // Predicated region
    $region14: #{gpt_forward.11} parent=1 // pred_check
      _
    $region15: #{gpt_forward.11} parent=1 // pred_check_branch
      %25 = sbr.rel (0) target = $region17
    $region16: #{gpt_forward.11} parent=1 // pred_region
      _
    $region17: #{gpt_forward.11} parent=1 // pred_fallthru
      _
    // Predicated region
    $region18: #{gpt_forward.11} parent=1 // pred_check
      _
    $region19: #{gpt_forward.11} parent=1 // pred_check_branch
      %27 = sbr.rel (0) target = $region21
    $region20: #{gpt_forward.11} parent=1 // pred_region
      %28 = dma.done [#allocation3], 16
    $region21: #{gpt_forward.11} parent=1 // pred_fallthru
      _
    %v30 = vld [vmem:[%s0] sm:$0xf]
    %v31 = vld [vmem:[%s0 + $0x4] sm:$0xf]
    %v32 = vld [vmem:[%s1] sm:$0xf]
    %v33 = vld [vmem:[%s1 + $0x4] sm:$0xf]
    %v34 = vld [vmem:[%s1 + $0x8] sm:$0xf]
    %v35 = vld [vmem:[%s1 + $0xc] sm:$0xf]
    %v36 = vld [vmem:[%s1 + $0x10] sm:$0xf]
    %v37 = vld [vmem:[%s1 + $0x14] sm:$0xf]
    %v38 = vld [vmem:[%s1 + $0x18] sm:$0xf]
    %v39 = vld [vmem:[%s1 + $0x1c] sm:$0xf]
    %v40 = vld [vmem:[%s1 + $0x20] sm:$0xf]
    %v41 = vld [vmem:[%s1 + $0x24] sm:$0xf]
    %v42 = vld [vmem:[%s1 + $0x28] sm:$0xf]
    %v43 = vld [vmem:[%s1 + $0x2c] sm:$0xf]
    %v44 = vld [vmem:[%s1 + $0x30] sm:$0xf]
    %v45 = vld [vmem:[%s1 + $0x34] sm:$0xf]
    %v46 = vld [vmem:[%s1 + $0x38] sm:$0xf]
    %v47 = vld [vmem:[%s1 + $0x3c] sm:$0xf]
    %v48 = vld [vmem:[#allocation2] sm:$0x1]
    %v50 = vlaneseq
    %v51 = vshrl.u32 %v50, 7
    %v52 = vsub.s32 0, %v51
    %v53 = vrot.slane %v48, %v52
    %v57 = vunpack.c.l.b16 %v30
    %v58 = vunpack.c.l.b16 %v31
    %v59 = vpack.c.b16 %v58, %v57
    %v77 = vunpack.c.l.b16 %v32
    %v78 = vunpack.c.l.b16 %v33
    %v79 = vunpack.c.l.b16 %v34
    %v80 = vunpack.c.l.b16 %v35
    %v81 = vunpack.c.l.b16 %v36
    %v82 = vunpack.c.l.b16 %v37
    %v83 = vunpack.c.l.b16 %v38
    %v84 = vunpack.c.l.b16 %v39
    %v85 = vunpack.c.l.b16 %v40
    %v86 = vunpack.c.l.b16 %v41
    %v87 = vunpack.c.l.b16 %v42
    %v88 = vunpack.c.l.b16 %v43
    %v89 = vunpack.c.l.b16 %v44
    %v90 = vunpack.c.l.b16 %v45
    %v91 = vunpack.c.l.b16 %v46
    %v92 = vunpack.c.l.b16 %v47
    %v93 = vpack.c.b16 %v78, %v77
    %v94 = vpack.c.b16 %v80, %v79
    %v95 = vpack.c.b16 %v82, %v81
    %v96 = vpack.c.b16 %v84, %v83
    %v97 = vpack.c.b16 %v86, %v85
    %v98 = vpack.c.b16 %v88, %v87
    %v99 = vpack.c.b16 %v90, %v89
    %v100 = vpack.c.b16 %v92, %v91
    %109 = vmatprep.subr.bf16.mxu0 0
    %110 = vmatpush1.bf16.msra.mxu0 %v93
    %111 = vmatprep.subr.bf16.mxu0 0
    %112 = vmatpush1.bf16.msra.mxu0 %v94
    %113 = vmatprep.subr.bf16.mxu0 0
    %114 = vmatpush1.bf16.msra.mxu0 %v95
    %115 = vmatprep.subr.bf16.mxu0 0
    %116 = vmatpush1.bf16.msra.mxu0 %v96
    %117 = vmatprep.subr.bf16.mxu0 0
    %118 = vmatpush1.bf16.msra.mxu0 %v97
    %119 = vmatprep.subr.bf16.mxu0 0
    %120 = vmatpush1.bf16.msra.mxu0 %v98
    %121 = vmatprep.subr.bf16.mxu0 0
    %122 = vmatpush1.bf16.msra.mxu0 %v99
    %123 = vmatprep.subr.bf16.mxu0 0
    %124 = vmatpush1.bf16.msra.mxu0 %v100
    %125 = vmatprep.subr.bf16.mxu0 0
    %126 = vmatpush1.bf16.msra.mxu0 0
    %127 = vmatprep.subr.bf16.mxu0 0
    %128 = vmatpush1.bf16.msra.mxu0 0
    %129 = vmatprep.subr.bf16.mxu0 0
    %130 = vmatpush1.bf16.msra.mxu0 0
    %131 = vmatprep.subr.bf16.mxu0 0
    %132 = vmatpush1.bf16.msra.mxu0 0
    %133 = vmatprep.subr.bf16.mxu0 0
    %134 = vmatpush1.bf16.msra.mxu0 0
    %135 = vmatprep.subr.bf16.mxu0 0
    %136 = vmatpush1.bf16.msra.mxu0 0
    %137 = vmatprep.subr.bf16.mxu0 0
    %138 = vmatpush1.bf16.msra.mxu0 0
    %139 = vmatprep.subr.bf16.mxu0 0
    %140 = vmatpush1.bf16.msra.mxu0 0
    %141 = vmatprep.mubr.bf16.mxu0 0
    %142 = vmatmul.mubr.bf16.gmra.mrb[0].mxu0 %v59
    %v143 = vpop.f32.mrb[0].mxu0
    %v144 = vadd.f32 %v53, %v143
    %v145 = vpop.f32.mrb[0].mxu0
    %v146 = vpop.f32.mrb[0].mxu0
    %v147 = vadd.f32 %v53, %v146
    %v148 = vpop.f32.mrb[0].mxu0
    %149 = vdwg.mxu0
    %v150 = vld [vmem:[%s3] sm:$0xff]
    %v151 = vld [vmem:[%s3 + $0x8] sm:$0xff]
    %v152 = vadd.f32 %v144, %v150
    %v153 = vadd.f32 %v147, %v151
    %154 = vst [vmem:[%s4] sm:$0xff] %v152
    %155 = vst [vmem:[%s4 + $0x8] sm:$0xff] %v153
    // Predicated region
    $region22: #{gpt_forward.11} parent=1 // pred_check
      _
    $region23: #{gpt_forward.11} parent=1 // pred_check_branch
      %157 = sbr.rel (0) target = $region25
    $region24: #{gpt_forward.11} parent=1 // pred_region
      _
    $region25: #{gpt_forward.11} parent=1 // pred_fallthru
      _
    // Predicated region
    $region26: #{gpt_forward.11} parent=1 // pred_check
      _
    $region27: #{gpt_forward.11} parent=1 // pred_check_branch
      %159 = sbr.rel (0) target = $region29
    $region28: #{gpt_forward.11} parent=1 // pred_region
      _
    $region29: #{gpt_forward.11} parent=1 // pred_fallthru
      _
    %160 = vsyncpa [#allocation3], 1

// kernel: gpt_forward.9
$region0: #{gpt_forward.9}
  #allocation0 [shape = 'u32[]', space=smem, size = 0x4, offset = 0x4, fixed_abs, tag = 'smem constant byte address 0x4 - core index']
  #allocation1 [shape = 'u32[144,128]{1,0:T(1,128)}', space=vmem, size = 0x12000, scoped, tag = 'internal scratch']
  %s0 = inlined_call_operand.vmem [shape: f32[16,128], index: 0, kind: input, shape index: {}]
  %s1 = inlined_call_operand.hbm [shape: f32[1,128], index: 1, kind: input, shape index: {}]
  %s2 = inlined_call_operand.hbm [shape: f32[1,128], index: 2, kind: input, shape index: {}]
  %s3 = inlined_call_operand.vmem [shape: bf16[128,384], index: 3, kind: input, shape index: {}]
  %s4 = inlined_call_operand.vmem [shape: f32[1,384], index: 4, kind: input, shape index: {}]
  %s5 = inlined_call_operand.vmem [shape: bf16[16,384], index: 5, kind: output, shape index: {}]
  %s6 = sld [smem:[#allocation0]]
  $region38: #{gpt_forward.9} parent=0
    _
  %s8 = ssub.s32 1, %s6
  %s9 = scalar_select 0, %s8, %s6
  $region1: #{gpt_forward.9} parent=0
    #allocation2 [shape = 'u8[512]{0}', space=vmem, size = 0x400, scoped, tag = 'input window, operand 1, single buffered']
    #allocation3 [shape = 's32[1]{0}', space=sflag, size = 0x4, scoped, tag = 'scoped memory for gpt_forward.9']
    #allocation4 [shape = 'u8[512]{0}', space=vmem, size = 0x400, scoped, tag = 'input window, operand 2, single buffered']
    #allocation5 [shape = 's32[1]{0}', space=sflag, size = 0x4, scoped, tag = 'scoped memory for gpt_forward.9']
    %10 = vsyncpa [#allocation3], 0
    %11 = vsyncpa [#allocation5], 0
    // Predicated region
    $region2: #{gpt_forward.9} parent=1 // pred_check
      _
    $region3: #{gpt_forward.9} parent=1 // pred_check_branch
      %13 = sbr.rel (0) target = $region5
    $region4: #{gpt_forward.9} parent=1 // pred_region
      _
    $region5: #{gpt_forward.9} parent=1 // pred_fallthru
      _
    // Predicated region
    $region6: #{gpt_forward.9} parent=1 // pred_check
      _
    $region7: #{gpt_forward.9} parent=1 // pred_check_branch
      %15 = sbr.rel (0) target = $region9
    $region8: #{gpt_forward.9} parent=1 // pred_region
      %s17 = ssub.s32 16, 16
      %18 = vsyncadd [#allocation3], %s17
      %s20 = sshll.u32 [#allocation2], 4
      %s21 = int_to_ptr.vmem [resolvable:$true] %s20
      %23 = dma.hbm_to_vmem [thread:$0]  %s1, 16, %s21, [#allocation3]
    $region9: #{gpt_forward.9} parent=1 // pred_fallthru
      _
    // Predicated region
    $region10: #{gpt_forward.9} parent=1 // pred_check
      _
    $region11: #{gpt_forward.9} parent=1 // pred_check_branch
      %25 = sbr.rel (0) target = $region13
    $region12: #{gpt_forward.9} parent=1 // pred_region
      %s27 = ssub.s32 16, 16
      %28 = vsyncadd [#allocation5], %s27
      %s30 = sshll.u32 [#allocation4], 4
      %s31 = int_to_ptr.vmem [resolvable:$true] %s30
      %33 = dma.hbm_to_vmem [thread:$0]  %s2, 16, %s31, [#allocation5]
    $region13: #{gpt_forward.9} parent=1 // pred_fallthru
      _
    // Predicated region
    $region14: #{gpt_forward.9} parent=1 // pred_check
      _
    $region15: #{gpt_forward.9} parent=1 // pred_check_branch
      %35 = sbr.rel (0) target = $region17
    $region16: #{gpt_forward.9} parent=1 // pred_region
      _
    $region17: #{gpt_forward.9} parent=1 // pred_fallthru
      _
    // Predicated region
    $region18: #{gpt_forward.9} parent=1 // pred_check
      _
    $region19: #{gpt_forward.9} parent=1 // pred_check_branch
      %37 = sbr.rel (0) target = $region21
    $region20: #{gpt_forward.9} parent=1 // pred_region
      _
    $region21: #{gpt_forward.9} parent=1 // pred_fallthru
      _
    // Predicated region
    $region22: #{gpt_forward.9} parent=1 // pred_check
      _
    $region23: #{gpt_forward.9} parent=1 // pred_check_branch
      %39 = sbr.rel (0) target = $region25
    $region24: #{gpt_forward.9} parent=1 // pred_region
      %40 = dma.done [#allocation3], 16
    $region25: #{gpt_forward.9} parent=1 // pred_fallthru
      _
    // Predicated region
    $region26: #{gpt_forward.9} parent=1 // pred_check
      _
    $region27: #{gpt_forward.9} parent=1 // pred_check_branch
      %42 = sbr.rel (0) target = $region29
    $region28: #{gpt_forward.9} parent=1 // pred_region
      %43 = dma.done [#allocation5], 16
    $region29: #{gpt_forward.9} parent=1 // pred_fallthru
      _
    %v45 = vld [vmem:[%s0] sm:$0xff]
    %v46 = vld [vmem:[%s0 + $0x8] sm:$0xff]
    %47 = vadd.xlane.f32.xlu0 %v45
    %v48 = vpop.xlane.xlu0 %47
    %49 = vadd.xlane.f32.xlu0 %v46
    %v50 = vpop.xlane.xlu0 %49
    %v51 = vrcp.pop 128.0
    %v52 = vmul.f32 %v48, %v51
    %v53 = vmul.f32 %v50, %v51
    %v54 = vsub.f32 %v45, %v52
    %v55 = vsub.f32 %v46, %v53
    %v56 = vmul.f32 %v54, %v54
    %v57 = vmul.f32 %v55, %v55
    %58 = vadd.xlane.f32.xlu0 %v56
    %v59 = vpop.xlane.xlu0 %58
    %60 = vadd.xlane.f32.xlu0 %v57
    %v61 = vpop.xlane.xlu0 %60
    %v62 = vmul.f32 %v59, %v51
    %v63 = vmul.f32 %v61, %v51
    %v64 = vadd.f32 %v62, 1e-05
    %v65 = vadd.f32 %v63, 1e-05
    %v66 = vrsqrt.pop %v64
    %v67 = vrsqrt.pop %v65
    %v68 = vmul.f32 %v54, %v66
    %v69 = vmul.f32 %v55, %v67
    %v70 = vld [vmem:[#allocation2] sm:$0x1]
    %v72 = vlaneseq
    %v73 = vshrl.u32 %v72, 7
    %v74 = vsub.s32 0, %v73
    %v75 = vrot.slane %v70, %v74
    %v77 = vmul.f32 %v68, %v75
    %v78 = vmul.f32 %v69, %v75
    %v79 = vld [vmem:[#allocation4] sm:$0x1]
    %v81 = vlaneseq
    %v82 = vshrl.u32 %v81, 7
    %v83 = vsub.s32 0, %v82
    %v84 = vrot.slane %v79, %v83
    %v86 = vadd.f32 %v77, %v84
    %v87 = vadd.f32 %v78, %v84
    %v88 = vpack.c.bf16 %v87, %v86
    %v89 = vld [vmem:[%s3] sm:$0xff]
    %v90 = vld [vmem:[%s3 + $0x8] sm:$0xf]
    %v91 = vld [vmem:[%s3 + $0xc] sm:$0xff]
    %v92 = vld [vmem:[%s3 + $0x14] sm:$0xf]
    %v93 = vld [vmem:[%s3 + $0x18] sm:$0xff]
    %v94 = vld [vmem:[%s3 + $0x20] sm:$0xf]
    %v95 = vld [vmem:[%s3 + $0x24] sm:$0xff]
    %v96 = vld [vmem:[%s3 + $0x2c] sm:$0xf]
    %v97 = vld [vmem:[%s3 + $0x30] sm:$0xff]
    %v98 = vld [vmem:[%s3 + $0x38] sm:$0xf]
    %v99 = vld [vmem:[%s3 + $0x3c] sm:$0xff]
    %v100 = vld [vmem:[%s3 + $0x44] sm:$0xf]
    %v101 = vld [vmem:[%s3 + $0x48] sm:$0xff]
    %v102 = vld [vmem:[%s3 + $0x50] sm:$0xf]
    %v103 = vld [vmem:[%s3 + $0x54] sm:$0xff]
    %v104 = vld [vmem:[%s3 + $0x5c] sm:$0xf]
    %v105 = vld [vmem:[%s3 + $0x60] sm:$0xff]
    %v106 = vld [vmem:[%s3 + $0x68] sm:$0xf]
    %v107 = vld [vmem:[%s3 + $0x6c] sm:$0xff]
    %v108 = vld [vmem:[%s3 + $0x74] sm:$0xf]
    %v109 = vld [vmem:[%s3 + $0x78] sm:$0xff]
    %v110 = vld [vmem:[%s3 + $0x80] sm:$0xf]
    %v111 = vld [vmem:[%s3 + $0x84] sm:$0xff]
    %v112 = vld [vmem:[%s3 + $0x8c] sm:$0xf]
    %v113 = vld [vmem:[%s3 + $0x90] sm:$0xff]
    %v114 = vld [vmem:[%s3 + $0x98] sm:$0xf]
    %v115 = vld [vmem:[%s3 + $0x9c] sm:$0xff]
    %v116 = vld [vmem:[%s3 + $0xa4] sm:$0xf]
    %v117 = vld [vmem:[%s3 + $0xa8] sm:$0xff]
    %v118 = vld [vmem:[%s3 + $0xb0] sm:$0xf]
    %v119 = vld [vmem:[%s3 + $0xb4] sm:$0xff]
    %v120 = vld [vmem:[%s3 + $0xbc] sm:$0xf]
    %v121 = vld [vmem:[%s4] sm:$0x7]
    %v123 = vlaneseq
    %v124 = vshrl.u32 %v123, 7
    %v125 = vsub.s32 0, %v124
    %v126 = vrot.slane %v121, %v125
    %v127 = vlaneseq
    %v128 = vshrl.u32 %v127, 7
    %v129 = vsub.s32 1, %v128
    %v130 = vrot.slane %v121, %v129
    %v131 = vlaneseq
    %v132 = vshrl.u32 %v131, 7
    %v133 = vsub.s32 2, %v132
    %v134 = vrot.slane %v121, %v133
    %v170 = vunpack.c.l.b16 %v89
    %v171 = vunpack.c.h.b16 %v89
    %v172 = vunpack.c.l.b16 %v90
    %v173 = vunpack.c.l.b16 %v91
    %v174 = vunpack.c.h.b16 %v91
    %v175 = vunpack.c.l.b16 %v92
    %v176 = vunpack.c.l.b16 %v93
    %v177 = vunpack.c.h.b16 %v93
    %v178 = vunpack.c.l.b16 %v94
    %v179 = vunpack.c.l.b16 %v95
    %v180 = vunpack.c.h.b16 %v95
    %v181 = vunpack.c.l.b16 %v96
    %v182 = vunpack.c.l.b16 %v97
    %v183 = vunpack.c.h.b16 %v97
    %v184 = vunpack.c.l.b16 %v98
    %v185 = vunpack.c.l.b16 %v99
    %v186 = vunpack.c.h.b16 %v99
    %v187 = vunpack.c.l.b16 %v100
    %v188 = vunpack.c.l.b16 %v101
    %v189 = vunpack.c.h.b16 %v101
    %v190 = vunpack.c.l.b16 %v102
    %v191 = vunpack.c.l.b16 %v103
    %v192 = vunpack.c.h.b16 %v103
    %v193 = vunpack.c.l.b16 %v104
    %v194 = vunpack.c.l.b16 %v105
    %v195 = vunpack.c.h.b16 %v105
    %v196 = vunpack.c.l.b16 %v106
    %v197 = vunpack.c.l.b16 %v107
    %v198 = vunpack.c.h.b16 %v107
    %v199 = vunpack.c.l.b16 %v108
    %v200 = vunpack.c.l.b16 %v109
    %v201 = vunpack.c.h.b16 %v109
    %v202 = vunpack.c.l.b16 %v110
    %v203 = vunpack.c.l.b16 %v111
    %v204 = vunpack.c.h.b16 %v111
    %v205 = vunpack.c.l.b16 %v112
    %v206 = vunpack.c.l.b16 %v113
    %v207 = vunpack.c.h.b16 %v113
    %v208 = vunpack.c.l.b16 %v114
    %v209 = vunpack.c.l.b16 %v115
    %v210 = vunpack.c.h.b16 %v115
    %v211 = vunpack.c.l.b16 %v116
    %v212 = vunpack.c.l.b16 %v117
    %v213 = vunpack.c.h.b16 %v117
    %v214 = vunpack.c.l.b16 %v118
    %v215 = vunpack.c.l.b16 %v119
    %v216 = vunpack.c.h.b16 %v119
    %v217 = vunpack.c.l.b16 %v120
    %v218 = vpack.c.b16 %v173, %v170
    %v219 = vpack.c.b16 %v174, %v171
    %v220 = vpack.c.b16 %v175, %v172
    %v221 = vpack.c.b16 %v179, %v176
    %v222 = vpack.c.b16 %v180, %v177
    %v223 = vpack.c.b16 %v181, %v178
    %v224 = vpack.c.b16 %v185, %v182
    %v225 = vpack.c.b16 %v186, %v183
    %v226 = vpack.c.b16 %v187, %v184
    %v227 = vpack.c.b16 %v191, %v188
    %v228 = vpack.c.b16 %v192, %v189
    %v229 = vpack.c.b16 %v193, %v190
    %v230 = vpack.c.b16 %v197, %v194
    %v231 = vpack.c.b16 %v198, %v195
    %v232 = vpack.c.b16 %v199, %v196
    %v233 = vpack.c.b16 %v203, %v200
    %v234 = vpack.c.b16 %v204, %v201
    %v235 = vpack.c.b16 %v205, %v202
    %v236 = vpack.c.b16 %v209, %v206
    %v237 = vpack.c.b16 %v210, %v207
    %v238 = vpack.c.b16 %v211, %v208
    %v239 = vpack.c.b16 %v215, %v212
    %v240 = vpack.c.b16 %v216, %v213
    %v241 = vpack.c.b16 %v217, %v214
    %266 = vmatprep.subr.bf16.mxu0 %v219
    %267 = vmatpush1.bf16.msra.mxu0 %v218
    %268 = vmatprep.subr.bf16.mxu0 %v222
    %269 = vmatpush1.bf16.msra.mxu0 %v221
    %270 = vmatprep.subr.bf16.mxu0 %v225
    %271 = vmatpush1.bf16.msra.mxu0 %v224
    %272 = vmatprep.subr.bf16.mxu0 %v228
    %273 = vmatpush1.bf16.msra.mxu0 %v227
    %274 = vmatprep.subr.bf16.mxu0 %v231
    %275 = vmatpush1.bf16.msra.mxu0 %v230
    %276 = vmatprep.subr.bf16.mxu0 %v234
    %277 = vmatpush1.bf16.msra.mxu0 %v233
    %278 = vmatprep.subr.bf16.mxu0 %v237
    %279 = vmatpush1.bf16.msra.mxu0 %v236
    %280 = vmatprep.subr.bf16.mxu0 %v240
    %281 = vmatpush1.bf16.msra.mxu0 %v239
    %282 = vmatprep.subr.bf16.mxu0 0
    %283 = vmatpush1.bf16.msra.mxu0 0
    %284 = vmatprep.subr.bf16.mxu0 0
    %285 = vmatpush1.bf16.msra.mxu0 0
    %286 = vmatprep.subr.bf16.mxu0 0
    %287 = vmatpush1.bf16.msra.mxu0 0
    %288 = vmatprep.subr.bf16.mxu0 0
    %289 = vmatpush1.bf16.msra.mxu0 0
    %290 = vmatprep.subr.bf16.mxu0 0
    %291 = vmatpush1.bf16.msra.mxu0 0
    %292 = vmatprep.subr.bf16.mxu0 0
    %293 = vmatpush1.bf16.msra.mxu0 0
    %294 = vmatprep.subr.bf16.mxu0 0
    %295 = vmatpush1.bf16.msra.mxu0 0
    %296 = vmatprep.subr.bf16.mxu0 0
    %297 = vmatpush1.bf16.msra.mxu0 0
    %298 = vmatprep.mubr.bf16.mxu0 0
    %299 = vmatmul.mubr.bf16.gmra.mrb[0].mxu0 %v88
    %v300 = vpop.f32.mrb[0].mxu0
    %v301 = vadd.f32 %v126, %v300
    %v302 = vpop.f32.mrb[0].mxu0
    %v303 = vadd.f32 %v130, %v302
    %v304 = vpop.f32.mrb[0].mxu0
    %v305 = vadd.f32 %v126, %v304
    %v306 = vpop.f32.mrb[0].mxu0
    %v307 = vadd.f32 %v130, %v306
    %308 = vdwg.mxu0
    %309 = vmatprep.subr.bf16.mxu0 0
    %310 = vmatpush1.bf16.msra.mxu0 %v220
    %311 = vmatprep.subr.bf16.mxu0 0
    %312 = vmatpush1.bf16.msra.mxu0 %v223
    %313 = vmatprep.subr.bf16.mxu0 0
    %314 = vmatpush1.bf16.msra.mxu0 %v226
    %315 = vmatprep.subr.bf16.mxu0 0
    %316 = vmatpush1.bf16.msra.mxu0 %v229
    %317 = vmatprep.subr.bf16.mxu0 0
    %318 = vmatpush1.bf16.msra.mxu0 %v232
    %319 = vmatprep.subr.bf16.mxu0 0
    %320 = vmatpush1.bf16.msra.mxu0 %v235
    %321 = vmatprep.subr.bf16.mxu0 0
    %322 = vmatpush1.bf16.msra.mxu0 %v238
    %323 = vmatprep.subr.bf16.mxu0 0
    %324 = vmatpush1.bf16.msra.mxu0 %v241
    %325 = vmatprep.subr.bf16.mxu0 0
    %326 = vmatpush1.bf16.msra.mxu0 0
    %327 = vmatprep.subr.bf16.mxu0 0
    %328 = vmatpush1.bf16.msra.mxu0 0
    %329 = vmatprep.subr.bf16.mxu0 0
    %330 = vmatpush1.bf16.msra.mxu0 0
    %331 = vmatprep.subr.bf16.mxu0 0
    %332 = vmatpush1.bf16.msra.mxu0 0
    %333 = vmatprep.subr.bf16.mxu0 0
    %334 = vmatpush1.bf16.msra.mxu0 0
    %335 = vmatprep.subr.bf16.mxu0 0
    %336 = vmatpush1.bf16.msra.mxu0 0
    %337 = vmatprep.subr.bf16.mxu0 0
    %338 = vmatpush1.bf16.msra.mxu0 0
    %339 = vmatprep.subr.bf16.mxu0 0
    %340 = vmatpush1.bf16.msra.mxu0 0
    %341 = vmatprep.mubr.bf16.mxu0 0
    %342 = vmatmul.mubr.bf16.gmra.mrb[0].mxu0 %v88
    %v343 = vpop.f32.mrb[0].mxu0
    %v344 = vadd.f32 %v134, %v343
    %v345 = vpop.f32.mrb[0].mxu0
    %v346 = vpop.f32.mrb[0].mxu0
    %v347 = vadd.f32 %v134, %v346
    %v348 = vpop.f32.mrb[0].mxu0
    %349 = vdwg.mxu0
    %v350 = vpack.c.bf16 %v305, %v301
    %v351 = vpack.c.bf16 %v307, %v303
    %v352 = vpack.c.bf16 %v347, %v344
    %v356 = vunpack.c.l.b16 %v350
    %v357 = vunpack.c.l.b16 %v351
    %v358 = vunpack.c.l.b16 %v352
    %v359 = vunpack.c.h.b16 %v350
    %v360 = vunpack.c.h.b16 %v351
    %v361 = vunpack.c.h.b16 %v352
    %v362 = vpack.c.b16 %v357, %v356
    %v363 = vpack.c.b16 %v358, %v358
    %v364 = vpack.c.b16 %v360, %v359
    %v365 = vpack.c.b16 %v361, %v361
    %370 = vst [vmem:[%s5] sm:$0xff] %v362
    %371 = vst [vmem:[%s5 + $0x8] sm:$0xf] %v363
    %372 = vst [vmem:[%s5 + $0xc] sm:$0xff] %v364
    %373 = vst [vmem:[%s5 + $0x14] sm:$0xf] %v365
    // Predicated region
    $region30: #{gpt_forward.9} parent=1 // pred_check
      _
    $region31: #{gpt_forward.9} parent=1 // pred_check_branch
      %375 = sbr.rel (0) target = $region33
    $region32: #{gpt_forward.9} parent=1 // pred_region
      _
    $region33: #{gpt_forward.9} parent=1 // pred_fallthru
      _
    // Predicated region
    $region34: #{gpt_forward.9} parent=1 // pred_check
      _
    $region35: #{gpt_forward.9} parent=1 // pred_check_branch
      %377 = sbr.rel (0) target = $region37
    $region36: #{gpt_forward.9} parent=1 // pred_region
      _
    $region37: #{gpt_forward.9} parent=1 // pred_fallthru
      _
    %378 = vsyncpa [#allocation3], 1
    %379 = vsyncpa [#allocation5], 1

// kernel: gpt_forward.10
$region0: #{gpt_forward.10}
  #allocation0 [shape = 'u32[]', space=smem, size = 0x4, offset = 0x4, fixed_abs, tag = 'smem constant byte address 0x4 - core index']
  #allocation1 [shape = 'u32[144,128]{1,0:T(1,128)}', space=vmem, size = 0x12000, scoped, tag = 'internal scratch']
  #allocation2 [shape = 'f32[4,8,1]{2,1,0:T(8,128)}', space=vmem, size = 0x4000, scoped, tag = 'scratch operand']
  #allocation3 [shape = 'f32[4,8,1]{2,1,0:T(8,128)}', space=vmem, size = 0x4000, scoped, tag = 'scratch operand']
  #allocation4 [shape = 'f32[4,8,32]{2,1,0:T(8,128)}', space=vmem, size = 0x4000, scoped, tag = 'scratch operand']
  %s0 = inlined_call_operand.vmem [shape: bf16[2,8,384], index: 0, kind: input, shape index: {}, may-alias: {0,1,2}]
  %s1 = inlined_call_operand.vmem [shape: bf16[2,8,384], index: 1, kind: input, shape index: {}, may-alias: {0,1,2}]
  %s2 = inlined_call_operand.vmem [shape: bf16[2,8,384], index: 2, kind: input, shape index: {}, may-alias: {0,1,2}]
  %s3 = inlined_call_operand.vmem [shape: bf16[2,8,128], index: 3, kind: output, shape index: {}]
  %s4 = sld [smem:[#allocation0]]
  $region57: #{gpt_forward.10} parent=0
    _
  %s6 = ssub.s32 1, %s4
  %s7 = scalar_select 0, %s6, %s4
  loop: start=0, step=1, limit=4
  $region2: #{gpt_forward.10} parent=0 // loop_pre_header
    _
  $region3: #{gpt_forward.10} parent=0 // loop_header
    %s9 = sphi 0, %s13
    %p10 = scmp.ge.s32.totalorder %s9, 4
    %s16 = sphi 0, %s35
    %s17 = sphi 0, %s31
    %s18 = sphi 0, %s27
    %s19 = sphi 0, %s16
    %s20 = sphi 0, %s17
    %s21 = sphi 0, %s18
    %s22 = sphi 0, %s19
    %s23 = sphi 0, %s20
    %s24 = sphi 0, %s21
    %s40 = sphi 0, %s42
    %s43 = sphi 0, %s40
    %s44 = sphi 0, %s43
    %s60 = sphi 0, %s44
    %s68 = sphi 0, %s70
    %s71 = sphi 0, %s68
    %s72 = sphi 0, %s71
    %s88 = sphi 0, %s72
    %s96 = sphi 0, %s98
    %s99 = sphi 0, %s96
    %s100 = sphi 0, %s99
    %s116 = sphi 0, %s100
    %s124 = sphi 0, %s126
    %s127 = sphi 0, %s124
    %s128 = sphi 0, %s127
    %s144 = sphi 0, %s128
  $region4: #{gpt_forward.10} parent=0 // loop_header_branch
    %12 = sbr.rel (%p10) target = $region8
  $region5: #{gpt_forward.10} parent=0 // loop_body
    %s14 = ssub.s32 %s9, 1
    %s15 = ssub.s32 %s9, 2
    %s25 = sadd.s32 1, %s18
    %p26 = scmp.ge.s32.totalorder %s25, 1
    %s27 = scalar_select %p26, 0, %s25
    %s28 = sadd.s32 1, %s17
    %s29 = scalar_select %p26, %s28, %s17
    %p30 = scmp.ge.s32.totalorder %s29, 1
    %s31 = scalar_select %p30, 0, %s29
    %s32 = sadd.s32 1, %s16
    %s33 = scalar_select %p30, %s32, %s16
    %p34 = scmp.ge.s32.totalorder %s33, 2
    %s35 = scalar_select %p34, 0, %s33
    %s36 = ssub.s32 %s16, %s35
    %s37 = ssub.s32 %s17, %s31
    %s38 = sor.u32 %s36, %s37
    %p39 = scmp.eq.s32.totalorder %s38, 0
    %s41 = sadd.s32 %s40, 1
    %s42 = scalar_select %p39, %s40, %s41
    %p45 = pneg %p39
    %p46 = scmp.eq.s32.totalorder %s9, 1
    %p47 = por %p45, %p46
    %p48 = scmp.ne.s32.totalorder %s40, %s43
    %p49 = scmp.eq.s32.totalorder %s9, 0
    %p50 = por %p48, %p49
    %p51 = scmp.ne.s32.totalorder %s40, %s43
    %p52 = scmp.eq.s32.totalorder %s14, 1
    %p53 = por %p51, %p52
    %p54 = scmp.ne.s32.totalorder %s43, %s44
    %p55 = scmp.eq.s32.totalorder %s14, 0
    %p56 = por %p54, %p55
    %p57 = scmp.ne.s32.totalorder %s43, %s44
    %p58 = scmp.eq.s32.totalorder %s15, 1
    %p59 = por %p57, %p58
    %p61 = scmp.ne.s32.totalorder %s44, %s60
    %p62 = scmp.eq.s32.totalorder %s15, 0
    %p63 = por %p61, %p62
    %s64 = ssub.s32 %s16, %s35
    %s65 = ssub.s32 %s18, %s27
    %s66 = sor.u32 %s64, %s65
    %p67 = scmp.eq.s32.totalorder %s66, 0
    %s69 = sadd.s32 %s68, 1
    %s70 = scalar_select %p67, %s68, %s69
    %p73 = pneg %p67
    %p74 = scmp.eq.s32.totalorder %s9, 1
    %p75 = por %p73, %p74
    %p76 = scmp.ne.s32.totalorder %s68, %s71
    %p77 = scmp.eq.s32.totalorder %s9, 0
    %p78 = por %p76, %p77
    %p79 = scmp.ne.s32.totalorder %s68, %s71
    %p80 = scmp.eq.s32.totalorder %s14, 1
    %p81 = por %p79, %p80
    %p82 = scmp.ne.s32.totalorder %s71, %s72
    %p83 = scmp.eq.s32.totalorder %s14, 0
    %p84 = por %p82, %p83
    %p85 = scmp.ne.s32.totalorder %s71, %s72
    %p86 = scmp.eq.s32.totalorder %s15, 1
    %p87 = por %p85, %p86
    %p89 = scmp.ne.s32.totalorder %s72, %s88
    %p90 = scmp.eq.s32.totalorder %s15, 0
    %p91 = por %p89, %p90
    %s92 = ssub.s32 %s16, %s35
    %s93 = ssub.s32 %s18, %s27
    %s94 = sor.u32 %s92, %s93
    %p95 = scmp.eq.s32.totalorder %s94, 0
    %s97 = sadd.s32 %s96, 1
    %s98 = scalar_select %p95, %s96, %s97
    %p101 = pneg %p95
    %p102 = scmp.eq.s32.totalorder %s9, 1
    %p103 = por %p101, %p102
    %p104 = scmp.ne.s32.totalorder %s96, %s99
    %p105 = scmp.eq.s32.totalorder %s9, 0
    %p106 = por %p104, %p105
    %p107 = scmp.ne.s32.totalorder %s96, %s99
    %p108 = scmp.eq.s32.totalorder %s14, 1
    %p109 = por %p107, %p108
    %p110 = scmp.ne.s32.totalorder %s99, %s100
    %p111 = scmp.eq.s32.totalorder %s14, 0
    %p112 = por %p110, %p111
    %p113 = scmp.ne.s32.totalorder %s99, %s100
    %p114 = scmp.eq.s32.totalorder %s15, 1
    %p115 = por %p113, %p114
    %p117 = scmp.ne.s32.totalorder %s100, %s116
    %p118 = scmp.eq.s32.totalorder %s15, 0
    %p119 = por %p117, %p118
    %s120 = ssub.s32 %s16, %s35
    %s121 = ssub.s32 %s17, %s31
    %s122 = sor.u32 %s120, %s121
    %p123 = scmp.eq.s32.totalorder %s122, 0
    %s125 = sadd.s32 %s124, 1
    %s126 = scalar_select %p123, %s124, %s125
    %p129 = pneg %p123
    %p130 = scmp.eq.s32.totalorder %s9, 1
    %p131 = por %p129, %p130
    %p132 = scmp.ne.s32.totalorder %s124, %s127
    %p133 = scmp.eq.s32.totalorder %s9, 0
    %p134 = por %p132, %p133
    %p135 = scmp.ne.s32.totalorder %s124, %s127
    %p136 = scmp.eq.s32.totalorder %s14, 1
    %p137 = por %p135, %p136
    %p138 = scmp.ne.s32.totalorder %s127, %s128
    %p139 = scmp.eq.s32.totalorder %s14, 0
    %p140 = por %p138, %p139
    %p141 = scmp.ne.s32.totalorder %s127, %s128
    %p142 = scmp.eq.s32.totalorder %s15, 1
    %p143 = por %p141, %p142
    %p145 = scmp.ne.s32.totalorder %s128, %s144
    %p146 = scmp.eq.s32.totalorder %s15, 0
    %p147 = por %p145, %p146
    %p148 = scmp.le.s32.totalorder 1, %s9
    %p149 = scmp.lt.s32.totalorder %s9, 3
    %p150 = pnand %p148, %p149
    %p151 = pneg %p150
    // Predicated region
    $region9: #{gpt_forward.10} parent=5 // pred_check
      _
    $region10: #{gpt_forward.10} parent=5 // pred_check_branch
      %153 = sbr.rel (%p150) target = $region12
    $region11: #{gpt_forward.10} parent=5 // pred_region
      %s154 = ssub.s32 %s9, 1
    $region12: #{gpt_forward.10} parent=5 // pred_fallthru
      _
    %p155 = scmp.lt.s32.totalorder %s9, 2
    // Predicated region
    $region13: #{gpt_forward.10} parent=5 // pred_check
      %p156 = pneg %p155
    $region14: #{gpt_forward.10} parent=5 // pred_check_branch
      %158 = sbr.rel (%p156) target = $region16
    $region15: #{gpt_forward.10} parent=5 // pred_region
      // Predicated region
      $region17: #{gpt_forward.10} parent=15 // pred_check
        %p159 = pneg %p50
      $region18: #{gpt_forward.10} parent=15 // pred_check_branch
        %161 = sbr.rel (%p159) target = $region20
      $region19: #{gpt_forward.10} parent=15 // pred_region
        %p162 = scmp.lt.s32.totalorder %s16, 1
        %s163 = scalar_select %p162, %s16, 1
        %p164 = scmp.lt.s32.totalorder %s17, 0
        %s165 = scalar_select %p164, %s17, 0
        %s166 = smul.addr %s165, 3
        %s167 = smul.addr %s163, 3
        %s168 = sadd.s32 %s166, %s167
        %s169 = smul.addr %s168, 4
        %s170 = scalar_lea.vmem %s0, %s169
      $region20: #{gpt_forward.10} parent=15 // pred_fallthru
        _
      // Predicated region
      $region21: #{gpt_forward.10} parent=15 // pred_check
        %p171 = pneg %p78
      $region22: #{gpt_forward.10} parent=15 // pred_check_branch
        %173 = sbr.rel (%p171) target = $region24
      $region23: #{gpt_forward.10} parent=15 // pred_region
        %p174 = scmp.lt.s32.totalorder %s16, 1
        %s175 = scalar_select %p174, %s16, 1
        %p176 = scmp.lt.s32.totalorder %s18, 0
        %s177 = scalar_select %p176, %s18, 0
        %s178 = smul.addr %s177, 3
        %s179 = sadd.s32 1, %s178
        %s180 = smul.addr %s175, 3
        %s181 = sadd.s32 %s179, %s180
        %s182 = smul.addr %s181, 4
        %s183 = scalar_lea.vmem %s1, %s182
      $region24: #{gpt_forward.10} parent=15 // pred_fallthru
        _
      // Predicated region
      $region25: #{gpt_forward.10} parent=15 // pred_check
        %p184 = pneg %p106
      $region26: #{gpt_forward.10} parent=15 // pred_check_branch
        %186 = sbr.rel (%p184) target = $region28
      $region27: #{gpt_forward.10} parent=15 // pred_region
        %p187 = scmp.lt.s32.totalorder %s16, 1
        %s188 = scalar_select %p187, %s16, 1
        %p189 = scmp.lt.s32.totalorder %s18, 0
        %s190 = scalar_select %p189, %s18, 0
        %s191 = smul.addr %s190, 3
        %s192 = sadd.s32 2, %s191
        %s193 = smul.addr %s188, 3
        %s194 = sadd.s32 %s192, %s193
        %s195 = smul.addr %s194, 4
        %s196 = scalar_lea.vmem %s2, %s195
      $region28: #{gpt_forward.10} parent=15 // pred_fallthru
        _
    $region16: #{gpt_forward.10} parent=5 // pred_fallthru
      _
    %p197 = scmp.le.s32.totalorder 1, %s9
    %p198 = scmp.lt.s32.totalorder %s9, 3
    %p199 = pnand %p197, %p198
    %p200 = pneg %p199
    // Predicated region
    $region29: #{gpt_forward.10} parent=5 // pred_check
      _
    $region30: #{gpt_forward.10} parent=5 // pred_check_branch
      %202 = sbr.rel (%p199) target = $region32
    $region31: #{gpt_forward.10} parent=5 // pred_region
      %s203 = ssub.s32 %s9, 1
      %p204 = scmp.lt.s32.totalorder %s19, 1
      %s205 = scalar_select %p204, %s19, 1
      %p206 = scmp.lt.s32.totalorder %s20, 0
      %s207 = scalar_select %p206, %s20, 0
      %s208 = smul.addr %s207, 3
      %s209 = smul.addr %s205, 3
      %s210 = sadd.s32 %s208, %s209
      %s211 = smul.addr %s210, 4
      %s212 = scalar_lea.vmem %s0, %s211
      %p213 = pneg %p56
      %p214 = pneg %p53
      %p215 = scmp.lt.s32.totalorder %s19, 1
      %s216 = scalar_select %p215, %s19, 1
      %p217 = scmp.lt.s32.totalorder %s21, 0
      %s218 = scalar_select %p217, %s21, 0
      %s219 = smul.addr %s218, 3
      %s220 = sadd.s32 1, %s219
      %s221 = smul.addr %s216, 3
      %s222 = sadd.s32 %s220, %s221
      %s223 = smul.addr %s222, 4
      %s224 = scalar_lea.vmem %s1, %s223
      %p225 = pneg %p84
      %p226 = pneg %p81
      %p227 = scmp.lt.s32.totalorder %s19, 1
      %s228 = scalar_select %p227, %s19, 1
      %p229 = scmp.lt.s32.totalorder %s21, 0
      %s230 = scalar_select %p229, %s21, 0
      %s231 = smul.addr %s230, 3
      %s232 = sadd.s32 2, %s231
      %s233 = smul.addr %s228, 3
      %s234 = sadd.s32 %s232, %s233
      %s235 = smul.addr %s234, 4
      %s236 = scalar_lea.vmem %s2, %s235
      %p237 = pneg %p112
      %p238 = pneg %p109
      %p239 = pneg %p140
      %p240 = pneg %p137
      %p241 = scmp.lt.s32.totalorder %s19, 1
      %s242 = scalar_select %p241, %s19, 1
      %p243 = scmp.lt.s32.totalorder %s20, 0
      %s244 = scalar_select %p243, %s20, 0
      %s245 = sadd.s32 %s244, %s242
      %s246 = smul.addr %s245, 4
      %s247 = scalar_lea.vmem %s3, %s246
      %p248 = scmp.lt.s32.totalorder %s19, 1
      %s249 = scalar_select %p248, %s19, 1
      %p250 = scmp.lt.s32.totalorder %s20, 0
      %s251 = scalar_select %p250, %s20, 0
      %s252 = smul.addr %s251, 3
      %s253 = smul.addr %s249, 3
      %s254 = sadd.s32 %s252, %s253
      %s255 = smul.addr %s254, 4
      %s256 = scalar_lea.vmem %s0, %s255
      %p257 = scmp.lt.s32.totalorder %s19, 1
      %s258 = scalar_select %p257, %s19, 1
      %p259 = scmp.lt.s32.totalorder %s21, 0
      %s260 = scalar_select %p259, %s21, 0
      %s261 = smul.addr %s260, 3
      %s262 = sadd.s32 1, %s261
      %s263 = smul.addr %s258, 3
      %s264 = sadd.s32 %s262, %s263
      %s265 = smul.addr %s264, 4
      %s266 = scalar_lea.vmem %s1, %s265
      %p267 = scmp.lt.s32.totalorder %s19, 1
      %s268 = scalar_select %p267, %s19, 1
      %p269 = scmp.lt.s32.totalorder %s21, 0
      %s270 = scalar_select %p269, %s21, 0
      %s271 = smul.addr %s270, 3
      %s272 = sadd.s32 2, %s271
      %s273 = smul.addr %s268, 3
      %s274 = sadd.s32 %s272, %s273
      %s275 = smul.addr %s274, 4
      %s276 = scalar_lea.vmem %s2, %s275
      %p277 = scmp.lt.s32.totalorder %s19, 1
      %s278 = scalar_select %p277, %s19, 1
      %p279 = scmp.lt.s32.totalorder %s20, 0
      %s280 = scalar_select %p279, %s20, 0
      %s281 = sadd.s32 %s280, %s278
      %s282 = smul.addr %s281, 4
      %s283 = scalar_lea.vmem %s3, %s282
      %p285 = scmp.eq.s32.totalorder %s21, 0
      // Predicated region
      $region33: #{gpt_forward.10} parent=31 // pred_check
        %p286 = pneg %p285
      $region34: #{gpt_forward.10} parent=31 // pred_check_branch
        %288 = sbr.rel (%p286) target = $region36
      $region35: #{gpt_forward.10} parent=31 // pred_region
        %vm289 = vcmask 7168
        %290 = vst.msk [vmem:[#allocation2] sm:$0xff] %vm289, -inf
        %291 = vst.msk [vmem:[#allocation2 + $0x8] sm:$0xff] %vm289, -inf
        %292 = vst.msk [vmem:[#allocation2 + $0x10] sm:$0xff] %vm289, -inf
        %293 = vst.msk [vmem:[#allocation2 + $0x18] sm:$0xff] %vm289, -inf
        %294 = vst.msk [vmem:[#allocation3] sm:$0xff] %vm289, 0.0
        %295 = vst.msk [vmem:[#allocation3 + $0x8] sm:$0xff] %vm289, 0.0
        %296 = vst.msk [vmem:[#allocation3 + $0x10] sm:$0xff] %vm289, 0.0
        %297 = vst.msk [vmem:[#allocation3 + $0x18] sm:$0xff] %vm289, 0.0
        %vm298 = vcmask 261120
        %299 = vst.msk [vmem:[#allocation4] sm:$0xff] %vm298, 0.0
        %300 = vst.msk [vmem:[#allocation4 + $0x8] sm:$0xff] %vm298, 0.0
        %301 = vst.msk [vmem:[#allocation4 + $0x10] sm:$0xff] %vm298, 0.0
        %302 = vst.msk [vmem:[#allocation4 + $0x18] sm:$0xff] %vm298, 0.0
      $region36: #{gpt_forward.10} parent=31 // pred_fallthru
        _
      %s303 = smul.u32 %s21, 8
      %s304 = smul.u32 %s20, 8
      %s305 = sadd.s32 %s304, 7
      %p306 = scmp.le.s32.totalorder %s303, %s305
      // Predicated region
      $region37: #{gpt_forward.10} parent=31 // pred_check
        %p307 = pneg %p306
      $region38: #{gpt_forward.10} parent=31 // pred_check_branch
        %309 = sbr.rel (%p307) target = $region40
      $region39: #{gpt_forward.10} parent=31 // pred_region
        %v310 = vlaneseq
        %v311 = vshrl.u32 %v310, 7
        %v312 = vstv %s304
        %v313 = vadd.s32 %v312, %v311
        %v314 = vlaneseq
        %v315 = vand.u32 %v314, 127
        %v316 = vstv %s303
        %v317 = vadd.s32 %v316, %v315
        %vm318 = vcmp.le.s32.totalorder %v317, %v313
        %v319 = vld [vmem:[%s256] sm:$0xf]
        %v320 = vld [vmem:[%s266] sm:$0xf]
        %v321 = vld [vmem:[%s276] sm:$0xf]
        %vm322 = vcmask 261120
        %v324 = vsel %vm322, %v319, 0
        %v327 = vsel %vm322, %v320, 0
        %329 = vmatprep.subr.bf16.mxu0 0
        %330 = vmatpush1.bf16.xpose.msra.mxu0 %v327
        %331 = vmatprep.subr.bf16.mxu0 0
        %332 = vmatpush1.bf16.xpose.msra.mxu0 0
        %333 = vmatprep.subr.bf16.mxu0 0
        %334 = vmatpush1.bf16.xpose.msra.mxu0 0
        %335 = vmatprep.subr.bf16.mxu0 0
        %336 = vmatpush1.bf16.xpose.msra.mxu0 0
        %337 = vmatprep.subr.bf16.mxu0 0
        %338 = vmatpush1.bf16.xpose.msra.mxu0 0
        %339 = vmatprep.subr.bf16.mxu0 0
        %340 = vmatpush1.bf16.xpose.msra.mxu0 0
        %341 = vmatprep.subr.bf16.mxu0 0
        %342 = vmatpush1.bf16.xpose.msra.mxu0 0
        %343 = vmatprep.subr.bf16.mxu0 0
        %344 = vmatpush1.bf16.xpose.msra.mxu0 0
        %345 = vmatprep.subr.bf16.mxu0 0
        %346 = vmatpush1.bf16.xpose.msra.mxu0 0
        %347 = vmatprep.subr.bf16.mxu0 0
        %348 = vmatpush1.bf16.xpose.msra.mxu0 0
        %349 = vmatprep.subr.bf16.mxu0 0
        %350 = vmatpush1.bf16.xpose.msra.mxu0 0
        %351 = vmatprep.subr.bf16.mxu0 0
        %352 = vmatpush1.bf16.xpose.msra.mxu0 0
        %353 = vmatprep.subr.bf16.mxu0 0
        %354 = vmatpush1.bf16.xpose.msra.mxu0 0
        %355 = vmatprep.subr.bf16.mxu0 0
        %356 = vmatpush1.bf16.xpose.msra.mxu0 0
        %357 = vmatprep.subr.bf16.mxu0 0
        %358 = vmatpush1.bf16.xpose.msra.mxu0 0
        %359 = vmatprep.subr.bf16.mxu0 0
        %360 = vmatpush1.bf16.xpose.msra.mxu0 0
        %361 = vmatprep.mubr.bf16.mxu0 0
        %362 = vmatmul.mubr.bf16.gmra.mrb[0].mxu0 %v324
        %v363 = vpop.f32.mrb[0].mxu0
        %v364 = vadd.f32 0.0, %v363
        %v365 = vpop.f32.mrb[0].mxu0
        %v366 = vpop.f32.mrb[0].mxu0
        %v367 = vpop.f32.mrb[0].mxu0
        %368 = vdwg.mxu0
        %v369 = vmul.f32 %v364, 0.17677669
        %v370 = vld [vmem:[#allocation2] sm:$0xff]
        %vm371 = vcmask 64512
        %v372 = vsel %vm371, %v369, -inf
        %373 = vmax.xlane.f32.xlu0 %v372
        %v374 = vpop.xlane.xlu0 %373
        %v375 = vmax.f32 %v370, %v374
        %377 = vset.pattern.permute.xlu0 0
        %378 = vperm.xlu0 %377, %v375
        %v379 = vpop.permute.xlu0 %378
        %v381 = vsub.f32 %v369, %v379
        %v382 = vmul.f32 %v381, 1.442695
        %v383 = vpow.pop %v382
        %v384 = vsel %vm318, %v383, 0.0
        %v385 = vsub.f32 %v370, %v375
        %v386 = vmul.f32 %v385, 1.442695
        %v387 = vpow.pop %v386
        %v388 = vld [vmem:[#allocation3] sm:$0xff]
        %v389 = vmul.f32 %v387, %v388
        %v390 = vsel %vm371, %v384, 0.0
        %391 = vadd.xlane.f32.xlu0 %v390
        %v392 = vpop.xlane.xlu0 %391
        %v393 = vadd.f32 %v389, %v392
        %vm394 = vcmask 7168
        %395 = vst.msk [vmem:[#allocation3] sm:$0xff] %vm394, %v393
        %v396 = vld [vmem:[#allocation4] sm:$0xff]
        %398 = vset.pattern.permute.xlu0 0
        %399 = vperm.xlu0 %398, %v387
        %v400 = vpop.permute.xlu0 %399
        %v402 = vmul.f32 %v400, %v396
        %v403 = vpack.c.bf16 %v384, %v384
        %v405 = vsel %vm371, %v403, 0
        %vm407 = vcmask 1043456
        %v409 = vsel %vm407, %v321, 0
        %411 = vmatprep.subr.bf16.mxu0 0
        %412 = vmatpush1.bf16.msra.mxu0 %v409
        %413 = vmatprep.subr.bf16.mxu0 0
        %414 = vmatpush1.bf16.msra.mxu0 0
        %415 = vmatprep.subr.bf16.mxu0 0
        %416 = vmatpush1.bf16.msra.mxu0 0
        %417 = vmatprep.subr.bf16.mxu0 0
        %418 = vmatpush1.bf16.msra.mxu0 0
        %419 = vmatprep.subr.bf16.mxu0 0
        %420 = vmatpush1.bf16.msra.mxu0 0
        %421 = vmatprep.subr.bf16.mxu0 0
        %422 = vmatpush1.bf16.msra.mxu0 0
        %423 = vmatprep.subr.bf16.mxu0 0
        %424 = vmatpush1.bf16.msra.mxu0 0
        %425 = vmatprep.subr.bf16.mxu0 0
        %426 = vmatpush1.bf16.msra.mxu0 0
        %427 = vmatprep.subr.bf16.mxu0 0
        %428 = vmatpush1.bf16.msra.mxu0 0
        %429 = vmatprep.subr.bf16.mxu0 0
        %430 = vmatpush1.bf16.msra.mxu0 0
        %431 = vmatprep.subr.bf16.mxu0 0
        %432 = vmatpush1.bf16.msra.mxu0 0
        %433 = vmatprep.subr.bf16.mxu0 0
        %434 = vmatpush1.bf16.msra.mxu0 0
        %435 = vmatprep.subr.bf16.mxu0 0
        %436 = vmatpush1.bf16.msra.mxu0 0
        %437 = vmatprep.subr.bf16.mxu0 0
        %438 = vmatpush1.bf16.msra.mxu0 0
        %439 = vmatprep.subr.bf16.mxu0 0
        %440 = vmatpush1.bf16.msra.mxu0 0
        %441 = vmatprep.subr.bf16.mxu0 0
        %442 = vmatpush1.bf16.msra.mxu0 0
        %443 = vmatprep.mubr.bf16.mxu0 0
        %444 = vmatmul.mubr.bf16.gmra.mrb[0].mxu0 %v405
        %v445 = vpop.f32.mrb[0].mxu0
        %v446 = vadd.f32 0.0, %v445
        %v447 = vpop.f32.mrb[0].mxu0
        %v448 = vpop.f32.mrb[0].mxu0
        %v449 = vpop.f32.mrb[0].mxu0
        %450 = vdwg.mxu0
        %v451 = vadd.f32 %v402, %v446
        %452 = vst.msk [vmem:[#allocation4] sm:$0xff] %vm322, %v451
        %453 = vst.msk [vmem:[#allocation2] sm:$0xff] %vm394, %v375
        %v454 = vld [vmem:[%s256] sm:$0xf]
        %v455 = vld [vmem:[%s266] sm:$0xf]
        %v456 = vld [vmem:[%s276] sm:$0xf]
        %v458 = vunpack.c.l.b16 %v454
        %v459 = vpack.c.b16 %v458, %v458
        %460 = vrot.lane.b32.xlu0 %v459, 96
        %v461 = vpop.permute.xlu0 %460
        %v463 = vunpack.c.l.b16 %v455
        %v464 = vpack.c.b16 %v463, %v463
        %465 = vrot.lane.b32.xlu0 %v464, 96
        %v466 = vpop.permute.xlu0 %465
        %v468 = vsel %vm322, %v461, 0
        %v471 = vsel %vm322, %v466, 0
        %473 = vmatprep.subr.bf16.mxu0 0
        %474 = vmatpush1.bf16.xpose.msra.mxu0 %v471
        %475 = vmatprep.subr.bf16.mxu0 0
        %476 = vmatpush1.bf16.xpose.msra.mxu0 0
        %477 = vmatprep.subr.bf16.mxu0 0
        %478 = vmatpush1.bf16.xpose.msra.mxu0 0
        %479 = vmatprep.subr.bf16.mxu0 0
        %480 = vmatpush1.bf16.xpose.msra.mxu0 0
        %481 = vmatprep.subr.bf16.mxu0 0
        %482 = vmatpush1.bf16.xpose.msra.mxu0 0
        %483 = vmatprep.subr.bf16.mxu0 0
        %484 = vmatpush1.bf16.xpose.msra.mxu0 0
        %485 = vmatprep.subr.bf16.mxu0 0
        %486 = vmatpush1.bf16.xpose.msra.mxu0 0
        %487 = vmatprep.subr.bf16.mxu0 0
        %488 = vmatpush1.bf16.xpose.msra.mxu0 0
        %489 = vmatprep.subr.bf16.mxu0 0
        %490 = vmatpush1.bf16.xpose.msra.mxu0 0
        %491 = vmatprep.subr.bf16.mxu0 0
        %492 = vmatpush1.bf16.xpose.msra.mxu0 0
        %493 = vmatprep.subr.bf16.mxu0 0
        %494 = vmatpush1.bf16.xpose.msra.mxu0 0
        %495 = vmatprep.subr.bf16.mxu0 0
        %496 = vmatpush1.bf16.xpose.msra.mxu0 0
        %497 = vmatprep.subr.bf16.mxu0 0
        %498 = vmatpush1.bf16.xpose.msra.mxu0 0
        %499 = vmatprep.subr.bf16.mxu0 0
        %500 = vmatpush1.bf16.xpose.msra.mxu0 0
        %501 = vmatprep.subr.bf16.mxu0 0
        %502 = vmatpush1.bf16.xpose.msra.mxu0 0
        %503 = vmatprep.subr.bf16.mxu0 0
        %504 = vmatpush1.bf16.xpose.msra.mxu0 0
        %505 = vmatprep.mubr.bf16.mxu0 0
        %506 = vmatmul.mubr.bf16.gmra.mrb[0].mxu0 %v468
        %v507 = vpop.f32.mrb[0].mxu0
        %v508 = vadd.f32 0.0, %v507
        %v509 = vpop.f32.mrb[0].mxu0
        %v510 = vpop.f32.mrb[0].mxu0
        %v511 = vpop.f32.mrb[0].mxu0
        %512 = vdwg.mxu0
        %v513 = vmul.f32 %v508, 0.17677669
        %s514 = scalar_lea.vmem [#allocation2], 8
        %v515 = vld [vmem:[%s514] sm:$0xff]
        %v516 = vsel %vm371, %v513, -inf
        %517 = vmax.xlane.f32.xlu0 %v516
        %v518 = vpop.xlane.xlu0 %517
        %v519 = vmax.f32 %v515, %v518
        %521 = vset.pattern.permute.xlu0 0
        %522 = vperm.xlu0 %521, %v519
        %v523 = vpop.permute.xlu0 %522
        %v525 = vsub.f32 %v513, %v523
        %v526 = vmul.f32 %v525, 1.442695
        %v527 = vpow.pop %v526
        %v528 = vsel %vm318, %v527, 0.0
        %v529 = vsub.f32 %v515, %v519
        %v530 = vmul.f32 %v529, 1.442695
        %v531 = vpow.pop %v530
        %s532 = scalar_lea.vmem [#allocation3], 8
        %v533 = vld [vmem:[%s532] sm:$0xff]
        %v534 = vmul.f32 %v531, %v533
        %v535 = vsel %vm371, %v528, 0.0
        %536 = vadd.xlane.f32.xlu0 %v535
        %v537 = vpop.xlane.xlu0 %536
        %v538 = vadd.f32 %v534, %v537
        %539 = vst.msk [vmem:[%s532] sm:$0xff] %vm394, %v538
        %s540 = scalar_lea.vmem [#allocation4], 8
        %v541 = vld [vmem:[%s540] sm:$0xff]
        %543 = vset.pattern.permute.xlu0 0
        %544 = vperm.xlu0 %543, %v531
        %v545 = vpop.permute.xlu0 %544
        %v547 = vmul.f32 %v545, %v541
        %v548 = vpack.c.bf16 %v528, %v528
        %v550 = vunpack.c.l.b16 %v456
        %v551 = vpack.c.b16 %v550, %v550
        %552 = vrot.lane.b32.xlu0 %v551, 96
        %v553 = vpop.permute.xlu0 %552
        %v555 = vsel %vm371, %v548, 0
        %v558 = vsel %vm407, %v553, 0
        %560 = vmatprep.subr.bf16.mxu0 0
        %561 = vmatpush1.bf16.msra.mxu0 %v558
        %562 = vmatprep.subr.bf16.mxu0 0
        %563 = vmatpush1.bf16.msra.mxu0 0
        %564 = vmatprep.subr.bf16.mxu0 0
        %565 = vmatpush1.bf16.msra.mxu0 0
        %566 = vmatprep.subr.bf16.mxu0 0
        %567 = vmatpush1.bf16.msra.mxu0 0
        %568 = vmatprep.subr.bf16.mxu0 0
        %569 = vmatpush1.bf16.msra.mxu0 0
        %570 = vmatprep.subr.bf16.mxu0 0
        %571 = vmatpush1.bf16.msra.mxu0 0
        %572 = vmatprep.subr.bf16.mxu0 0
        %573 = vmatpush1.bf16.msra.mxu0 0
        %574 = vmatprep.subr.bf16.mxu0 0
        %575 = vmatpush1.bf16.msra.mxu0 0
        %576 = vmatprep.subr.bf16.mxu0 0
        %577 = vmatpush1.bf16.msra.mxu0 0
        %578 = vmatprep.subr.bf16.mxu0 0
        %579 = vmatpush1.bf16.msra.mxu0 0
        %580 = vmatprep.subr.bf16.mxu0 0
        %581 = vmatpush1.bf16.msra.mxu0 0
        %582 = vmatprep.subr.bf16.mxu0 0
        %583 = vmatpush1.bf16.msra.mxu0 0
        %584 = vmatprep.subr.bf16.mxu0 0
        %585 = vmatpush1.bf16.msra.mxu0 0
        %586 = vmatprep.subr.bf16.mxu0 0
        %587 = vmatpush1.bf16.msra.mxu0 0
        %588 = vmatprep.subr.bf16.mxu0 0
        %589 = vmatpush1.bf16.msra.mxu0 0
        %590 = vmatprep.subr.bf16.mxu0 0
        %591 = vmatpush1.bf16.msra.mxu0 0
        %592 = vmatprep.mubr.bf16.mxu0 0
        %593 = vmatmul.mubr.bf16.gmra.mrb[0].mxu0 %v555
        %v594 = vpop.f32.mrb[0].mxu0
        %v595 = vadd.f32 0.0, %v594
        %v596 = vpop.f32.mrb[0].mxu0
        %v597 = vpop.f32.mrb[0].mxu0
        %v598 = vpop.f32.mrb[0].mxu0
        %599 = vdwg.mxu0
        %v600 = vadd.f32 %v547, %v595
        %601 = vst.msk [vmem:[%s540] sm:$0xff] %vm322, %v600
        %602 = vst.msk [vmem:[%s514] sm:$0xff] %vm394, %v519
        %v603 = vld [vmem:[%s256] sm:$0xf]
        %v604 = vld [vmem:[%s266] sm:$0xf]
        %v605 = vld [vmem:[%s276] sm:$0xf]
        %v607 = vunpack.c.l.b16 %v603
        %v608 = vpack.c.b16 %v607, %v607
        %609 = vrot.lane.b32.xlu0 %v608, 64
        %v610 = vpop.permute.xlu0 %609
        %v612 = vunpack.c.l.b16 %v604
        %v613 = vpack.c.b16 %v612, %v612
        %614 = vrot.lane.b32.xlu0 %v613, 64
        %v615 = vpop.permute.xlu0 %614
        %v617 = vsel %vm322, %v610, 0
        %v620 = vsel %vm322, %v615, 0
        %622 = vmatprep.subr.bf16.mxu0 0
        %623 = vmatpush1.bf16.xpose.msra.mxu0 %v620
        %624 = vmatprep.subr.bf16.mxu0 0
        %625 = vmatpush1.bf16.xpose.msra.mxu0 0
        %626 = vmatprep.subr.bf16.mxu0 0
        %627 = vmatpush1.bf16.xpose.msra.mxu0 0
        %628 = vmatprep.subr.bf16.mxu0 0
        %629 = vmatpush1.bf16.xpose.msra.mxu0 0
        %630 = vmatprep.subr.bf16.mxu0 0
        %631 = vmatpush1.bf16.xpose.msra.mxu0 0
        %632 = vmatprep.subr.bf16.mxu0 0
        %633 = vmatpush1.bf16.xpose.msra.mxu0 0
        %634 = vmatprep.subr.bf16.mxu0 0
        %635 = vmatpush1.bf16.xpose.msra.mxu0 0
        %636 = vmatprep.subr.bf16.mxu0 0
        %637 = vmatpush1.bf16.xpose.msra.mxu0 0
        %638 = vmatprep.subr.bf16.mxu0 0
        %639 = vmatpush1.bf16.xpose.msra.mxu0 0
        %640 = vmatprep.subr.bf16.mxu0 0
        %641 = vmatpush1.bf16.xpose.msra.mxu0 0
        %642 = vmatprep.subr.bf16.mxu0 0
        %643 = vmatpush1.bf16.xpose.msra.mxu0 0
        %644 = vmatprep.subr.bf16.mxu0 0
        %645 = vmatpush1.bf16.xpose.msra.mxu0 0
        %646 = vmatprep.subr.bf16.mxu0 0
        %647 = vmatpush1.bf16.xpose.msra.mxu0 0
        %648 = vmatprep.subr.bf16.mxu0 0
        %649 = vmatpush1.bf16.xpose.msra.mxu0 0
        %650 = vmatprep.subr.bf16.mxu0 0
        %651 = vmatpush1.bf16.xpose.msra.mxu0 0
        %652 = vmatprep.subr.bf16.mxu0 0
        %653 = vmatpush1.bf16.xpose.msra.mxu0 0
        %654 = vmatprep.mubr.bf16.mxu0 0
        %655 = vmatmul.mubr.bf16.gmra.mrb[0].mxu0 %v617
        %v656 = vpop.f32.mrb[0].mxu0
        %v657 = vadd.f32 0.0, %v656
        %v658 = vpop.f32.mrb[0].mxu0
        %v659 = vpop.f32.mrb[0].mxu0
        %v660 = vpop.f32.mrb[0].mxu0
        %661 = vdwg.mxu0
        %v662 = vmul.f32 %v657, 0.17677669
        %s663 = scalar_lea.vmem [#allocation2], 16
        %v664 = vld [vmem:[%s663] sm:$0xff]
        %v665 = vsel %vm371, %v662, -inf
        %666 = vmax.xlane.f32.xlu0 %v665
        %v667 = vpop.xlane.xlu0 %666
        %v668 = vmax.f32 %v664, %v667
        %670 = vset.pattern.permute.xlu0 0
        %671 = vperm.xlu0 %670, %v668
        %v672 = vpop.permute.xlu0 %671
        %v674 = vsub.f32 %v662, %v672
        %v675 = vmul.f32 %v674, 1.442695
        %v676 = vpow.pop %v675
        %v677 = vsel %vm318, %v676, 0.0
        %v678 = vsub.f32 %v664, %v668
        %v679 = vmul.f32 %v678, 1.442695
        %v680 = vpow.pop %v679
        %s681 = scalar_lea.vmem [#allocation3], 16
        %v682 = vld [vmem:[%s681] sm:$0xff]
        %v683 = vmul.f32 %v680, %v682
        %v684 = vsel %vm371, %v677, 0.0
        %685 = vadd.xlane.f32.xlu0 %v684
        %v686 = vpop.xlane.xlu0 %685
        %v687 = vadd.f32 %v683, %v686
        %688 = vst.msk [vmem:[%s681] sm:$0xff] %vm394, %v687
        %s689 = scalar_lea.vmem [#allocation4], 16
        %v690 = vld [vmem:[%s689] sm:$0xff]
        %692 = vset.pattern.permute.xlu0 0
        %693 = vperm.xlu0 %692, %v680
        %v694 = vpop.permute.xlu0 %693
        %v696 = vmul.f32 %v694, %v690
        %v697 = vpack.c.bf16 %v677, %v677
        %v699 = vunpack.c.l.b16 %v605
        %v700 = vpack.c.b16 %v699, %v699
        %701 = vrot.lane.b32.xlu0 %v700, 64
        %v702 = vpop.permute.xlu0 %701
        %v704 = vsel %vm371, %v697, 0
        %v707 = vsel %vm407, %v702, 0
        %709 = vmatprep.subr.bf16.mxu0 0
        %710 = vmatpush1.bf16.msra.mxu0 %v707
        %711 = vmatprep.subr.bf16.mxu0 0
        %712 = vmatpush1.bf16.msra.mxu0 0
        %713 = vmatprep.subr.bf16.mxu0 0
        %714 = vmatpush1.bf16.msra.mxu0 0
        %715 = vmatprep.subr.bf16.mxu0 0
        %716 = vmatpush1.bf16.msra.mxu0 0
        %717 = vmatprep.subr.bf16.mxu0 0
        %718 = vmatpush1.bf16.msra.mxu0 0
        %719 = vmatprep.subr.bf16.mxu0 0
        %720 = vmatpush1.bf16.msra.mxu0 0
        %721 = vmatprep.subr.bf16.mxu0 0
        %722 = vmatpush1.bf16.msra.mxu0 0
        %723 = vmatprep.subr.bf16.mxu0 0
        %724 = vmatpush1.bf16.msra.mxu0 0
        %725 = vmatprep.subr.bf16.mxu0 0
        %726 = vmatpush1.bf16.msra.mxu0 0
        %727 = vmatprep.subr.bf16.mxu0 0
        %728 = vmatpush1.bf16.msra.mxu0 0
        %729 = vmatprep.subr.bf16.mxu0 0
        %730 = vmatpush1.bf16.msra.mxu0 0
        %731 = vmatprep.subr.bf16.mxu0 0
        %732 = vmatpush1.bf16.msra.mxu0 0
        %733 = vmatprep.subr.bf16.mxu0 0
        %734 = vmatpush1.bf16.msra.mxu0 0
        %735 = vmatprep.subr.bf16.mxu0 0
        %736 = vmatpush1.bf16.msra.mxu0 0
        %737 = vmatprep.subr.bf16.mxu0 0
        %738 = vmatpush1.bf16.msra.mxu0 0
        %739 = vmatprep.subr.bf16.mxu0 0
        %740 = vmatpush1.bf16.msra.mxu0 0
        %741 = vmatprep.mubr.bf16.mxu0 0
        %742 = vmatmul.mubr.bf16.gmra.mrb[0].mxu0 %v704
        %v743 = vpop.f32.mrb[0].mxu0
        %v744 = vadd.f32 0.0, %v743
        %v745 = vpop.f32.mrb[0].mxu0
        %v746 = vpop.f32.mrb[0].mxu0
        %v747 = vpop.f32.mrb[0].mxu0
        %748 = vdwg.mxu0
        %v749 = vadd.f32 %v696, %v744
        %750 = vst.msk [vmem:[%s689] sm:$0xff] %vm322, %v749
        %751 = vst.msk [vmem:[%s663] sm:$0xff] %vm394, %v668
        %v752 = vld [vmem:[%s256] sm:$0xf]
        %v753 = vld [vmem:[%s266] sm:$0xf]
        %v754 = vld [vmem:[%s276] sm:$0xf]
        %v756 = vunpack.c.l.b16 %v752
        %v757 = vpack.c.b16 %v756, %v756
        %758 = vrot.lane.b32.xlu0 %v757, 32
        %v759 = vpop.permute.xlu0 %758
        %v761 = vunpack.c.l.b16 %v753
        %v762 = vpack.c.b16 %v761, %v761
        %763 = vrot.lane.b32.xlu0 %v762, 32
        %v764 = vpop.permute.xlu0 %763
        %v766 = vsel %vm322, %v759, 0
        %v769 = vsel %vm322, %v764, 0
        %771 = vmatprep.subr.bf16.mxu0 0
        %772 = vmatpush1.bf16.xpose.msra.mxu0 %v769
        %773 = vmatprep.subr.bf16.mxu0 0
        %774 = vmatpush1.bf16.xpose.msra.mxu0 0
        %775 = vmatprep.subr.bf16.mxu0 0
        %776 = vmatpush1.bf16.xpose.msra.mxu0 0
        %777 = vmatprep.subr.bf16.mxu0 0
        %778 = vmatpush1.bf16.xpose.msra.mxu0 0
        %779 = vmatprep.subr.bf16.mxu0 0
        %780 = vmatpush1.bf16.xpose.msra.mxu0 0
        %781 = vmatprep.subr.bf16.mxu0 0
        %782 = vmatpush1.bf16.xpose.msra.mxu0 0
        %783 = vmatprep.subr.bf16.mxu0 0
        %784 = vmatpush1.bf16.xpose.msra.mxu0 0
        %785 = vmatprep.subr.bf16.mxu0 0
        %786 = vmatpush1.bf16.xpose.msra.mxu0 0
        %787 = vmatprep.subr.bf16.mxu0 0
        %788 = vmatpush1.bf16.xpose.msra.mxu0 0
        %789 = vmatprep.subr.bf16.mxu0 0
        %790 = vmatpush1.bf16.xpose.msra.mxu0 0
        %791 = vmatprep.subr.bf16.mxu0 0
        %792 = vmatpush1.bf16.xpose.msra.mxu0 0
        %793 = vmatprep.subr.bf16.mxu0 0
        %794 = vmatpush1.bf16.xpose.msra.mxu0 0
        %795 = vmatprep.subr.bf16.mxu0 0
        %796 = vmatpush1.bf16.xpose.msra.mxu0 0
        %797 = vmatprep.subr.bf16.mxu0 0
        %798 = vmatpush1.bf16.xpose.msra.mxu0 0
        %799 = vmatprep.subr.bf16.mxu0 0
        %800 = vmatpush1.bf16.xpose.msra.mxu0 0
        %801 = vmatprep.subr.bf16.mxu0 0
        %802 = vmatpush1.bf16.xpose.msra.mxu0 0
        %803 = vmatprep.mubr.bf16.mxu0 0
        %804 = vmatmul.mubr.bf16.gmra.mrb[0].mxu0 %v766
        %v805 = vpop.f32.mrb[0].mxu0
        %v806 = vadd.f32 0.0, %v805
        %v807 = vpop.f32.mrb[0].mxu0
        %v808 = vpop.f32.mrb[0].mxu0
        %v809 = vpop.f32.mrb[0].mxu0
        %810 = vdwg.mxu0
        %v811 = vmul.f32 %v806, 0.17677669
        %s812 = scalar_lea.vmem [#allocation2], 24
        %v813 = vld [vmem:[%s812] sm:$0xff]
        %v814 = vsel %vm371, %v811, -inf
        %815 = vmax.xlane.f32.xlu0 %v814
        %v816 = vpop.xlane.xlu0 %815
        %v817 = vmax.f32 %v813, %v816
        %819 = vset.pattern.permute.xlu0 0
        %820 = vperm.xlu0 %819, %v817
        %v821 = vpop.permute.xlu0 %820
        %v823 = vsub.f32 %v811, %v821
        %v824 = vmul.f32 %v823, 1.442695
        %v825 = vpow.pop %v824
        %v826 = vsel %vm318, %v825, 0.0
        %v827 = vsub.f32 %v813, %v817
        %v828 = vmul.f32 %v827, 1.442695
        %v829 = vpow.pop %v828
        %s830 = scalar_lea.vmem [#allocation3], 24
        %v831 = vld [vmem:[%s830] sm:$0xff]
        %v832 = vmul.f32 %v829, %v831
        %v833 = vsel %vm371, %v826, 0.0
        %834 = vadd.xlane.f32.xlu0 %v833
        %v835 = vpop.xlane.xlu0 %834
        %v836 = vadd.f32 %v832, %v835
        %837 = vst.msk [vmem:[%s830] sm:$0xff] %vm394, %v836
        %s838 = scalar_lea.vmem [#allocation4], 24
        %v839 = vld [vmem:[%s838] sm:$0xff]
        %841 = vset.pattern.permute.xlu0 0
        %842 = vperm.xlu0 %841, %v829
        %v843 = vpop.permute.xlu0 %842
        %v845 = vmul.f32 %v843, %v839
        %v846 = vpack.c.bf16 %v826, %v826
        %v848 = vunpack.c.l.b16 %v754
        %v849 = vpack.c.b16 %v848, %v848
        %850 = vrot.lane.b32.xlu0 %v849, 32
        %v851 = vpop.permute.xlu0 %850
        %v853 = vsel %vm371, %v846, 0
        %v856 = vsel %vm407, %v851, 0
        %858 = vmatprep.subr.bf16.mxu0 0
        %859 = vmatpush1.bf16.msra.mxu0 %v856
        %860 = vmatprep.subr.bf16.mxu0 0
        %861 = vmatpush1.bf16.msra.mxu0 0
        %862 = vmatprep.subr.bf16.mxu0 0
        %863 = vmatpush1.bf16.msra.mxu0 0
        %864 = vmatprep.subr.bf16.mxu0 0
        %865 = vmatpush1.bf16.msra.mxu0 0
        %866 = vmatprep.subr.bf16.mxu0 0
        %867 = vmatpush1.bf16.msra.mxu0 0
        %868 = vmatprep.subr.bf16.mxu0 0
        %869 = vmatpush1.bf16.msra.mxu0 0
        %870 = vmatprep.subr.bf16.mxu0 0
        %871 = vmatpush1.bf16.msra.mxu0 0
        %872 = vmatprep.subr.bf16.mxu0 0
        %873 = vmatpush1.bf16.msra.mxu0 0
        %874 = vmatprep.subr.bf16.mxu0 0
        %875 = vmatpush1.bf16.msra.mxu0 0
        %876 = vmatprep.subr.bf16.mxu0 0
        %877 = vmatpush1.bf16.msra.mxu0 0
        %878 = vmatprep.subr.bf16.mxu0 0
        %879 = vmatpush1.bf16.msra.mxu0 0
        %880 = vmatprep.subr.bf16.mxu0 0
        %881 = vmatpush1.bf16.msra.mxu0 0
        %882 = vmatprep.subr.bf16.mxu0 0
        %883 = vmatpush1.bf16.msra.mxu0 0
        %884 = vmatprep.subr.bf16.mxu0 0
        %885 = vmatpush1.bf16.msra.mxu0 0
        %886 = vmatprep.subr.bf16.mxu0 0
        %887 = vmatpush1.bf16.msra.mxu0 0
        %888 = vmatprep.subr.bf16.mxu0 0
        %889 = vmatpush1.bf16.msra.mxu0 0
        %890 = vmatprep.mubr.bf16.mxu0 0
        %891 = vmatmul.mubr.bf16.gmra.mrb[0].mxu0 %v853
        %v892 = vpop.f32.mrb[0].mxu0
        %v893 = vadd.f32 0.0, %v892
        %v894 = vpop.f32.mrb[0].mxu0
        %v895 = vpop.f32.mrb[0].mxu0
        %v896 = vpop.f32.mrb[0].mxu0
        %897 = vdwg.mxu0
        %v898 = vadd.f32 %v845, %v893
        %899 = vst.msk [vmem:[%s838] sm:$0xff] %vm322, %v898
        %900 = vst.msk [vmem:[%s812] sm:$0xff] %vm394, %v817
      $region40: #{gpt_forward.10} parent=31 // pred_fallthru
        _
      // Predicated region
      $region41: #{gpt_forward.10} parent=31 // pred_check
        %p901 = pneg %p285
      $region42: #{gpt_forward.10} parent=31 // pred_check_branch
        %903 = sbr.rel (%p901) target = $region44
      $region43: #{gpt_forward.10} parent=31 // pred_region
        %v904 = vld [vmem:[#allocation3] sm:$0xff]
        %v905 = vrcp.pop %v904
        %v906 = vld [vmem:[#allocation4] sm:$0xff]
        %908 = vset.pattern.permute.xlu0 0
        %909 = vperm.xlu0 %908, %v905
        %v910 = vpop.permute.xlu0 %909
        %v912 = vmul.f32 %v906, %v910
        %s913 = scalar_lea.vmem [#allocation3], 8
        %v914 = vld [vmem:[%s913] sm:$0xff]
        %v915 = vrcp.pop %v914
        %s916 = scalar_lea.vmem [#allocation4], 8
        %v917 = vld [vmem:[%s916] sm:$0xff]
        %919 = vset.pattern.permute.xlu0 0
        %920 = vperm.xlu0 %919, %v915
        %v921 = vpop.permute.xlu0 %920
        %v923 = vmul.f32 %v917, %v921
        %s924 = scalar_lea.vmem [#allocation3], 16
        %v925 = vld [vmem:[%s924] sm:$0xff]
        %v926 = vrcp.pop %v925
        %s927 = scalar_lea.vmem [#allocation4], 16
        %v928 = vld [vmem:[%s927] sm:$0xff]
        %930 = vset.pattern.permute.xlu0 0
        %931 = vperm.xlu0 %930, %v926
        %v932 = vpop.permute.xlu0 %931
        %v934 = vmul.f32 %v928, %v932
        %s935 = scalar_lea.vmem [#allocation3], 24
        %v936 = vld [vmem:[%s935] sm:$0xff]
        %v937 = vrcp.pop %v936
        %s938 = scalar_lea.vmem [#allocation4], 24
        %v939 = vld [vmem:[%s938] sm:$0xff]
        %941 = vset.pattern.permute.xlu0 0
        %942 = vperm.xlu0 %941, %v937
        %v943 = vpop.permute.xlu0 %942
        %v945 = vmul.f32 %v939, %v943
        %947 = vrot.lane.b32.xlu0 %v923, 32
        %v948 = vpop.permute.xlu0 %947
        %951 = vrot.lane.b32.xlu0 %v934, 64
        %v952 = vpop.permute.xlu0 %951
        %955 = vrot.lane.b32.xlu0 %v945, 96
        %v956 = vpop.permute.xlu0 %955
        %vm958 = vcmask 261120
        %v959 = vsel %vm958, %v912, %v948
        %vm960 = vcmask 523264
        %v961 = vsel %vm960, %v959, %v952
        %vm962 = vcmask 785408
        %v963 = vsel %vm962, %v961, %v956
        %v964 = vpack.c.bf16 %v963, %v963
        %965 = vst [vmem:[%s283] sm:$0xf] %v964
      $region44: #{gpt_forward.10} parent=31 // pred_fallthru
        _
      %p966 = scmp.lt.s32.totalorder %s19, 1
      %s967 = scalar_select %p966, %s19, 1
      %p968 = scmp.lt.s32.totalorder %s20, 0
      %s969 = scalar_select %p968, %s20, 0
      %s970 = sadd.s32 %s969, %s967
      %s971 = smul.addr %s970, 4
      %s972 = scalar_lea.vmem %s3, %s971
      // Predicated region
      $region45: #{gpt_forward.10} parent=31 // pred_check
        %p973 = pneg %p137
      $region46: #{gpt_forward.10} parent=31 // pred_check_branch
        %975 = sbr.rel (%p973) target = $region48
      $region47: #{gpt_forward.10} parent=31 // pred_region
        _
      $region48: #{gpt_forward.10} parent=31 // pred_fallthru
        _
    $region32: #{gpt_forward.10} parent=5 // pred_fallthru
      _
    %p976 = scmp.le.s32.totalorder 2, %s9
    // Predicated region
    $region49: #{gpt_forward.10} parent=5 // pred_check
      %p977 = pneg %p976
    $region50: #{gpt_forward.10} parent=5 // pred_check_branch
      %979 = sbr.rel (%p977) target = $region52
    $region51: #{gpt_forward.10} parent=5 // pred_region
      %s980 = ssub.s32 %s9, 2
      // Predicated region
      $region53: #{gpt_forward.10} parent=51 // pred_check
        %p981 = pneg %p143
      $region54: #{gpt_forward.10} parent=51 // pred_check_branch
        %983 = sbr.rel (%p981) target = $region56
      $region55: #{gpt_forward.10} parent=51 // pred_region
        %p984 = scmp.lt.s32.totalorder %s22, 1
        %s985 = scalar_select %p984, %s22, 1
        %p986 = scmp.lt.s32.totalorder %s23, 0
        %s987 = scalar_select %p986, %s23, 0
        %s988 = sadd.s32 %s987, %s985
        %s989 = smul.addr %s988, 4
        %s990 = scalar_lea.vmem %s3, %s989
      $region56: #{gpt_forward.10} parent=51 // pred_fallthru
        _
    $region52: #{gpt_forward.10} parent=5 // pred_fallthru
      _
  $region6: #{gpt_forward.10} parent=0 // loop_footer
    %s13 = sadd.s32 1, %s9
  $region7: #{gpt_forward.10} parent=0 // loop_footer_branch
    %8 = sbr.rel target = $region3
  $region8: #{gpt_forward.10} parent=0 // loop_exit
    _

// kernel: gpt_forward.12
$region0: #{gpt_forward.12}
  #allocation0 [shape = 'u32[]', space=smem, size = 0x4, offset = 0x4, fixed_abs, tag = 'smem constant byte address 0x4 - core index']
  #allocation1 [shape = 'u32[144,128]{1,0:T(1,128)}', space=vmem, size = 0x12000, scoped, tag = 'internal scratch']
  #allocation2 [shape = 'bf16[16,128]{1,0:T(16,128)(2,1)}', space=vmem, size = 0x1000, scoped, tag = 'scratch operand']
  #allocation3 [shape = 'f32[16,128]{1,0:T(8,128)}', space=vmem, size = 0x2000, scoped, tag = 'scratch operand']
  %s0 = inlined_call_operand.vmem [shape: f32[16,128], index: 0, kind: input, shape index: {}]
  %s1 = inlined_call_operand.hbm [shape: f32[1,128], index: 1, kind: input, shape index: {}]
  %s2 = inlined_call_operand.hbm [shape: f32[1,128], index: 2, kind: input, shape index: {}]
  %s3 = inlined_call_operand.vmem [shape: bf16[128,512], index: 3, kind: input, shape index: {}]
  %s4 = inlined_call_operand.hbm [shape: f32[1,512], index: 4, kind: input, shape index: {}]
  %s5 = inlined_call_operand.vmem [shape: bf16[512,128], index: 5, kind: input, shape index: {}]
  %s6 = inlined_call_operand.hbm [shape: f32[1,128], index: 6, kind: input, shape index: {}]
  %s7 = inlined_call_operand.vmem [shape: f32[16,128], index: 7, kind: output, shape index: {}]
  %s8 = sld [smem:[#allocation0]]
  $region62: #{gpt_forward.12} parent=0
    _
  %s10 = ssub.s32 1, %s8
  %s11 = scalar_select 0, %s10, %s8
  $region1: #{gpt_forward.12} parent=0
    #allocation4 [shape = 'u8[512]{0}', space=vmem, size = 0x400, scoped, tag = 'input window, operand 1, single buffered']
    #allocation5 [shape = 's32[1]{0}', space=sflag, size = 0x4, scoped, tag = 'scoped memory for gpt_forward.12']
    #allocation6 [shape = 'u8[512]{0}', space=vmem, size = 0x400, scoped, tag = 'input window, operand 2, single buffered']
    #allocation7 [shape = 's32[1]{0}', space=sflag, size = 0x4, scoped, tag = 'scoped memory for gpt_forward.12']
    #allocation8 [shape = 'u8[2048]{0}', space=vmem, size = 0x800, scoped, tag = 'input window, operand 4, single buffered']
    #allocation9 [shape = 'u8[512]{0}', space=vmem, size = 0x400, scoped, tag = 'input window, operand 6, single buffered']
    #allocation10 [shape = 's32[1]{0}', space=sflag, size = 0x4, scoped, tag = 'scoped memory for gpt_forward.12']
    %12 = vsyncpa [#allocation5], 0
    %13 = vsyncpa [#allocation7], 0
    %14 = vsyncpa [#allocation10], 0
    // Predicated region
    $region2: #{gpt_forward.12} parent=1 // pred_check
      _
    $region3: #{gpt_forward.12} parent=1 // pred_check_branch
      %16 = sbr.rel (0) target = $region5
    $region4: #{gpt_forward.12} parent=1 // pred_region
      _
    $region5: #{gpt_forward.12} parent=1 // pred_fallthru
      _
    // Predicated region
    $region6: #{gpt_forward.12} parent=1 // pred_check
      _
    $region7: #{gpt_forward.12} parent=1 // pred_check_branch
      %18 = sbr.rel (0) target = $region9
    $region8: #{gpt_forward.12} parent=1 // pred_region
      %s20 = ssub.s32 16, 16
      %21 = vsyncadd [#allocation5], %s20
      %s23 = sshll.u32 [#allocation4], 4
      %s24 = int_to_ptr.vmem [resolvable:$true] %s23
      %26 = dma.hbm_to_vmem [thread:$0]  %s1, 16, %s24, [#allocation5]
    $region9: #{gpt_forward.12} parent=1 // pred_fallthru
      _
    // Predicated region
    $region10: #{gpt_forward.12} parent=1 // pred_check
      _
    $region11: #{gpt_forward.12} parent=1 // pred_check_branch
      %28 = sbr.rel (0) target = $region13
    $region12: #{gpt_forward.12} parent=1 // pred_region
      %s30 = ssub.s32 16, 16
      %31 = vsyncadd [#allocation7], %s30
      %s33 = sshll.u32 [#allocation6], 4
      %s34 = int_to_ptr.vmem [resolvable:$true] %s33
      %36 = dma.hbm_to_vmem [thread:$0]  %s2, 16, %s34, [#allocation7]
    $region13: #{gpt_forward.12} parent=1 // pred_fallthru
      _
    // Predicated region
    $region14: #{gpt_forward.12} parent=1 // pred_check
      _
    $region15: #{gpt_forward.12} parent=1 // pred_check_branch
      %38 = sbr.rel (0) target = $region17
    $region16: #{gpt_forward.12} parent=1 // pred_region
      _
    $region17: #{gpt_forward.12} parent=1 // pred_fallthru
      _
    // Predicated region
    $region18: #{gpt_forward.12} parent=1 // pred_check
      _
    $region19: #{gpt_forward.12} parent=1 // pred_check_branch
      %40 = sbr.rel (0) target = $region21
    $region20: #{gpt_forward.12} parent=1 // pred_region
      %s42 = ssub.s32 64, 64
      %43 = vsyncadd [#allocation7], %s42
      %s45 = sshll.u32 [#allocation8], 4
      %s46 = int_to_ptr.vmem [resolvable:$true] %s45
      %48 = dma.hbm_to_vmem [thread:$0]  %s4, 64, %s46, [#allocation7]
    $region21: #{gpt_forward.12} parent=1 // pred_fallthru
      _
    // Predicated region
    $region22: #{gpt_forward.12} parent=1 // pred_check
      _
    $region23: #{gpt_forward.12} parent=1 // pred_check_branch
      %50 = sbr.rel (0) target = $region25
    $region24: #{gpt_forward.12} parent=1 // pred_region
      _
    $region25: #{gpt_forward.12} parent=1 // pred_fallthru
      _
    // Predicated region
    $region26: #{gpt_forward.12} parent=1 // pred_check
      _
    $region27: #{gpt_forward.12} parent=1 // pred_check_branch
      %52 = sbr.rel (0) target = $region29
    $region28: #{gpt_forward.12} parent=1 // pred_region
      %s54 = ssub.s32 16, 16
      %55 = vsyncadd [#allocation10], %s54
      %s57 = sshll.u32 [#allocation9], 4
      %s58 = int_to_ptr.vmem [resolvable:$true] %s57
      %60 = dma.hbm_to_vmem [thread:$0]  %s6, 16, %s58, [#allocation10]
    $region29: #{gpt_forward.12} parent=1 // pred_fallthru
      _
    // Predicated region
    $region30: #{gpt_forward.12} parent=1 // pred_check
      _
    $region31: #{gpt_forward.12} parent=1 // pred_check_branch
      %62 = sbr.rel (0) target = $region33
    $region32: #{gpt_forward.12} parent=1 // pred_region
      %63 = dma.done [#allocation5], 16
    $region33: #{gpt_forward.12} parent=1 // pred_fallthru
      _
    // Predicated region
    $region34: #{gpt_forward.12} parent=1 // pred_check
      _
    $region35: #{gpt_forward.12} parent=1 // pred_check_branch
      %65 = sbr.rel (0) target = $region37
    $region36: #{gpt_forward.12} parent=1 // pred_region
      %66 = dma.done [#allocation7], 16
    $region37: #{gpt_forward.12} parent=1 // pred_fallthru
      _
    // Predicated region
    $region38: #{gpt_forward.12} parent=1 // pred_check
      _
    $region39: #{gpt_forward.12} parent=1 // pred_check_branch
      %68 = sbr.rel (0) target = $region41
    $region40: #{gpt_forward.12} parent=1 // pred_region
      %69 = dma.done [#allocation7], 64
    $region41: #{gpt_forward.12} parent=1 // pred_fallthru
      _
    // Predicated region
    $region42: #{gpt_forward.12} parent=1 // pred_check
      _
    $region43: #{gpt_forward.12} parent=1 // pred_check_branch
      %71 = sbr.rel (0) target = $region45
    $region44: #{gpt_forward.12} parent=1 // pred_region
      %72 = dma.done [#allocation10], 16
    $region45: #{gpt_forward.12} parent=1 // pred_fallthru
      _
    %p74 = scmp.eq.s32.totalorder 0, 0
    // Predicated region
    $region46: #{gpt_forward.12} parent=1 // pred_check
      %p75 = pneg %p74
    $region47: #{gpt_forward.12} parent=1 // pred_check_branch
      %77 = sbr.rel (%p75) target = $region49
    $region48: #{gpt_forward.12} parent=1 // pred_region
      %v78 = vld [vmem:[%s0] sm:$0xff]
      %v79 = vld [vmem:[%s0 + $0x8] sm:$0xff]
      %80 = vadd.xlane.f32.xlu0 %v78
      %v81 = vpop.xlane.xlu0 %80
      %82 = vadd.xlane.f32.xlu0 %v79
      %v83 = vpop.xlane.xlu0 %82
      %v84 = vrcp.pop 128.0
      %v85 = vmul.f32 %v81, %v84
      %v86 = vmul.f32 %v83, %v84
      %v87 = vsub.f32 %v78, %v85
      %v88 = vsub.f32 %v79, %v86
      %v89 = vmul.f32 %v87, %v87
      %v90 = vmul.f32 %v88, %v88
      %91 = vadd.xlane.f32.xlu0 %v89
      %v92 = vpop.xlane.xlu0 %91
      %93 = vadd.xlane.f32.xlu0 %v90
      %v94 = vpop.xlane.xlu0 %93
      %v95 = vmul.f32 %v92, %v84
      %v96 = vmul.f32 %v94, %v84
      %v97 = vadd.f32 %v95, 1e-05
      %v98 = vadd.f32 %v96, 1e-05
      %v99 = vrsqrt.pop %v97
      %v100 = vrsqrt.pop %v98
      %v101 = vmul.f32 %v87, %v99
      %v102 = vmul.f32 %v88, %v100
      %v103 = vld [vmem:[#allocation4] sm:$0x1]
      %v105 = vlaneseq
      %v106 = vshrl.u32 %v105, 7
      %v107 = vsub.s32 0, %v106
      %v108 = vrot.slane %v103, %v107
      %v110 = vmul.f32 %v101, %v108
      %v111 = vmul.f32 %v102, %v108
      %v112 = vld [vmem:[#allocation6] sm:$0x1]
      %v114 = vlaneseq
      %v115 = vshrl.u32 %v114, 7
      %v116 = vsub.s32 0, %v115
      %v117 = vrot.slane %v112, %v116
      %v119 = vadd.f32 %v110, %v117
      %v120 = vadd.f32 %v111, %v117
      %v121 = vpack.c.bf16 %v120, %v119
      %122 = vst [vmem:[#allocation2] sm:$0xff] %v121
      %123 = vst [vmem:[#allocation3] sm:$0xff] 0.0
      %124 = vst [vmem:[#allocation3 + $0x8] sm:$0xff] 0.0
    $region49: #{gpt_forward.12} parent=1 // pred_fallthru
      _
    %v125 = vld [vmem:[#allocation2] sm:$0xff]
    %v126 = vld [vmem:[%s3] sm:$0xff]
    %v127 = vld [vmem:[%s3 + $0x8] sm:$0xff]
    %v128 = vld [vmem:[%s3 + $0x10] sm:$0xff]
    %v129 = vld [vmem:[%s3 + $0x18] sm:$0xff]
    %v130 = vld [vmem:[%s3 + $0x20] sm:$0xff]
    %v131 = vld [vmem:[%s3 + $0x28] sm:$0xff]
    %v132 = vld [vmem:[%s3 + $0x30] sm:$0xff]
    %v133 = vld [vmem:[%s3 + $0x38] sm:$0xff]
    %v134 = vld [vmem:[%s3 + $0x40] sm:$0xff]
    %v135 = vld [vmem:[%s3 + $0x48] sm:$0xff]
    %v136 = vld [vmem:[%s3 + $0x50] sm:$0xff]
    %v137 = vld [vmem:[%s3 + $0x58] sm:$0xff]
    %v138 = vld [vmem:[%s3 + $0x60] sm:$0xff]
    %v139 = vld [vmem:[%s3 + $0x68] sm:$0xff]
    %v140 = vld [vmem:[%s3 + $0x70] sm:$0xff]
    %v141 = vld [vmem:[%s3 + $0x78] sm:$0xff]
    %v142 = vld [vmem:[%s3 + $0x80] sm:$0xff]
    %v143 = vld [vmem:[%s3 + $0x88] sm:$0xff]
    %v144 = vld [vmem:[%s3 + $0x90] sm:$0xff]
    %v145 = vld [vmem:[%s3 + $0x98] sm:$0xff]
    %v146 = vld [vmem:[%s3 + $0xa0] sm:$0xff]
    %v147 = vld [vmem:[%s3 + $0xa8] sm:$0xff]
    %v148 = vld [vmem:[%s3 + $0xb0] sm:$0xff]
    %v149 = vld [vmem:[%s3 + $0xb8] sm:$0xff]
    %v150 = vld [vmem:[%s3 + $0xc0] sm:$0xff]
    %v151 = vld [vmem:[%s3 + $0xc8] sm:$0xff]
    %v152 = vld [vmem:[%s3 + $0xd0] sm:$0xff]
    %v153 = vld [vmem:[%s3 + $0xd8] sm:$0xff]
    %v154 = vld [vmem:[%s3 + $0xe0] sm:$0xff]
    %v155 = vld [vmem:[%s3 + $0xe8] sm:$0xff]
    %v156 = vld [vmem:[%s3 + $0xf0] sm:$0xff]
    %v157 = vld [vmem:[%s3 + $0xf8] sm:$0xff]
    %v158 = vld [vmem:[#allocation8] sm:$0xf]
    %v160 = vlaneseq
    %v161 = vshrl.u32 %v160, 7
    %v162 = vsub.s32 0, %v161
    %v163 = vrot.slane %v158, %v162
    %v164 = vlaneseq
    %v165 = vshrl.u32 %v164, 7
    %v166 = vsub.s32 1, %v165
    %v167 = vrot.slane %v158, %v166
    %v168 = vlaneseq
    %v169 = vshrl.u32 %v168, 7
    %v170 = vsub.s32 2, %v169
    %v171 = vrot.slane %v158, %v170
    %v172 = vlaneseq
    %v173 = vshrl.u32 %v172, 7
    %v174 = vsub.s32 3, %v173
    %v175 = vrot.slane %v158, %v174
    %v212 = vunpack.c.l.b16 %v126
    %v213 = vunpack.c.h.b16 %v126
    %v214 = vunpack.c.l.b16 %v127
    %v215 = vunpack.c.h.b16 %v127
    %v216 = vunpack.c.l.b16 %v128
    %v217 = vunpack.c.h.b16 %v128
    %v218 = vunpack.c.l.b16 %v129
    %v219 = vunpack.c.h.b16 %v129
    %v220 = vunpack.c.l.b16 %v130
    %v221 = vunpack.c.h.b16 %v130
    %v222 = vunpack.c.l.b16 %v131
    %v223 = vunpack.c.h.b16 %v131
    %v224 = vunpack.c.l.b16 %v132
    %v225 = vunpack.c.h.b16 %v132
    %v226 = vunpack.c.l.b16 %v133
    %v227 = vunpack.c.h.b16 %v133
    %v228 = vunpack.c.l.b16 %v134
    %v229 = vunpack.c.h.b16 %v134
    %v230 = vunpack.c.l.b16 %v135
    %v231 = vunpack.c.h.b16 %v135
    %v232 = vunpack.c.l.b16 %v136
    %v233 = vunpack.c.h.b16 %v136
    %v234 = vunpack.c.l.b16 %v137
    %v235 = vunpack.c.h.b16 %v137
    %v236 = vunpack.c.l.b16 %v138
    %v237 = vunpack.c.h.b16 %v138
    %v238 = vunpack.c.l.b16 %v139
    %v239 = vunpack.c.h.b16 %v139
    %v240 = vunpack.c.l.b16 %v140
    %v241 = vunpack.c.h.b16 %v140
    %v242 = vunpack.c.l.b16 %v141
    %v243 = vunpack.c.h.b16 %v141
    %v244 = vunpack.c.l.b16 %v142
    %v245 = vunpack.c.h.b16 %v142
    %v246 = vunpack.c.l.b16 %v143
    %v247 = vunpack.c.h.b16 %v143
    %v248 = vunpack.c.l.b16 %v144
    %v249 = vunpack.c.h.b16 %v144
    %v250 = vunpack.c.l.b16 %v145
    %v251 = vunpack.c.h.b16 %v145
    %v252 = vunpack.c.l.b16 %v146
    %v253 = vunpack.c.h.b16 %v146
    %v254 = vunpack.c.l.b16 %v147
    %v255 = vunpack.c.h.b16 %v147
    %v256 = vunpack.c.l.b16 %v148
    %v257 = vunpack.c.h.b16 %v148
    %v258 = vunpack.c.l.b16 %v149
    %v259 = vunpack.c.h.b16 %v149
    %v260 = vunpack.c.l.b16 %v150
    %v261 = vunpack.c.h.b16 %v150
    %v262 = vunpack.c.l.b16 %v151
    %v263 = vunpack.c.h.b16 %v151
    %v264 = vunpack.c.l.b16 %v152
    %v265 = vunpack.c.h.b16 %v152
    %v266 = vunpack.c.l.b16 %v153
    %v267 = vunpack.c.h.b16 %v153
    %v268 = vunpack.c.l.b16 %v154
    %v269 = vunpack.c.h.b16 %v154
    %v270 = vunpack.c.l.b16 %v155
    %v271 = vunpack.c.h.b16 %v155
    %v272 = vunpack.c.l.b16 %v156
    %v273 = vunpack.c.h.b16 %v156
    %v274 = vunpack.c.l.b16 %v157
    %v275 = vunpack.c.h.b16 %v157
    %v276 = vpack.c.b16 %v216, %v212
    %v277 = vpack.c.b16 %v217, %v213
    %v278 = vpack.c.b16 %v218, %v214
    %v279 = vpack.c.b16 %v219, %v215
    %v280 = vpack.c.b16 %v224, %v220
    %v281 = vpack.c.b16 %v225, %v221
    %v282 = vpack.c.b16 %v226, %v222
    %v283 = vpack.c.b16 %v227, %v223
    %v284 = vpack.c.b16 %v232, %v228
    %v285 = vpack.c.b16 %v233, %v229
    %v286 = vpack.c.b16 %v234, %v230
    %v287 = vpack.c.b16 %v235, %v231
    %v288 = vpack.c.b16 %v240, %v236
    %v289 = vpack.c.b16 %v241, %v237
    %v290 = vpack.c.b16 %v242, %v238
    %v291 = vpack.c.b16 %v243, %v239
    %v292 = vpack.c.b16 %v248, %v244
    %v293 = vpack.c.b16 %v249, %v245
    %v294 = vpack.c.b16 %v250, %v246
    %v295 = vpack.c.b16 %v251, %v247
    %v296 = vpack.c.b16 %v256, %v252
    %v297 = vpack.c.b16 %v257, %v253
    %v298 = vpack.c.b16 %v258, %v254
    %v299 = vpack.c.b16 %v259, %v255
    %v300 = vpack.c.b16 %v264, %v260
    %v301 = vpack.c.b16 %v265, %v261
    %v302 = vpack.c.b16 %v266, %v262
    %v303 = vpack.c.b16 %v267, %v263
    %v304 = vpack.c.b16 %v272, %v268
    %v305 = vpack.c.b16 %v273, %v269
    %v306 = vpack.c.b16 %v274, %v270
    %v307 = vpack.c.b16 %v275, %v271
    %340 = vmatprep.subr.bf16.mxu0 %v277
    %341 = vmatpush1.bf16.msra.mxu0 %v276
    %342 = vmatprep.subr.bf16.mxu0 %v281
    %343 = vmatpush1.bf16.msra.mxu0 %v280
    %344 = vmatprep.subr.bf16.mxu0 %v285
    %345 = vmatpush1.bf16.msra.mxu0 %v284
    %346 = vmatprep.subr.bf16.mxu0 %v289
    %347 = vmatpush1.bf16.msra.mxu0 %v288
    %348 = vmatprep.subr.bf16.mxu0 %v293
    %349 = vmatpush1.bf16.msra.mxu0 %v292
    %350 = vmatprep.subr.bf16.mxu0 %v297
    %351 = vmatpush1.bf16.msra.mxu0 %v296
    %352 = vmatprep.subr.bf16.mxu0 %v301
    %353 = vmatpush1.bf16.msra.mxu0 %v300
    %354 = vmatprep.subr.bf16.mxu0 %v305
    %355 = vmatpush1.bf16.msra.mxu0 %v304
    %356 = vmatprep.subr.bf16.mxu0 0
    %357 = vmatpush1.bf16.msra.mxu0 0
    %358 = vmatprep.subr.bf16.mxu0 0
    %359 = vmatpush1.bf16.msra.mxu0 0
    %360 = vmatprep.subr.bf16.mxu0 0
    %361 = vmatpush1.bf16.msra.mxu0 0
    %362 = vmatprep.subr.bf16.mxu0 0
    %363 = vmatpush1.bf16.msra.mxu0 0
    %364 = vmatprep.subr.bf16.mxu0 0
    %365 = vmatpush1.bf16.msra.mxu0 0
    %366 = vmatprep.subr.bf16.mxu0 0
    %367 = vmatpush1.bf16.msra.mxu0 0
    %368 = vmatprep.subr.bf16.mxu0 0
    %369 = vmatpush1.bf16.msra.mxu0 0
    %370 = vmatprep.subr.bf16.mxu0 0
    %371 = vmatpush1.bf16.msra.mxu0 0
    %372 = vmatprep.mubr.bf16.mxu0 0
    %373 = vmatmul.mubr.bf16.gmra.mrb[0].mxu0 %v125
    %v374 = vpop.f32.mrb[0].mxu0
    %v375 = vadd.f32 %v163, %v374
    %v376 = vpop.f32.mrb[0].mxu0
    %v377 = vadd.f32 %v167, %v376
    %v378 = vpop.f32.mrb[0].mxu0
    %v379 = vadd.f32 %v163, %v378
    %v380 = vpop.f32.mrb[0].mxu0
    %v381 = vadd.f32 %v167, %v380
    %382 = vdwg.mxu0
    %383 = vmatprep.subr.bf16.mxu0 %v279
    %384 = vmatpush1.bf16.msra.mxu0 %v278
    %385 = vmatprep.subr.bf16.mxu0 %v283
    %386 = vmatpush1.bf16.msra.mxu0 %v282
    %387 = vmatprep.subr.bf16.mxu0 %v287
    %388 = vmatpush1.bf16.msra.mxu0 %v286
    %389 = vmatprep.subr.bf16.mxu0 %v291
    %390 = vmatpush1.bf16.msra.mxu0 %v290
    %391 = vmatprep.subr.bf16.mxu0 %v295
    %392 = vmatpush1.bf16.msra.mxu0 %v294
    %393 = vmatprep.subr.bf16.mxu0 %v299
    %394 = vmatpush1.bf16.msra.mxu0 %v298
    %395 = vmatprep.subr.bf16.mxu0 %v303
    %396 = vmatpush1.bf16.msra.mxu0 %v302
    %397 = vmatprep.subr.bf16.mxu0 %v307
    %398 = vmatpush1.bf16.msra.mxu0 %v306
    %399 = vmatprep.subr.bf16.mxu0 0
    %400 = vmatpush1.bf16.msra.mxu0 0
    %401 = vmatprep.subr.bf16.mxu0 0
    %402 = vmatpush1.bf16.msra.mxu0 0
    %403 = vmatprep.subr.bf16.mxu0 0
    %404 = vmatpush1.bf16.msra.mxu0 0
    %405 = vmatprep.subr.bf16.mxu0 0
    %406 = vmatpush1.bf16.msra.mxu0 0
    %407 = vmatprep.subr.bf16.mxu0 0
    %408 = vmatpush1.bf16.msra.mxu0 0
    %409 = vmatprep.subr.bf16.mxu0 0
    %410 = vmatpush1.bf16.msra.mxu0 0
    %411 = vmatprep.subr.bf16.mxu0 0
    %412 = vmatpush1.bf16.msra.mxu0 0
    %413 = vmatprep.subr.bf16.mxu0 0
    %414 = vmatpush1.bf16.msra.mxu0 0
    %415 = vmatprep.mubr.bf16.mxu0 0
    %416 = vmatmul.mubr.bf16.gmra.mrb[0].mxu0 %v125
    %v417 = vpop.f32.mrb[0].mxu0
    %v418 = vadd.f32 %v171, %v417
    %v419 = vpop.f32.mrb[0].mxu0
    %v420 = vadd.f32 %v175, %v419
    %v421 = vpop.f32.mrb[0].mxu0
    %v422 = vadd.f32 %v171, %v421
    %v423 = vpop.f32.mrb[0].mxu0
    %v424 = vadd.f32 %v175, %v423
    %425 = vdwg.mxu0
    %v426 = vmul.f32 %v375, 0.5
    %v427 = vmul.f32 %v377, 0.5
    %v428 = vmul.f32 %v418, 0.5
    %v429 = vmul.f32 %v420, 0.5
    %v430 = vmul.f32 %v379, 0.5
    %v431 = vmul.f32 %v381, 0.5
    %v432 = vmul.f32 %v422, 0.5
    %v433 = vmul.f32 %v424, 0.5
    %v434 = vmul.f32 %v375, 0.044715
    %v435 = vmul.f32 %v377, 0.044715
    %v436 = vmul.f32 %v418, 0.044715
    %v437 = vmul.f32 %v420, 0.044715
    %v438 = vmul.f32 %v379, 0.044715
    %v439 = vmul.f32 %v381, 0.044715
    %v440 = vmul.f32 %v422, 0.044715
    %v441 = vmul.f32 %v424, 0.044715
    %v442 = vmul.f32 %v434, %v375
    %v443 = vmul.f32 %v435, %v377
    %v444 = vmul.f32 %v436, %v418
    %v445 = vmul.f32 %v437, %v420
    %v446 = vmul.f32 %v438, %v379
    %v447 = vmul.f32 %v439, %v381
    %v448 = vmul.f32 %v440, %v422
    %v449 = vmul.f32 %v441, %v424
    %v450 = vmul.f32 %v442, %v375
    %v451 = vmul.f32 %v443, %v377
    %v452 = vmul.f32 %v444, %v418
    %v453 = vmul.f32 %v445, %v420
    %v454 = vmul.f32 %v446, %v379
    %v455 = vmul.f32 %v447, %v381
    %v456 = vmul.f32 %v448, %v422
    %v457 = vmul.f32 %v449, %v424
    %v458 = vadd.f32 %v375, %v450
    %v459 = vadd.f32 %v377, %v451
    %v460 = vadd.f32 %v418, %v452
    %v461 = vadd.f32 %v420, %v453
    %v462 = vadd.f32 %v379, %v454
    %v463 = vadd.f32 %v381, %v455
    %v464 = vadd.f32 %v422, %v456
    %v465 = vadd.f32 %v424, %v457
    %v466 = vmul.f32 %v458, 0.7978846
    %v467 = vmul.f32 %v459, 0.7978846
    %v468 = vmul.f32 %v460, 0.7978846
    %v469 = vmul.f32 %v461, 0.7978846
    %v470 = vmul.f32 %v462, 0.7978846
    %v471 = vmul.f32 %v463, 0.7978846
    %v472 = vmul.f32 %v464, 0.7978846
    %v473 = vmul.f32 %v465, 0.7978846
    %v474 = vtanh.pop %v466
    %v475 = vtanh.pop %v467
    %v476 = vtanh.pop %v468
    %v477 = vtanh.pop %v469
    %v478 = vtanh.pop %v470
    %v479 = vtanh.pop %v471
    %v480 = vtanh.pop %v472
    %v481 = vtanh.pop %v473
    %v482 = vadd.f32 %v474, 1.0
    %v483 = vadd.f32 %v475, 1.0
    %v484 = vadd.f32 %v476, 1.0
    %v485 = vadd.f32 %v477, 1.0
    %v486 = vadd.f32 %v478, 1.0
    %v487 = vadd.f32 %v479, 1.0
    %v488 = vadd.f32 %v480, 1.0
    %v489 = vadd.f32 %v481, 1.0
    %v490 = vmul.f32 %v426, %v482
    %v491 = vmul.f32 %v427, %v483
    %v492 = vmul.f32 %v428, %v484
    %v493 = vmul.f32 %v429, %v485
    %v494 = vmul.f32 %v430, %v486
    %v495 = vmul.f32 %v431, %v487
    %v496 = vmul.f32 %v432, %v488
    %v497 = vmul.f32 %v433, %v489
    %v498 = vld [vmem:[#allocation3] sm:$0xff]
    %v499 = vld [vmem:[#allocation3 + $0x8] sm:$0xff]
    %v500 = vpack.c.bf16 %v494, %v490
    %v501 = vpack.c.bf16 %v495, %v491
    %v502 = vpack.c.bf16 %v496, %v492
    %v503 = vpack.c.bf16 %v497, %v493
    %v504 = vld [vmem:[%s5] sm:$0xf]
    %v505 = vld [vmem:[%s5 + $0x4] sm:$0xf]
    %v506 = vld [vmem:[%s5 + $0x8] sm:$0xf]
    %v507 = vld [vmem:[%s5 + $0xc] sm:$0xf]
    %v508 = vld [vmem:[%s5 + $0x10] sm:$0xf]
    %v509 = vld [vmem:[%s5 + $0x14] sm:$0xf]
    %v510 = vld [vmem:[%s5 + $0x18] sm:$0xf]
    %v511 = vld [vmem:[%s5 + $0x1c] sm:$0xf]
    %v512 = vld [vmem:[%s5 + $0x20] sm:$0xf]
    %v513 = vld [vmem:[%s5 + $0x24] sm:$0xf]
    %v514 = vld [vmem:[%s5 + $0x28] sm:$0xf]
    %v515 = vld [vmem:[%s5 + $0x2c] sm:$0xf]
    %v516 = vld [vmem:[%s5 + $0x30] sm:$0xf]
    %v517 = vld [vmem:[%s5 + $0x34] sm:$0xf]
    %v518 = vld [vmem:[%s5 + $0x38] sm:$0xf]
    %v519 = vld [vmem:[%s5 + $0x3c] sm:$0xf]
    %v520 = vld [vmem:[%s5 + $0x40] sm:$0xf]
    %v521 = vld [vmem:[%s5 + $0x44] sm:$0xf]
    %v522 = vld [vmem:[%s5 + $0x48] sm:$0xf]
    %v523 = vld [vmem:[%s5 + $0x4c] sm:$0xf]
    %v524 = vld [vmem:[%s5 + $0x50] sm:$0xf]
    %v525 = vld [vmem:[%s5 + $0x54] sm:$0xf]
    %v526 = vld [vmem:[%s5 + $0x58] sm:$0xf]
    %v527 = vld [vmem:[%s5 + $0x5c] sm:$0xf]
    %v528 = vld [vmem:[%s5 + $0x60] sm:$0xf]
    %v529 = vld [vmem:[%s5 + $0x64] sm:$0xf]
    %v530 = vld [vmem:[%s5 + $0x68] sm:$0xf]
    %v531 = vld [vmem:[%s5 + $0x6c] sm:$0xf]
    %v532 = vld [vmem:[%s5 + $0x70] sm:$0xf]
    %v533 = vld [vmem:[%s5 + $0x74] sm:$0xf]
    %v534 = vld [vmem:[%s5 + $0x78] sm:$0xf]
    %v535 = vld [vmem:[%s5 + $0x7c] sm:$0xf]
    %v536 = vld [vmem:[%s5 + $0x80] sm:$0xf]
    %v537 = vld [vmem:[%s5 + $0x84] sm:$0xf]
    %v538 = vld [vmem:[%s5 + $0x88] sm:$0xf]
    %v539 = vld [vmem:[%s5 + $0x8c] sm:$0xf]
    %v540 = vld [vmem:[%s5 + $0x90] sm:$0xf]
    %v541 = vld [vmem:[%s5 + $0x94] sm:$0xf]
    %v542 = vld [vmem:[%s5 + $0x98] sm:$0xf]
    %v543 = vld [vmem:[%s5 + $0x9c] sm:$0xf]
    %v544 = vld [vmem:[%s5 + $0xa0] sm:$0xf]
    %v545 = vld [vmem:[%s5 + $0xa4] sm:$0xf]
    %v546 = vld [vmem:[%s5 + $0xa8] sm:$0xf]
    %v547 = vld [vmem:[%s5 + $0xac] sm:$0xf]
    %v548 = vld [vmem:[%s5 + $0xb0] sm:$0xf]
    %v549 = vld [vmem:[%s5 + $0xb4] sm:$0xf]
    %v550 = vld [vmem:[%s5 + $0xb8] sm:$0xf]
    %v551 = vld [vmem:[%s5 + $0xbc] sm:$0xf]
    %v552 = vld [vmem:[%s5 + $0xc0] sm:$0xf]
    %v553 = vld [vmem:[%s5 + $0xc4] sm:$0xf]
    %v554 = vld [vmem:[%s5 + $0xc8] sm:$0xf]
    %v555 = vld [vmem:[%s5 + $0xcc] sm:$0xf]
    %v556 = vld [vmem:[%s5 + $0xd0] sm:$0xf]
    %v557 = vld [vmem:[%s5 + $0xd4] sm:$0xf]
    %v558 = vld [vmem:[%s5 + $0xd8] sm:$0xf]
    %v559 = vld [vmem:[%s5 + $0xdc] sm:$0xf]
    %v560 = vld [vmem:[%s5 + $0xe0] sm:$0xf]
    %v561 = vld [vmem:[%s5 + $0xe4] sm:$0xf]
    %v562 = vld [vmem:[%s5 + $0xe8] sm:$0xf]
    %v563 = vld [vmem:[%s5 + $0xec] sm:$0xf]
    %v564 = vld [vmem:[%s5 + $0xf0] sm:$0xf]
    %v565 = vld [vmem:[%s5 + $0xf4] sm:$0xf]
    %v566 = vld [vmem:[%s5 + $0xf8] sm:$0xf]
    %v567 = vld [vmem:[%s5 + $0xfc] sm:$0xf]
    %v632 = vunpack.c.l.b16 %v504
    %v633 = vunpack.c.l.b16 %v505
    %v634 = vunpack.c.l.b16 %v506
    %v635 = vunpack.c.l.b16 %v507
    %v636 = vunpack.c.l.b16 %v508
    %v637 = vunpack.c.l.b16 %v509
    %v638 = vunpack.c.l.b16 %v510
    %v639 = vunpack.c.l.b16 %v511
    %v640 = vunpack.c.l.b16 %v512
    %v641 = vunpack.c.l.b16 %v513
    %v642 = vunpack.c.l.b16 %v514
    %v643 = vunpack.c.l.b16 %v515
    %v644 = vunpack.c.l.b16 %v516
    %v645 = vunpack.c.l.b16 %v517
    %v646 = vunpack.c.l.b16 %v518
    %v647 = vunpack.c.l.b16 %v519
    %v648 = vunpack.c.l.b16 %v520
    %v649 = vunpack.c.l.b16 %v521
    %v650 = vunpack.c.l.b16 %v522
    %v651 = vunpack.c.l.b16 %v523
    %v652 = vunpack.c.l.b16 %v524
    %v653 = vunpack.c.l.b16 %v525
    %v654 = vunpack.c.l.b16 %v526
    %v655 = vunpack.c.l.b16 %v527
    %v656 = vunpack.c.l.b16 %v528
    %v657 = vunpack.c.l.b16 %v529
    %v658 = vunpack.c.l.b16 %v530
    %v659 = vunpack.c.l.b16 %v531
    %v660 = vunpack.c.l.b16 %v532
    %v661 = vunpack.c.l.b16 %v533
    %v662 = vunpack.c.l.b16 %v534
    %v663 = vunpack.c.l.b16 %v535
    %v664 = vunpack.c.l.b16 %v536
    %v665 = vunpack.c.l.b16 %v537
    %v666 = vunpack.c.l.b16 %v538
    %v667 = vunpack.c.l.b16 %v539
    %v668 = vunpack.c.l.b16 %v540
    %v669 = vunpack.c.l.b16 %v541
    %v670 = vunpack.c.l.b16 %v542
    %v671 = vunpack.c.l.b16 %v543
    %v672 = vunpack.c.l.b16 %v544
    %v673 = vunpack.c.l.b16 %v545
    %v674 = vunpack.c.l.b16 %v546
    %v675 = vunpack.c.l.b16 %v547
    %v676 = vunpack.c.l.b16 %v548
    %v677 = vunpack.c.l.b16 %v549
    %v678 = vunpack.c.l.b16 %v550
    %v679 = vunpack.c.l.b16 %v551
    %v680 = vunpack.c.l.b16 %v552
    %v681 = vunpack.c.l.b16 %v553
    %v682 = vunpack.c.l.b16 %v554
    %v683 = vunpack.c.l.b16 %v555
    %v684 = vunpack.c.l.b16 %v556
    %v685 = vunpack.c.l.b16 %v557
    %v686 = vunpack.c.l.b16 %v558
    %v687 = vunpack.c.l.b16 %v559
    %v688 = vunpack.c.l.b16 %v560
    %v689 = vunpack.c.l.b16 %v561
    %v690 = vunpack.c.l.b16 %v562
    %v691 = vunpack.c.l.b16 %v563
    %v692 = vunpack.c.l.b16 %v564
    %v693 = vunpack.c.l.b16 %v565
    %v694 = vunpack.c.l.b16 %v566
    %v695 = vunpack.c.l.b16 %v567
    %v696 = vpack.c.b16 %v633, %v632
    %v697 = vpack.c.b16 %v635, %v634
    %v698 = vpack.c.b16 %v637, %v636
    %v699 = vpack.c.b16 %v639, %v638
    %v700 = vpack.c.b16 %v641, %v640
    %v701 = vpack.c.b16 %v643, %v642
    %v702 = vpack.c.b16 %v645, %v644
    %v703 = vpack.c.b16 %v647, %v646
    %v704 = vpack.c.b16 %v649, %v648
    %v705 = vpack.c.b16 %v651, %v650
    %v706 = vpack.c.b16 %v653, %v652
    %v707 = vpack.c.b16 %v655, %v654
    %v708 = vpack.c.b16 %v657, %v656
    %v709 = vpack.c.b16 %v659, %v658
    %v710 = vpack.c.b16 %v661, %v660
    %v711 = vpack.c.b16 %v663, %v662
    %v712 = vpack.c.b16 %v665, %v664
    %v713 = vpack.c.b16 %v667, %v666
    %v714 = vpack.c.b16 %v669, %v668
    %v715 = vpack.c.b16 %v671, %v670
    %v716 = vpack.c.b16 %v673, %v672
    %v717 = vpack.c.b16 %v675, %v674
    %v718 = vpack.c.b16 %v677, %v676
    %v719 = vpack.c.b16 %v679, %v678
    %v720 = vpack.c.b16 %v681, %v680
    %v721 = vpack.c.b16 %v683, %v682
    %v722 = vpack.c.b16 %v685, %v684
    %v723 = vpack.c.b16 %v687, %v686
    %v724 = vpack.c.b16 %v689, %v688
    %v725 = vpack.c.b16 %v691, %v690
    %v726 = vpack.c.b16 %v693, %v692
    %v727 = vpack.c.b16 %v695, %v694
    %760 = vmatprep.subr.bf16.mxu0 0
    %761 = vmatpush1.bf16.msra.mxu0 %v696
    %762 = vmatprep.subr.bf16.mxu0 0
    %763 = vmatpush1.bf16.msra.mxu0 %v697
    %764 = vmatprep.subr.bf16.mxu0 0
    %765 = vmatpush1.bf16.msra.mxu0 %v698
    %766 = vmatprep.subr.bf16.mxu0 0
    %767 = vmatpush1.bf16.msra.mxu0 %v699
    %768 = vmatprep.subr.bf16.mxu0 0
    %769 = vmatpush1.bf16.msra.mxu0 %v700
    %770 = vmatprep.subr.bf16.mxu0 0
    %771 = vmatpush1.bf16.msra.mxu0 %v701
    %772 = vmatprep.subr.bf16.mxu0 0
    %773 = vmatpush1.bf16.msra.mxu0 %v702
    %774 = vmatprep.subr.bf16.mxu0 0
    %775 = vmatpush1.bf16.msra.mxu0 %v703
    %776 = vmatprep.subr.bf16.mxu0 0
    %777 = vmatpush1.bf16.msra.mxu0 %v704
    %778 = vmatprep.subr.bf16.mxu0 0
    %779 = vmatpush1.bf16.msra.mxu0 %v705
    %780 = vmatprep.subr.bf16.mxu0 0
    %781 = vmatpush1.bf16.msra.mxu0 %v706
    %782 = vmatprep.subr.bf16.mxu0 0
    %783 = vmatpush1.bf16.msra.mxu0 %v707
    %784 = vmatprep.subr.bf16.mxu0 0
    %785 = vmatpush1.bf16.msra.mxu0 %v708
    %786 = vmatprep.subr.bf16.mxu0 0
    %787 = vmatpush1.bf16.msra.mxu0 %v709
    %788 = vmatprep.subr.bf16.mxu0 0
    %789 = vmatpush1.bf16.msra.mxu0 %v710
    %790 = vmatprep.subr.bf16.mxu0 0
    %791 = vmatpush1.bf16.msra.mxu0 %v711
    %792 = vmatprep.mubr.bf16.mxu0 %v501
    %793 = vmatmul.mubr.bf16.gmra.mrb[0].mxu0 %v500
    %v794 = vpop.f32.mrb[0].mxu0
    %v795 = vadd.f32 0.0, %v794
    %v796 = vpop.f32.mrb[0].mxu0
    %v797 = vpop.f32.mrb[0].mxu0
    %v798 = vadd.f32 0.0, %v797
    %v799 = vpop.f32.mrb[0].mxu0
    %800 = vdwg.mxu0
    %801 = vmatprep.subr.bf16.mxu0 0
    %802 = vmatpush1.bf16.msra.mxu0 %v712
    %803 = vmatprep.subr.bf16.mxu0 0
    %804 = vmatpush1.bf16.msra.mxu0 %v713
    %805 = vmatprep.subr.bf16.mxu0 0
    %806 = vmatpush1.bf16.msra.mxu0 %v714
    %807 = vmatprep.subr.bf16.mxu0 0
    %808 = vmatpush1.bf16.msra.mxu0 %v715
    %809 = vmatprep.subr.bf16.mxu0 0
    %810 = vmatpush1.bf16.msra.mxu0 %v716
    %811 = vmatprep.subr.bf16.mxu0 0
    %812 = vmatpush1.bf16.msra.mxu0 %v717
    %813 = vmatprep.subr.bf16.mxu0 0
    %814 = vmatpush1.bf16.msra.mxu0 %v718
    %815 = vmatprep.subr.bf16.mxu0 0
    %816 = vmatpush1.bf16.msra.mxu0 %v719
    %817 = vmatprep.subr.bf16.mxu0 0
    %818 = vmatpush1.bf16.msra.mxu0 %v720
    %819 = vmatprep.subr.bf16.mxu0 0
    %820 = vmatpush1.bf16.msra.mxu0 %v721
    %821 = vmatprep.subr.bf16.mxu0 0
    %822 = vmatpush1.bf16.msra.mxu0 %v722
    %823 = vmatprep.subr.bf16.mxu0 0
    %824 = vmatpush1.bf16.msra.mxu0 %v723
    %825 = vmatprep.subr.bf16.mxu0 0
    %826 = vmatpush1.bf16.msra.mxu0 %v724
    %827 = vmatprep.subr.bf16.mxu0 0
    %828 = vmatpush1.bf16.msra.mxu0 %v725
    %829 = vmatprep.subr.bf16.mxu0 0
    %830 = vmatpush1.bf16.msra.mxu0 %v726
    %831 = vmatprep.subr.bf16.mxu0 0
    %832 = vmatpush1.bf16.msra.mxu0 %v727
    %833 = vmatprep.mubr.bf16.mxu0 %v503
    %834 = vmatmul.mubr.bf16.gmra.mrb[0].mxu0 %v502
    %v835 = vpop.f32.mrb[0].mxu0
    %v836 = vadd.f32 %v795, %v835
    %v837 = vpop.f32.mrb[0].mxu0
    %v838 = vpop.f32.mrb[0].mxu0
    %v839 = vadd.f32 %v798, %v838
    %v840 = vpop.f32.mrb[0].mxu0
    %841 = vdwg.mxu0
    %v842 = vadd.f32 %v498, %v836
    %v843 = vadd.f32 %v499, %v839
    %844 = vst [vmem:[#allocation3] sm:$0xff] %v842
    %845 = vst [vmem:[#allocation3 + $0x8] sm:$0xff] %v843
    // Predicated region
    $region50: #{gpt_forward.12} parent=1 // pred_check
      %p846 = pneg %p74
    $region51: #{gpt_forward.12} parent=1 // pred_check_branch
      %848 = sbr.rel (%p846) target = $region53
    $region52: #{gpt_forward.12} parent=1 // pred_region
      %v849 = vld [vmem:[#allocation3] sm:$0xff]
      %v850 = vld [vmem:[#allocation3 + $0x8] sm:$0xff]
      %v851 = vld [vmem:[#allocation9] sm:$0x1]
      %v853 = vlaneseq
      %v854 = vshrl.u32 %v853, 7
      %v855 = vsub.s32 0, %v854
      %v856 = vrot.slane %v851, %v855
      %v858 = vadd.f32 %v849, %v856
      %v859 = vadd.f32 %v850, %v856
      %v860 = vld [vmem:[%s0] sm:$0xff]
      %v861 = vld [vmem:[%s0 + $0x8] sm:$0xff]
      %v862 = vadd.f32 %v858, %v860
      %v863 = vadd.f32 %v859, %v861
      %864 = vst [vmem:[%s7] sm:$0xff] %v862
      %865 = vst [vmem:[%s7 + $0x8] sm:$0xff] %v863
    $region53: #{gpt_forward.12} parent=1 // pred_fallthru
      _
    // Predicated region
    $region54: #{gpt_forward.12} parent=1 // pred_check
      _
    $region55: #{gpt_forward.12} parent=1 // pred_check_branch
      %867 = sbr.rel (0) target = $region57
    $region56: #{gpt_forward.12} parent=1 // pred_region
      _
    $region57: #{gpt_forward.12} parent=1 // pred_fallthru
      _
    // Predicated region
    $region58: #{gpt_forward.12} parent=1 // pred_check
      _
    $region59: #{gpt_forward.12} parent=1 // pred_check_branch
      %869 = sbr.rel (0) target = $region61
    $region60: #{gpt_forward.12} parent=1 // pred_region
      _
    $region61: #{gpt_forward.12} parent=1 // pred_fallthru
      _
    %870 = vsyncpa [#allocation5], 1
    %871 = vsyncpa [#allocation7], 1
    %872 = vsyncpa [#allocation10], 1

// kernel: gpt_forward.15
$region0: #{gpt_forward.15}
  #allocation0 [shape = 'u32[]', space=smem, size = 0x4, offset = 0x4, fixed_abs, tag = 'smem constant byte address 0x4 - core index']
  #allocation1 [shape = 'u32[144,128]{1,0:T(1,128)}', space=vmem, size = 0x12000, scoped, tag = 'internal scratch']
  %s0 = inlined_call_operand.vmem [shape: bf16[16,128], index: 0, kind: input, shape index: {}]
  %s1 = inlined_call_operand.vmem [shape: bf16[128,128], index: 1, kind: input, shape index: {}]
  %s2 = inlined_call_operand.vmem [shape: f32[1,128], index: 2, kind: input, shape index: {}]
  %s3 = inlined_call_operand.vmem [shape: f32[16,128], index: 3, kind: input, shape index: {}]
  %s4 = inlined_call_operand.vmem [shape: f32[16,128], index: 4, kind: output, shape index: {}]
  %s5 = sld [smem:[#allocation0]]
  $region26: #{gpt_forward.15} parent=0
    _
  %s7 = ssub.s32 1, %s5
  %s8 = scalar_select 0, %s7, %s5
  // Predicated region
  $region2: #{gpt_forward.15} parent=0 // pred_check
    _
  $region3: #{gpt_forward.15} parent=0 // pred_check_branch
    %10 = sbr.rel (0) target = $region5
  $region4: #{gpt_forward.15} parent=0 // pred_region
    _
  $region5: #{gpt_forward.15} parent=0 // pred_fallthru
    _
  // Predicated region
  $region6: #{gpt_forward.15} parent=0 // pred_check
    _
  $region7: #{gpt_forward.15} parent=0 // pred_check_branch
    %12 = sbr.rel (0) target = $region9
  $region8: #{gpt_forward.15} parent=0 // pred_region
    _
  $region9: #{gpt_forward.15} parent=0 // pred_fallthru
    _
  // Predicated region
  $region10: #{gpt_forward.15} parent=0 // pred_check
    _
  $region11: #{gpt_forward.15} parent=0 // pred_check_branch
    %14 = sbr.rel (0) target = $region13
  $region12: #{gpt_forward.15} parent=0 // pred_region
    _
  $region13: #{gpt_forward.15} parent=0 // pred_fallthru
    _
  // Predicated region
  $region14: #{gpt_forward.15} parent=0 // pred_check
    _
  $region15: #{gpt_forward.15} parent=0 // pred_check_branch
    %16 = sbr.rel (0) target = $region17
  $region16: #{gpt_forward.15} parent=0 // pred_region
    _
  $region17: #{gpt_forward.15} parent=0 // pred_fallthru
    _
  %v18 = vld [vmem:[%s0] sm:$0xf]
  %v19 = vld [vmem:[%s0 + $0x4] sm:$0xf]
  %v20 = vld [vmem:[%s1] sm:$0xf]
  %v21 = vld [vmem:[%s1 + $0x4] sm:$0xf]
  %v22 = vld [vmem:[%s1 + $0x8] sm:$0xf]
  %v23 = vld [vmem:[%s1 + $0xc] sm:$0xf]
  %v24 = vld [vmem:[%s1 + $0x10] sm:$0xf]
  %v25 = vld [vmem:[%s1 + $0x14] sm:$0xf]
  %v26 = vld [vmem:[%s1 + $0x18] sm:$0xf]
  %v27 = vld [vmem:[%s1 + $0x1c] sm:$0xf]
  %v28 = vld [vmem:[%s1 + $0x20] sm:$0xf]
  %v29 = vld [vmem:[%s1 + $0x24] sm:$0xf]
  %v30 = vld [vmem:[%s1 + $0x28] sm:$0xf]
  %v31 = vld [vmem:[%s1 + $0x2c] sm:$0xf]
  %v32 = vld [vmem:[%s1 + $0x30] sm:$0xf]
  %v33 = vld [vmem:[%s1 + $0x34] sm:$0xf]
  %v34 = vld [vmem:[%s1 + $0x38] sm:$0xf]
  %v35 = vld [vmem:[%s1 + $0x3c] sm:$0xf]
  %v36 = vld [vmem:[%s2] sm:$0x1]
  %v38 = vlaneseq
  %v39 = vshrl.u32 %v38, 7
  %v40 = vsub.s32 0, %v39
  %v41 = vrot.slane %v36, %v40
  %v45 = vunpack.c.l.b16 %v18
  %v46 = vunpack.c.l.b16 %v19
  %v47 = vpack.c.b16 %v46, %v45
  %v65 = vunpack.c.l.b16 %v20
  %v66 = vunpack.c.l.b16 %v21
  %v67 = vunpack.c.l.b16 %v22
  %v68 = vunpack.c.l.b16 %v23
  %v69 = vunpack.c.l.b16 %v24
  %v70 = vunpack.c.l.b16 %v25
  %v71 = vunpack.c.l.b16 %v26
  %v72 = vunpack.c.l.b16 %v27
  %v73 = vunpack.c.l.b16 %v28
  %v74 = vunpack.c.l.b16 %v29
  %v75 = vunpack.c.l.b16 %v30
  %v76 = vunpack.c.l.b16 %v31
  %v77 = vunpack.c.l.b16 %v32
  %v78 = vunpack.c.l.b16 %v33
  %v79 = vunpack.c.l.b16 %v34
  %v80 = vunpack.c.l.b16 %v35
  %v81 = vpack.c.b16 %v66, %v65
  %v82 = vpack.c.b16 %v68, %v67
  %v83 = vpack.c.b16 %v70, %v69
  %v84 = vpack.c.b16 %v72, %v71
  %v85 = vpack.c.b16 %v74, %v73
  %v86 = vpack.c.b16 %v76, %v75
  %v87 = vpack.c.b16 %v78, %v77
  %v88 = vpack.c.b16 %v80, %v79
  %97 = vmatprep.subr.bf16.mxu0 0
  %98 = vmatpush1.bf16.msra.mxu0 %v81
  %99 = vmatprep.subr.bf16.mxu0 0
  %100 = vmatpush1.bf16.msra.mxu0 %v82
  %101 = vmatprep.subr.bf16.mxu0 0
  %102 = vmatpush1.bf16.msra.mxu0 %v83
  %103 = vmatprep.subr.bf16.mxu0 0
  %104 = vmatpush1.bf16.msra.mxu0 %v84
  %105 = vmatprep.subr.bf16.mxu0 0
  %106 = vmatpush1.bf16.msra.mxu0 %v85
  %107 = vmatprep.subr.bf16.mxu0 0
  %108 = vmatpush1.bf16.msra.mxu0 %v86
  %109 = vmatprep.subr.bf16.mxu0 0
  %110 = vmatpush1.bf16.msra.mxu0 %v87
  %111 = vmatprep.subr.bf16.mxu0 0
  %112 = vmatpush1.bf16.msra.mxu0 %v88
  %113 = vmatprep.subr.bf16.mxu0 0
  %114 = vmatpush1.bf16.msra.mxu0 0
  %115 = vmatprep.subr.bf16.mxu0 0
  %116 = vmatpush1.bf16.msra.mxu0 0
  %117 = vmatprep.subr.bf16.mxu0 0
  %118 = vmatpush1.bf16.msra.mxu0 0
  %119 = vmatprep.subr.bf16.mxu0 0
  %120 = vmatpush1.bf16.msra.mxu0 0
  %121 = vmatprep.subr.bf16.mxu0 0
  %122 = vmatpush1.bf16.msra.mxu0 0
  %123 = vmatprep.subr.bf16.mxu0 0
  %124 = vmatpush1.bf16.msra.mxu0 0
  %125 = vmatprep.subr.bf16.mxu0 0
  %126 = vmatpush1.bf16.msra.mxu0 0
  %127 = vmatprep.subr.bf16.mxu0 0
  %128 = vmatpush1.bf16.msra.mxu0 0
  %129 = vmatprep.mubr.bf16.mxu0 0
  %130 = vmatmul.mubr.bf16.gmra.mrb[0].mxu0 %v47
  %v131 = vpop.f32.mrb[0].mxu0
  %v132 = vadd.f32 %v41, %v131
  %v133 = vpop.f32.mrb[0].mxu0
  %v134 = vpop.f32.mrb[0].mxu0
  %v135 = vadd.f32 %v41, %v134
  %v136 = vpop.f32.mrb[0].mxu0
  %137 = vdwg.mxu0
  %v138 = vld [vmem:[%s3] sm:$0xff]
  %v139 = vld [vmem:[%s3 + $0x8] sm:$0xff]
  %v140 = vadd.f32 %v132, %v138
  %v141 = vadd.f32 %v135, %v139
  %142 = vst [vmem:[%s4] sm:$0xff] %v140
  %143 = vst [vmem:[%s4 + $0x8] sm:$0xff] %v141
  // Predicated region
  $region18: #{gpt_forward.15} parent=0 // pred_check
    _
  $region19: #{gpt_forward.15} parent=0 // pred_check_branch
    %145 = sbr.rel (0) target = $region21
  $region20: #{gpt_forward.15} parent=0 // pred_region
    _
  $region21: #{gpt_forward.15} parent=0 // pred_fallthru
    _
  // Predicated region
  $region22: #{gpt_forward.15} parent=0 // pred_check
    _
  $region23: #{gpt_forward.15} parent=0 // pred_check_branch
    %147 = sbr.rel (0) target = $region25
  $region24: #{gpt_forward.15} parent=0 // pred_region
    _
  $region25: #{gpt_forward.15} parent=0 // pred_fallthru
    _

// kernel: gpt_forward.13
$region0: #{gpt_forward.13}
  #allocation0 [shape = 'u32[]', space=smem, size = 0x4, offset = 0x4, fixed_abs, tag = 'smem constant byte address 0x4 - core index']
  #allocation1 [shape = 'u32[144,128]{1,0:T(1,128)}', space=vmem, size = 0x12000, scoped, tag = 'internal scratch']
  %s0 = inlined_call_operand.vmem [shape: f32[16,128], index: 0, kind: input, shape index: {}]
  %s1 = inlined_call_operand.vmem [shape: f32[1,128], index: 1, kind: input, shape index: {}]
  %s2 = inlined_call_operand.vmem [shape: f32[1,128], index: 2, kind: input, shape index: {}]
  %s3 = inlined_call_operand.vmem [shape: bf16[128,384], index: 3, kind: input, shape index: {}]
  %s4 = inlined_call_operand.vmem [shape: f32[1,384], index: 4, kind: input, shape index: {}]
  %s5 = inlined_call_operand.vmem [shape: bf16[16,384], index: 5, kind: output, shape index: {}]
  %s6 = sld [smem:[#allocation0]]
  $region30: #{gpt_forward.13} parent=0
    _
  %s8 = ssub.s32 1, %s6
  %s9 = scalar_select 0, %s8, %s6
  // Predicated region
  $region2: #{gpt_forward.13} parent=0 // pred_check
    _
  $region3: #{gpt_forward.13} parent=0 // pred_check_branch
    %11 = sbr.rel (0) target = $region5
  $region4: #{gpt_forward.13} parent=0 // pred_region
    _
  $region5: #{gpt_forward.13} parent=0 // pred_fallthru
    _
  // Predicated region
  $region6: #{gpt_forward.13} parent=0 // pred_check
    _
  $region7: #{gpt_forward.13} parent=0 // pred_check_branch
    %13 = sbr.rel (0) target = $region9
  $region8: #{gpt_forward.13} parent=0 // pred_region
    _
  $region9: #{gpt_forward.13} parent=0 // pred_fallthru
    _
  // Predicated region
  $region10: #{gpt_forward.13} parent=0 // pred_check
    _
  $region11: #{gpt_forward.13} parent=0 // pred_check_branch
    %15 = sbr.rel (0) target = $region13
  $region12: #{gpt_forward.13} parent=0 // pred_region
    _
  $region13: #{gpt_forward.13} parent=0 // pred_fallthru
    _
  // Predicated region
  $region14: #{gpt_forward.13} parent=0 // pred_check
    _
  $region15: #{gpt_forward.13} parent=0 // pred_check_branch
    %17 = sbr.rel (0) target = $region17
  $region16: #{gpt_forward.13} parent=0 // pred_region
    _
  $region17: #{gpt_forward.13} parent=0 // pred_fallthru
    _
  // Predicated region
  $region18: #{gpt_forward.13} parent=0 // pred_check
    _
  $region19: #{gpt_forward.13} parent=0 // pred_check_branch
    %19 = sbr.rel (0) target = $region21
  $region20: #{gpt_forward.13} parent=0 // pred_region
    _
  $region21: #{gpt_forward.13} parent=0 // pred_fallthru
    _
  %v21 = vld [vmem:[%s0] sm:$0xff]
  %v22 = vld [vmem:[%s0 + $0x8] sm:$0xff]
  %23 = vadd.xlane.f32.xlu0 %v21
  %v24 = vpop.xlane.xlu0 %23
  %25 = vadd.xlane.f32.xlu0 %v22
  %v26 = vpop.xlane.xlu0 %25
  %v27 = vrcp.pop 128.0
  %v28 = vmul.f32 %v24, %v27
  %v29 = vmul.f32 %v26, %v27
  %v30 = vsub.f32 %v21, %v28
  %v31 = vsub.f32 %v22, %v29
  %v32 = vmul.f32 %v30, %v30
  %v33 = vmul.f32 %v31, %v31
  %34 = vadd.xlane.f32.xlu0 %v32
  %v35 = vpop.xlane.xlu0 %34
  %36 = vadd.xlane.f32.xlu0 %v33
  %v37 = vpop.xlane.xlu0 %36
  %v38 = vmul.f32 %v35, %v27
  %v39 = vmul.f32 %v37, %v27
  %v40 = vadd.f32 %v38, 1e-05
  %v41 = vadd.f32 %v39, 1e-05
  %v42 = vrsqrt.pop %v40
  %v43 = vrsqrt.pop %v41
  %v44 = vmul.f32 %v30, %v42
  %v45 = vmul.f32 %v31, %v43
  %v46 = vld [vmem:[%s1] sm:$0x1]
  %v48 = vlaneseq
  %v49 = vshrl.u32 %v48, 7
  %v50 = vsub.s32 0, %v49
  %v51 = vrot.slane %v46, %v50
  %v53 = vmul.f32 %v44, %v51
  %v54 = vmul.f32 %v45, %v51
  %v55 = vld [vmem:[%s2] sm:$0x1]
  %v57 = vlaneseq
  %v58 = vshrl.u32 %v57, 7
  %v59 = vsub.s32 0, %v58
  %v60 = vrot.slane %v55, %v59
  %v62 = vadd.f32 %v53, %v60
  %v63 = vadd.f32 %v54, %v60
  %v64 = vpack.c.bf16 %v63, %v62
  %v65 = vld [vmem:[%s3] sm:$0xff]
  %v66 = vld [vmem:[%s3 + $0x8] sm:$0xf]
  %v67 = vld [vmem:[%s3 + $0xc] sm:$0xff]
  %v68 = vld [vmem:[%s3 + $0x14] sm:$0xf]
  %v69 = vld [vmem:[%s3 + $0x18] sm:$0xff]
  %v70 = vld [vmem:[%s3 + $0x20] sm:$0xf]
  %v71 = vld [vmem:[%s3 + $0x24] sm:$0xff]
  %v72 = vld [vmem:[%s3 + $0x2c] sm:$0xf]
  %v73 = vld [vmem:[%s3 + $0x30] sm:$0xff]
  %v74 = vld [vmem:[%s3 + $0x38] sm:$0xf]
  %v75 = vld [vmem:[%s3 + $0x3c] sm:$0xff]
  %v76 = vld [vmem:[%s3 + $0x44] sm:$0xf]
  %v77 = vld [vmem:[%s3 + $0x48] sm:$0xff]
  %v78 = vld [vmem:[%s3 + $0x50] sm:$0xf]
  %v79 = vld [vmem:[%s3 + $0x54] sm:$0xff]
  %v80 = vld [vmem:[%s3 + $0x5c] sm:$0xf]
  %v81 = vld [vmem:[%s3 + $0x60] sm:$0xff]
  %v82 = vld [vmem:[%s3 + $0x68] sm:$0xf]
  %v83 = vld [vmem:[%s3 + $0x6c] sm:$0xff]
  %v84 = vld [vmem:[%s3 + $0x74] sm:$0xf]
  %v85 = vld [vmem:[%s3 + $0x78] sm:$0xff]
  %v86 = vld [vmem:[%s3 + $0x80] sm:$0xf]
  %v87 = vld [vmem:[%s3 + $0x84] sm:$0xff]
  %v88 = vld [vmem:[%s3 + $0x8c] sm:$0xf]
  %v89 = vld [vmem:[%s3 + $0x90] sm:$0xff]
  %v90 = vld [vmem:[%s3 + $0x98] sm:$0xf]
  %v91 = vld [vmem:[%s3 + $0x9c] sm:$0xff]
  %v92 = vld [vmem:[%s3 + $0xa4] sm:$0xf]
  %v93 = vld [vmem:[%s3 + $0xa8] sm:$0xff]
  %v94 = vld [vmem:[%s3 + $0xb0] sm:$0xf]
  %v95 = vld [vmem:[%s3 + $0xb4] sm:$0xff]
  %v96 = vld [vmem:[%s3 + $0xbc] sm:$0xf]
  %v97 = vld [vmem:[%s4] sm:$0x7]
  %v99 = vlaneseq
  %v100 = vshrl.u32 %v99, 7
  %v101 = vsub.s32 0, %v100
  %v102 = vrot.slane %v97, %v101
  %v103 = vlaneseq
  %v104 = vshrl.u32 %v103, 7
  %v105 = vsub.s32 1, %v104
  %v106 = vrot.slane %v97, %v105
  %v107 = vlaneseq
  %v108 = vshrl.u32 %v107, 7
  %v109 = vsub.s32 2, %v108
  %v110 = vrot.slane %v97, %v109
  %v146 = vunpack.c.l.b16 %v65
  %v147 = vunpack.c.h.b16 %v65
  %v148 = vunpack.c.l.b16 %v66
  %v149 = vunpack.c.l.b16 %v67
  %v150 = vunpack.c.h.b16 %v67
  %v151 = vunpack.c.l.b16 %v68
  %v152 = vunpack.c.l.b16 %v69
  %v153 = vunpack.c.h.b16 %v69
  %v154 = vunpack.c.l.b16 %v70
  %v155 = vunpack.c.l.b16 %v71
  %v156 = vunpack.c.h.b16 %v71
  %v157 = vunpack.c.l.b16 %v72
  %v158 = vunpack.c.l.b16 %v73
  %v159 = vunpack.c.h.b16 %v73
  %v160 = vunpack.c.l.b16 %v74
  %v161 = vunpack.c.l.b16 %v75
  %v162 = vunpack.c.h.b16 %v75
  %v163 = vunpack.c.l.b16 %v76
  %v164 = vunpack.c.l.b16 %v77
  %v165 = vunpack.c.h.b16 %v77
  %v166 = vunpack.c.l.b16 %v78
  %v167 = vunpack.c.l.b16 %v79
  %v168 = vunpack.c.h.b16 %v79
  %v169 = vunpack.c.l.b16 %v80
  %v170 = vunpack.c.l.b16 %v81
  %v171 = vunpack.c.h.b16 %v81
  %v172 = vunpack.c.l.b16 %v82
  %v173 = vunpack.c.l.b16 %v83
  %v174 = vunpack.c.h.b16 %v83
  %v175 = vunpack.c.l.b16 %v84
  %v176 = vunpack.c.l.b16 %v85
  %v177 = vunpack.c.h.b16 %v85
  %v178 = vunpack.c.l.b16 %v86
  %v179 = vunpack.c.l.b16 %v87
  %v180 = vunpack.c.h.b16 %v87
  %v181 = vunpack.c.l.b16 %v88
  %v182 = vunpack.c.l.b16 %v89
  %v183 = vunpack.c.h.b16 %v89
  %v184 = vunpack.c.l.b16 %v90
  %v185 = vunpack.c.l.b16 %v91
  %v186 = vunpack.c.h.b16 %v91
  %v187 = vunpack.c.l.b16 %v92
  %v188 = vunpack.c.l.b16 %v93
  %v189 = vunpack.c.h.b16 %v93
  %v190 = vunpack.c.l.b16 %v94
  %v191 = vunpack.c.l.b16 %v95
  %v192 = vunpack.c.h.b16 %v95
  %v193 = vunpack.c.l.b16 %v96
  %v194 = vpack.c.b16 %v149, %v146
  %v195 = vpack.c.b16 %v150, %v147
  %v196 = vpack.c.b16 %v151, %v148
  %v197 = vpack.c.b16 %v155, %v152
  %v198 = vpack.c.b16 %v156, %v153
  %v199 = vpack.c.b16 %v157, %v154
  %v200 = vpack.c.b16 %v161, %v158
  %v201 = vpack.c.b16 %v162, %v159
  %v202 = vpack.c.b16 %v163, %v160
  %v203 = vpack.c.b16 %v167, %v164
  %v204 = vpack.c.b16 %v168, %v165
  %v205 = vpack.c.b16 %v169, %v166
  %v206 = vpack.c.b16 %v173, %v170
  %v207 = vpack.c.b16 %v174, %v171
  %v208 = vpack.c.b16 %v175, %v172
  %v209 = vpack.c.b16 %v179, %v176
  %v210 = vpack.c.b16 %v180, %v177
  %v211 = vpack.c.b16 %v181, %v178
  %v212 = vpack.c.b16 %v185, %v182
  %v213 = vpack.c.b16 %v186, %v183
  %v214 = vpack.c.b16 %v187, %v184
  %v215 = vpack.c.b16 %v191, %v188
  %v216 = vpack.c.b16 %v192, %v189
  %v217 = vpack.c.b16 %v193, %v190
  %242 = vmatprep.subr.bf16.mxu0 %v195
  %243 = vmatpush1.bf16.msra.mxu0 %v194
  %244 = vmatprep.subr.bf16.mxu0 %v198
  %245 = vmatpush1.bf16.msra.mxu0 %v197
  %246 = vmatprep.subr.bf16.mxu0 %v201
  %247 = vmatpush1.bf16.msra.mxu0 %v200
  %248 = vmatprep.subr.bf16.mxu0 %v204
  %249 = vmatpush1.bf16.msra.mxu0 %v203
  %250 = vmatprep.subr.bf16.mxu0 %v207
  %251 = vmatpush1.bf16.msra.mxu0 %v206
  %252 = vmatprep.subr.bf16.mxu0 %v210
  %253 = vmatpush1.bf16.msra.mxu0 %v209
  %254 = vmatprep.subr.bf16.mxu0 %v213
  %255 = vmatpush1.bf16.msra.mxu0 %v212
  %256 = vmatprep.subr.bf16.mxu0 %v216
  %257 = vmatpush1.bf16.msra.mxu0 %v215
  %258 = vmatprep.subr.bf16.mxu0 0
  %259 = vmatpush1.bf16.msra.mxu0 0
  %260 = vmatprep.subr.bf16.mxu0 0
  %261 = vmatpush1.bf16.msra.mxu0 0
  %262 = vmatprep.subr.bf16.mxu0 0
  %263 = vmatpush1.bf16.msra.mxu0 0
  %264 = vmatprep.subr.bf16.mxu0 0
  %265 = vmatpush1.bf16.msra.mxu0 0
  %266 = vmatprep.subr.bf16.mxu0 0
  %267 = vmatpush1.bf16.msra.mxu0 0
  %268 = vmatprep.subr.bf16.mxu0 0
  %269 = vmatpush1.bf16.msra.mxu0 0
  %270 = vmatprep.subr.bf16.mxu0 0
  %271 = vmatpush1.bf16.msra.mxu0 0
  %272 = vmatprep.subr.bf16.mxu0 0
  %273 = vmatpush1.bf16.msra.mxu0 0
  %274 = vmatprep.mubr.bf16.mxu0 0
  %275 = vmatmul.mubr.bf16.gmra.mrb[0].mxu0 %v64
  %v276 = vpop.f32.mrb[0].mxu0
  %v277 = vadd.f32 %v102, %v276
  %v278 = vpop.f32.mrb[0].mxu0
  %v279 = vadd.f32 %v106, %v278
  %v280 = vpop.f32.mrb[0].mxu0
  %v281 = vadd.f32 %v102, %v280
  %v282 = vpop.f32.mrb[0].mxu0
  %v283 = vadd.f32 %v106, %v282
  %284 = vdwg.mxu0
  %285 = vmatprep.subr.bf16.mxu0 0
  %286 = vmatpush1.bf16.msra.mxu0 %v196
  %287 = vmatprep.subr.bf16.mxu0 0
  %288 = vmatpush1.bf16.msra.mxu0 %v199
  %289 = vmatprep.subr.bf16.mxu0 0
  %290 = vmatpush1.bf16.msra.mxu0 %v202
  %291 = vmatprep.subr.bf16.mxu0 0
  %292 = vmatpush1.bf16.msra.mxu0 %v205
  %293 = vmatprep.subr.bf16.mxu0 0
  %294 = vmatpush1.bf16.msra.mxu0 %v208
  %295 = vmatprep.subr.bf16.mxu0 0
  %296 = vmatpush1.bf16.msra.mxu0 %v211
  %297 = vmatprep.subr.bf16.mxu0 0
  %298 = vmatpush1.bf16.msra.mxu0 %v214
  %299 = vmatprep.subr.bf16.mxu0 0
  %300 = vmatpush1.bf16.msra.mxu0 %v217
  %301 = vmatprep.subr.bf16.mxu0 0
  %302 = vmatpush1.bf16.msra.mxu0 0
  %303 = vmatprep.subr.bf16.mxu0 0
  %304 = vmatpush1.bf16.msra.mxu0 0
  %305 = vmatprep.subr.bf16.mxu0 0
  %306 = vmatpush1.bf16.msra.mxu0 0
  %307 = vmatprep.subr.bf16.mxu0 0
  %308 = vmatpush1.bf16.msra.mxu0 0
  %309 = vmatprep.subr.bf16.mxu0 0
  %310 = vmatpush1.bf16.msra.mxu0 0
  %311 = vmatprep.subr.bf16.mxu0 0
  %312 = vmatpush1.bf16.msra.mxu0 0
  %313 = vmatprep.subr.bf16.mxu0 0
  %314 = vmatpush1.bf16.msra.mxu0 0
  %315 = vmatprep.subr.bf16.mxu0 0
  %316 = vmatpush1.bf16.msra.mxu0 0
  %317 = vmatprep.mubr.bf16.mxu0 0
  %318 = vmatmul.mubr.bf16.gmra.mrb[0].mxu0 %v64
  %v319 = vpop.f32.mrb[0].mxu0
  %v320 = vadd.f32 %v110, %v319
  %v321 = vpop.f32.mrb[0].mxu0
  %v322 = vpop.f32.mrb[0].mxu0
  %v323 = vadd.f32 %v110, %v322
  %v324 = vpop.f32.mrb[0].mxu0
  %325 = vdwg.mxu0
  %v326 = vpack.c.bf16 %v281, %v277
  %v327 = vpack.c.bf16 %v283, %v279
  %v328 = vpack.c.bf16 %v323, %v320
  %v332 = vunpack.c.l.b16 %v326
  %v333 = vunpack.c.l.b16 %v327
  %v334 = vunpack.c.l.b16 %v328
  %v335 = vunpack.c.h.b16 %v326
  %v336 = vunpack.c.h.b16 %v327
  %v337 = vunpack.c.h.b16 %v328
  %v338 = vpack.c.b16 %v333, %v332
  %v339 = vpack.c.b16 %v334, %v334
  %v340 = vpack.c.b16 %v336, %v335
  %v341 = vpack.c.b16 %v337, %v337
  %346 = vst [vmem:[%s5] sm:$0xff] %v338
  %347 = vst [vmem:[%s5 + $0x8] sm:$0xf] %v339
  %348 = vst [vmem:[%s5 + $0xc] sm:$0xff] %v340
  %349 = vst [vmem:[%s5 + $0x14] sm:$0xf] %v341
  // Predicated region
  $region22: #{gpt_forward.13} parent=0 // pred_check
    _
  $region23: #{gpt_forward.13} parent=0 // pred_check_branch
    %351 = sbr.rel (0) target = $region25
  $region24: #{gpt_forward.13} parent=0 // pred_region
    _
  $region25: #{gpt_forward.13} parent=0 // pred_fallthru
    _
  // Predicated region
  $region26: #{gpt_forward.13} parent=0 // pred_check
    _
  $region27: #{gpt_forward.13} parent=0 // pred_check_branch
    %353 = sbr.rel (0) target = $region29
  $region28: #{gpt_forward.13} parent=0 // pred_region
    _
  $region29: #{gpt_forward.13} parent=0 // pred_fallthru
    _

// kernel: gpt_forward.17
$region0: #{gpt_forward.17}
  #allocation0 [shape = 'u32[]', space=smem, size = 0x4, offset = 0x4, fixed_abs, tag = 'smem constant byte address 0x4 - core index']
  #allocation1 [shape = 'u32[144,128]{1,0:T(1,128)}', space=vmem, size = 0x12000, scoped, tag = 'internal scratch']
  %s0 = inlined_call_operand.vmem [shape: f32[16,128], index: 0, kind: input, shape index: {}]
  %s1 = inlined_call_operand.vmem [shape: f32[1,128], index: 1, kind: input, shape index: {}]
  %s2 = inlined_call_operand.vmem [shape: f32[1,128], index: 2, kind: input, shape index: {}]
  %s3 = inlined_call_operand.vmem [shape: bf16[512,128], index: 3, kind: input, shape index: {}]
  %s4 = inlined_call_operand.hbm [shape: f32[16,512], index: 4, kind: output, shape index: {}]
  %s5 = sld [smem:[#allocation0]]
  $region26: #{gpt_forward.17} parent=0
    _
  %s7 = ssub.s32 1, %s5
  %s8 = scalar_select 0, %s7, %s5
  $region1: #{gpt_forward.17} parent=0
    #allocation2 [shape = 'u8[32768]{0}', space=vmem, size = 0x8000, scoped, tag = 'output window, operand 0, single buffered']
    #allocation3 [shape = 's32[1]{0}', space=sflag, size = 0x4, scoped, tag = 'scoped memory for gpt_forward.17']
    %9 = vsyncpa [#allocation3], 0
    // Predicated region
    $region2: #{gpt_forward.17} parent=1 // pred_check
      _
    $region3: #{gpt_forward.17} parent=1 // pred_check_branch
      %11 = sbr.rel (0) target = $region5
    $region4: #{gpt_forward.17} parent=1 // pred_region
      _
    $region5: #{gpt_forward.17} parent=1 // pred_fallthru
      _
    // Predicated region
    $region6: #{gpt_forward.17} parent=1 // pred_check
      _
    $region7: #{gpt_forward.17} parent=1 // pred_check_branch
      %13 = sbr.rel (0) target = $region9
    $region8: #{gpt_forward.17} parent=1 // pred_region
      _
    $region9: #{gpt_forward.17} parent=1 // pred_fallthru
      _
    // Predicated region
    $region10: #{gpt_forward.17} parent=1 // pred_check
      _
    $region11: #{gpt_forward.17} parent=1 // pred_check_branch
      %15 = sbr.rel (0) target = $region13
    $region12: #{gpt_forward.17} parent=1 // pred_region
      _
    $region13: #{gpt_forward.17} parent=1 // pred_fallthru
      _
    // Predicated region
    $region14: #{gpt_forward.17} parent=1 // pred_check
      _
    $region15: #{gpt_forward.17} parent=1 // pred_check_branch
      %17 = sbr.rel (0) target = $region17
    $region16: #{gpt_forward.17} parent=1 // pred_region
      _
    $region17: #{gpt_forward.17} parent=1 // pred_fallthru
      _
    %v19 = vld [vmem:[%s0] sm:$0xff]
    %v20 = vld [vmem:[%s0 + $0x8] sm:$0xff]
    %21 = vadd.xlane.f32.xlu0 %v19
    %v22 = vpop.xlane.xlu0 %21
    %23 = vadd.xlane.f32.xlu0 %v20
    %v24 = vpop.xlane.xlu0 %23
    %v25 = vrcp.pop 128.0
    %v26 = vmul.f32 %v22, %v25
    %v27 = vmul.f32 %v24, %v25
    %v28 = vsub.f32 %v19, %v26
    %v29 = vsub.f32 %v20, %v27
    %v30 = vmul.f32 %v28, %v28
    %v31 = vmul.f32 %v29, %v29
    %32 = vadd.xlane.f32.xlu0 %v30
    %v33 = vpop.xlane.xlu0 %32
    %34 = vadd.xlane.f32.xlu0 %v31
    %v35 = vpop.xlane.xlu0 %34
    %v36 = vmul.f32 %v33, %v25
    %v37 = vmul.f32 %v35, %v25
    %v38 = vadd.f32 %v36, 1e-05
    %v39 = vadd.f32 %v37, 1e-05
    %v40 = vrsqrt.pop %v38
    %v41 = vrsqrt.pop %v39
    %v42 = vmul.f32 %v28, %v40
    %v43 = vmul.f32 %v29, %v41
    %v44 = vld [vmem:[%s1] sm:$0x1]
    %v46 = vlaneseq
    %v47 = vshrl.u32 %v46, 7
    %v48 = vsub.s32 0, %v47
    %v49 = vrot.slane %v44, %v48
    %v51 = vmul.f32 %v42, %v49
    %v52 = vmul.f32 %v43, %v49
    %v53 = vld [vmem:[%s2] sm:$0x1]
    %v55 = vlaneseq
    %v56 = vshrl.u32 %v55, 7
    %v57 = vsub.s32 0, %v56
    %v58 = vrot.slane %v53, %v57
    %v60 = vadd.f32 %v51, %v58
    %v61 = vadd.f32 %v52, %v58
    %v62 = vpack.c.bf16 %v61, %v60
    %v63 = vld [vmem:[%s3] sm:$0xf]
    %v64 = vld [vmem:[%s3 + $0x4] sm:$0xf]
    %v65 = vld [vmem:[%s3 + $0x8] sm:$0xf]
    %v66 = vld [vmem:[%s3 + $0xc] sm:$0xf]
    %v67 = vld [vmem:[%s3 + $0x10] sm:$0xf]
    %v68 = vld [vmem:[%s3 + $0x14] sm:$0xf]
    %v69 = vld [vmem:[%s3 + $0x18] sm:$0xf]
    %v70 = vld [vmem:[%s3 + $0x1c] sm:$0xf]
    %v71 = vld [vmem:[%s3 + $0x20] sm:$0xf]
    %v72 = vld [vmem:[%s3 + $0x24] sm:$0xf]
    %v73 = vld [vmem:[%s3 + $0x28] sm:$0xf]
    %v74 = vld [vmem:[%s3 + $0x2c] sm:$0xf]
    %v75 = vld [vmem:[%s3 + $0x30] sm:$0xf]
    %v76 = vld [vmem:[%s3 + $0x34] sm:$0xf]
    %v77 = vld [vmem:[%s3 + $0x38] sm:$0xf]
    %v78 = vld [vmem:[%s3 + $0x3c] sm:$0xf]
    %v79 = vld [vmem:[%s3 + $0x40] sm:$0xf]
    %v80 = vld [vmem:[%s3 + $0x44] sm:$0xf]
    %v81 = vld [vmem:[%s3 + $0x48] sm:$0xf]
    %v82 = vld [vmem:[%s3 + $0x4c] sm:$0xf]
    %v83 = vld [vmem:[%s3 + $0x50] sm:$0xf]
    %v84 = vld [vmem:[%s3 + $0x54] sm:$0xf]
    %v85 = vld [vmem:[%s3 + $0x58] sm:$0xf]
    %v86 = vld [vmem:[%s3 + $0x5c] sm:$0xf]
    %v87 = vld [vmem:[%s3 + $0x60] sm:$0xf]
    %v88 = vld [vmem:[%s3 + $0x64] sm:$0xf]
    %v89 = vld [vmem:[%s3 + $0x68] sm:$0xf]
    %v90 = vld [vmem:[%s3 + $0x6c] sm:$0xf]
    %v91 = vld [vmem:[%s3 + $0x70] sm:$0xf]
    %v92 = vld [vmem:[%s3 + $0x74] sm:$0xf]
    %v93 = vld [vmem:[%s3 + $0x78] sm:$0xf]
    %v94 = vld [vmem:[%s3 + $0x7c] sm:$0xf]
    %v95 = vld [vmem:[%s3 + $0x80] sm:$0xf]
    %v96 = vld [vmem:[%s3 + $0x84] sm:$0xf]
    %v97 = vld [vmem:[%s3 + $0x88] sm:$0xf]
    %v98 = vld [vmem:[%s3 + $0x8c] sm:$0xf]
    %v99 = vld [vmem:[%s3 + $0x90] sm:$0xf]
    %v100 = vld [vmem:[%s3 + $0x94] sm:$0xf]
    %v101 = vld [vmem:[%s3 + $0x98] sm:$0xf]
    %v102 = vld [vmem:[%s3 + $0x9c] sm:$0xf]
    %v103 = vld [vmem:[%s3 + $0xa0] sm:$0xf]
    %v104 = vld [vmem:[%s3 + $0xa4] sm:$0xf]
    %v105 = vld [vmem:[%s3 + $0xa8] sm:$0xf]
    %v106 = vld [vmem:[%s3 + $0xac] sm:$0xf]
    %v107 = vld [vmem:[%s3 + $0xb0] sm:$0xf]
    %v108 = vld [vmem:[%s3 + $0xb4] sm:$0xf]
    %v109 = vld [vmem:[%s3 + $0xb8] sm:$0xf]
    %v110 = vld [vmem:[%s3 + $0xbc] sm:$0xf]
    %v111 = vld [vmem:[%s3 + $0xc0] sm:$0xf]
    %v112 = vld [vmem:[%s3 + $0xc4] sm:$0xf]
    %v113 = vld [vmem:[%s3 + $0xc8] sm:$0xf]
    %v114 = vld [vmem:[%s3 + $0xcc] sm:$0xf]
    %v115 = vld [vmem:[%s3 + $0xd0] sm:$0xf]
    %v116 = vld [vmem:[%s3 + $0xd4] sm:$0xf]
    %v117 = vld [vmem:[%s3 + $0xd8] sm:$0xf]
    %v118 = vld [vmem:[%s3 + $0xdc] sm:$0xf]
    %v119 = vld [vmem:[%s3 + $0xe0] sm:$0xf]
    %v120 = vld [vmem:[%s3 + $0xe4] sm:$0xf]
    %v121 = vld [vmem:[%s3 + $0xe8] sm:$0xf]
    %v122 = vld [vmem:[%s3 + $0xec] sm:$0xf]
    %v123 = vld [vmem:[%s3 + $0xf0] sm:$0xf]
    %v124 = vld [vmem:[%s3 + $0xf4] sm:$0xf]
    %v125 = vld [vmem:[%s3 + $0xf8] sm:$0xf]
    %v126 = vld [vmem:[%s3 + $0xfc] sm:$0xf]
    %v191 = vunpack.c.l.b16 %v63
    %v192 = vunpack.c.l.b16 %v64
    %v193 = vunpack.c.l.b16 %v65
    %v194 = vunpack.c.l.b16 %v66
    %v195 = vunpack.c.l.b16 %v67
    %v196 = vunpack.c.l.b16 %v68
    %v197 = vunpack.c.l.b16 %v69
    %v198 = vunpack.c.l.b16 %v70
    %v199 = vunpack.c.l.b16 %v71
    %v200 = vunpack.c.l.b16 %v72
    %v201 = vunpack.c.l.b16 %v73
    %v202 = vunpack.c.l.b16 %v74
    %v203 = vunpack.c.l.b16 %v75
    %v204 = vunpack.c.l.b16 %v76
    %v205 = vunpack.c.l.b16 %v77
    %v206 = vunpack.c.l.b16 %v78
    %v207 = vunpack.c.l.b16 %v79
    %v208 = vunpack.c.l.b16 %v80
    %v209 = vunpack.c.l.b16 %v81
    %v210 = vunpack.c.l.b16 %v82
    %v211 = vunpack.c.l.b16 %v83
    %v212 = vunpack.c.l.b16 %v84
    %v213 = vunpack.c.l.b16 %v85
    %v214 = vunpack.c.l.b16 %v86
    %v215 = vunpack.c.l.b16 %v87
    %v216 = vunpack.c.l.b16 %v88
    %v217 = vunpack.c.l.b16 %v89
    %v218 = vunpack.c.l.b16 %v90
    %v219 = vunpack.c.l.b16 %v91
    %v220 = vunpack.c.l.b16 %v92
    %v221 = vunpack.c.l.b16 %v93
    %v222 = vunpack.c.l.b16 %v94
    %v223 = vunpack.c.l.b16 %v95
    %v224 = vunpack.c.l.b16 %v96
    %v225 = vunpack.c.l.b16 %v97
    %v226 = vunpack.c.l.b16 %v98
    %v227 = vunpack.c.l.b16 %v99
    %v228 = vunpack.c.l.b16 %v100
    %v229 = vunpack.c.l.b16 %v101
    %v230 = vunpack.c.l.b16 %v102
    %v231 = vunpack.c.l.b16 %v103
    %v232 = vunpack.c.l.b16 %v104
    %v233 = vunpack.c.l.b16 %v105
    %v234 = vunpack.c.l.b16 %v106
    %v235 = vunpack.c.l.b16 %v107
    %v236 = vunpack.c.l.b16 %v108
    %v237 = vunpack.c.l.b16 %v109
    %v238 = vunpack.c.l.b16 %v110
    %v239 = vunpack.c.l.b16 %v111
    %v240 = vunpack.c.l.b16 %v112
    %v241 = vunpack.c.l.b16 %v113
    %v242 = vunpack.c.l.b16 %v114
    %v243 = vunpack.c.l.b16 %v115
    %v244 = vunpack.c.l.b16 %v116
    %v245 = vunpack.c.l.b16 %v117
    %v246 = vunpack.c.l.b16 %v118
    %v247 = vunpack.c.l.b16 %v119
    %v248 = vunpack.c.l.b16 %v120
    %v249 = vunpack.c.l.b16 %v121
    %v250 = vunpack.c.l.b16 %v122
    %v251 = vunpack.c.l.b16 %v123
    %v252 = vunpack.c.l.b16 %v124
    %v253 = vunpack.c.l.b16 %v125
    %v254 = vunpack.c.l.b16 %v126
    %v255 = vpack.c.b16 %v192, %v191
    %v256 = vpack.c.b16 %v194, %v193
    %v257 = vpack.c.b16 %v196, %v195
    %v258 = vpack.c.b16 %v198, %v197
    %v259 = vpack.c.b16 %v200, %v199
    %v260 = vpack.c.b16 %v202, %v201
    %v261 = vpack.c.b16 %v204, %v203
    %v262 = vpack.c.b16 %v206, %v205
    %v263 = vpack.c.b16 %v208, %v207
    %v264 = vpack.c.b16 %v210, %v209
    %v265 = vpack.c.b16 %v212, %v211
    %v266 = vpack.c.b16 %v214, %v213
    %v267 = vpack.c.b16 %v216, %v215
    %v268 = vpack.c.b16 %v218, %v217
    %v269 = vpack.c.b16 %v220, %v219
    %v270 = vpack.c.b16 %v222, %v221
    %v271 = vpack.c.b16 %v224, %v223
    %v272 = vpack.c.b16 %v226, %v225
    %v273 = vpack.c.b16 %v228, %v227
    %v274 = vpack.c.b16 %v230, %v229
    %v275 = vpack.c.b16 %v232, %v231
    %v276 = vpack.c.b16 %v234, %v233
    %v277 = vpack.c.b16 %v236, %v235
    %v278 = vpack.c.b16 %v238, %v237
    %v279 = vpack.c.b16 %v240, %v239
    %v280 = vpack.c.b16 %v242, %v241
    %v281 = vpack.c.b16 %v244, %v243
    %v282 = vpack.c.b16 %v246, %v245
    %v283 = vpack.c.b16 %v248, %v247
    %v284 = vpack.c.b16 %v250, %v249
    %v285 = vpack.c.b16 %v252, %v251
    %v286 = vpack.c.b16 %v254, %v253
    %319 = vmatprep.subr.bf16.mxu0 0
    %320 = vmatpush1.bf16.xpose.msra.mxu0 %v255
    %321 = vmatprep.subr.bf16.mxu0 0
    %322 = vmatpush1.bf16.xpose.msra.mxu0 %v256
    %323 = vmatprep.subr.bf16.mxu0 0
    %324 = vmatpush1.bf16.xpose.msra.mxu0 %v257
    %325 = vmatprep.subr.bf16.mxu0 0
    %326 = vmatpush1.bf16.xpose.msra.mxu0 %v258
    %327 = vmatprep.subr.bf16.mxu0 0
    %328 = vmatpush1.bf16.xpose.msra.mxu0 %v259
    %329 = vmatprep.subr.bf16.mxu0 0
    %330 = vmatpush1.bf16.xpose.msra.mxu0 %v260
    %331 = vmatprep.subr.bf16.mxu0 0
    %332 = vmatpush1.bf16.xpose.msra.mxu0 %v261
    %333 = vmatprep.subr.bf16.mxu0 0
    %334 = vmatpush1.bf16.xpose.msra.mxu0 %v262
    %335 = vmatprep.subr.bf16.mxu0 0
    %336 = vmatpush1.bf16.xpose.msra.mxu0 %v263
    %337 = vmatprep.subr.bf16.mxu0 0
    %338 = vmatpush1.bf16.xpose.msra.mxu0 %v264
    %339 = vmatprep.subr.bf16.mxu0 0
    %340 = vmatpush1.bf16.xpose.msra.mxu0 %v265
    %341 = vmatprep.subr.bf16.mxu0 0
    %342 = vmatpush1.bf16.xpose.msra.mxu0 %v266
    %343 = vmatprep.subr.bf16.mxu0 0
    %344 = vmatpush1.bf16.xpose.msra.mxu0 %v267
    %345 = vmatprep.subr.bf16.mxu0 0
    %346 = vmatpush1.bf16.xpose.msra.mxu0 %v268
    %347 = vmatprep.subr.bf16.mxu0 0
    %348 = vmatpush1.bf16.xpose.msra.mxu0 %v269
    %349 = vmatprep.subr.bf16.mxu0 0
    %350 = vmatpush1.bf16.xpose.msra.mxu0 %v270
    %351 = vmatprep.mubr.bf16.mxu0 0
    %352 = vmatmul.mubr.bf16.gmra.mrb[0].mxu0 %v62
    %v353 = vpop.f32.mrb[0].mxu0
    %v354 = vadd.f32 0.0, %v353
    %v355 = vpop.f32.mrb[0].mxu0
    %v356 = vadd.f32 0.0, %v355
    %v357 = vpop.f32.mrb[0].mxu0
    %v358 = vadd.f32 0.0, %v357
    %v359 = vpop.f32.mrb[0].mxu0
    %v360 = vadd.f32 0.0, %v359
    %361 = vdwg.mxu0
    %362 = vmatprep.subr.bf16.mxu0 0
    %363 = vmatpush1.bf16.xpose.msra.mxu0 %v271
    %364 = vmatprep.subr.bf16.mxu0 0
    %365 = vmatpush1.bf16.xpose.msra.mxu0 %v272
    %366 = vmatprep.subr.bf16.mxu0 0
    %367 = vmatpush1.bf16.xpose.msra.mxu0 %v273
    %368 = vmatprep.subr.bf16.mxu0 0
    %369 = vmatpush1.bf16.xpose.msra.mxu0 %v274
    %370 = vmatprep.subr.bf16.mxu0 0
    %371 = vmatpush1.bf16.xpose.msra.mxu0 %v275
    %372 = vmatprep.subr.bf16.mxu0 0
    %373 = vmatpush1.bf16.xpose.msra.mxu0 %v276
    %374 = vmatprep.subr.bf16.mxu0 0
    %375 = vmatpush1.bf16.xpose.msra.mxu0 %v277
    %376 = vmatprep.subr.bf16.mxu0 0
    %377 = vmatpush1.bf16.xpose.msra.mxu0 %v278
    %378 = vmatprep.subr.bf16.mxu0 0
    %379 = vmatpush1.bf16.xpose.msra.mxu0 %v279
    %380 = vmatprep.subr.bf16.mxu0 0
    %381 = vmatpush1.bf16.xpose.msra.mxu0 %v280
    %382 = vmatprep.subr.bf16.mxu0 0
    %383 = vmatpush1.bf16.xpose.msra.mxu0 %v281
    %384 = vmatprep.subr.bf16.mxu0 0
    %385 = vmatpush1.bf16.xpose.msra.mxu0 %v282
    %386 = vmatprep.subr.bf16.mxu0 0
    %387 = vmatpush1.bf16.xpose.msra.mxu0 %v283
    %388 = vmatprep.subr.bf16.mxu0 0
    %389 = vmatpush1.bf16.xpose.msra.mxu0 %v284
    %390 = vmatprep.subr.bf16.mxu0 0
    %391 = vmatpush1.bf16.xpose.msra.mxu0 %v285
    %392 = vmatprep.subr.bf16.mxu0 0
    %393 = vmatpush1.bf16.xpose.msra.mxu0 %v286
    %394 = vmatprep.mubr.bf16.mxu0 0
    %395 = vmatmul.mubr.bf16.gmra.mrb[0].mxu0 %v62
    %v396 = vpop.f32.mrb[0].mxu0
    %v397 = vadd.f32 0.0, %v396
    %v398 = vpop.f32.mrb[0].mxu0
    %v399 = vadd.f32 0.0, %v398
    %v400 = vpop.f32.mrb[0].mxu0
    %v401 = vadd.f32 0.0, %v400
    %v402 = vpop.f32.mrb[0].mxu0
    %v403 = vadd.f32 0.0, %v402
    %404 = vdwg.mxu0
    %405 = vst [vmem:[#allocation2] sm:$0xff] %v354
    %406 = vst [vmem:[#allocation2 + $0x8] sm:$0xff] %v356
    %407 = vst [vmem:[#allocation2 + $0x10] sm:$0xff] %v397
    %408 = vst [vmem:[#allocation2 + $0x18] sm:$0xff] %v399
    %409 = vst [vmem:[#allocation2 + $0x20] sm:$0xff] %v358
    %410 = vst [vmem:[#allocation2 + $0x28] sm:$0xff] %v360
    %411 = vst [vmem:[#allocation2 + $0x30] sm:$0xff] %v401
    %412 = vst [vmem:[#allocation2 + $0x38] sm:$0xff] %v403
    // Predicated region
    $region18: #{gpt_forward.17} parent=1 // pred_check
      _
    $region19: #{gpt_forward.17} parent=1 // pred_check_branch
      %414 = sbr.rel (0) target = $region21
    $region20: #{gpt_forward.17} parent=1 // pred_region
      %s416 = ssub.s32 1024, 1024
      %417 = vsyncadd [#allocation3], %s416
      %s418 = sshll.u32 [#allocation2], 4
      %s419 = int_to_ptr.vmem [resolvable:$true] %s418
      %424 = dma.vmem_to_hbm [thread:$0]  %s419, 1024, %s4, [#allocation3], 512, 512, 32
    $region21: #{gpt_forward.17} parent=1 // pred_fallthru
      _
    // Predicated region
    $region22: #{gpt_forward.17} parent=1 // pred_check
      _
    $region23: #{gpt_forward.17} parent=1 // pred_check_branch
      %426 = sbr.rel (0) target = $region25
    $region24: #{gpt_forward.17} parent=1 // pred_region
      %427 = dma.done [#allocation3], 1024
    $region25: #{gpt_forward.17} parent=1 // pred_fallthru
      _
    %428 = vsyncpa [#allocation3], 1

// kernel: gpt_forward.16
$region0: #{gpt_forward.16}
  #allocation0 [shape = 'u32[]', space=smem, size = 0x4, offset = 0x4, fixed_abs, tag = 'smem constant byte address 0x4 - core index']
  #allocation1 [shape = 'u32[144,128]{1,0:T(1,128)}', space=vmem, size = 0x12000, scoped, tag = 'internal scratch']
  #allocation2 [shape = 'bf16[16,128]{1,0:T(16,128)(2,1)}', space=vmem, size = 0x1000, scoped, tag = 'scratch operand']
  #allocation3 [shape = 'f32[16,128]{1,0:T(8,128)}', space=vmem, size = 0x2000, scoped, tag = 'scratch operand']
  %s0 = inlined_call_operand.vmem [shape: f32[16,128], index: 0, kind: input, shape index: {}]
  %s1 = inlined_call_operand.vmem [shape: f32[1,128], index: 1, kind: input, shape index: {}]
  %s2 = inlined_call_operand.vmem [shape: f32[1,128], index: 2, kind: input, shape index: {}]
  %s3 = inlined_call_operand.vmem [shape: bf16[128,512], index: 3, kind: input, shape index: {}]
  %s4 = inlined_call_operand.vmem [shape: f32[1,512], index: 4, kind: input, shape index: {}]
  %s5 = inlined_call_operand.vmem [shape: bf16[512,128], index: 5, kind: input, shape index: {}]
  %s6 = inlined_call_operand.vmem [shape: f32[1,128], index: 6, kind: input, shape index: {}]
  %s7 = inlined_call_operand.vmem [shape: f32[16,128], index: 7, kind: output, shape index: {}]
  %s8 = sld [smem:[#allocation0]]
  $region46: #{gpt_forward.16} parent=0
    _
  %s10 = ssub.s32 1, %s8
  %s11 = scalar_select 0, %s10, %s8
  // Predicated region
  $region2: #{gpt_forward.16} parent=0 // pred_check
    _
  $region3: #{gpt_forward.16} parent=0 // pred_check_branch
    %13 = sbr.rel (0) target = $region5
  $region4: #{gpt_forward.16} parent=0 // pred_region
    _
  $region5: #{gpt_forward.16} parent=0 // pred_fallthru
    _
  // Predicated region
  $region6: #{gpt_forward.16} parent=0 // pred_check
    _
  $region7: #{gpt_forward.16} parent=0 // pred_check_branch
    %15 = sbr.rel (0) target = $region9
  $region8: #{gpt_forward.16} parent=0 // pred_region
    _
  $region9: #{gpt_forward.16} parent=0 // pred_fallthru
    _
  // Predicated region
  $region10: #{gpt_forward.16} parent=0 // pred_check
    _
  $region11: #{gpt_forward.16} parent=0 // pred_check_branch
    %17 = sbr.rel (0) target = $region13
  $region12: #{gpt_forward.16} parent=0 // pred_region
    _
  $region13: #{gpt_forward.16} parent=0 // pred_fallthru
    _
  // Predicated region
  $region14: #{gpt_forward.16} parent=0 // pred_check
    _
  $region15: #{gpt_forward.16} parent=0 // pred_check_branch
    %19 = sbr.rel (0) target = $region17
  $region16: #{gpt_forward.16} parent=0 // pred_region
    _
  $region17: #{gpt_forward.16} parent=0 // pred_fallthru
    _
  // Predicated region
  $region18: #{gpt_forward.16} parent=0 // pred_check
    _
  $region19: #{gpt_forward.16} parent=0 // pred_check_branch
    %21 = sbr.rel (0) target = $region21
  $region20: #{gpt_forward.16} parent=0 // pred_region
    _
  $region21: #{gpt_forward.16} parent=0 // pred_fallthru
    _
  // Predicated region
  $region22: #{gpt_forward.16} parent=0 // pred_check
    _
  $region23: #{gpt_forward.16} parent=0 // pred_check_branch
    %23 = sbr.rel (0) target = $region25
  $region24: #{gpt_forward.16} parent=0 // pred_region
    _
  $region25: #{gpt_forward.16} parent=0 // pred_fallthru
    _
  // Predicated region
  $region26: #{gpt_forward.16} parent=0 // pred_check
    _
  $region27: #{gpt_forward.16} parent=0 // pred_check_branch
    %25 = sbr.rel (0) target = $region29
  $region28: #{gpt_forward.16} parent=0 // pred_region
    _
  $region29: #{gpt_forward.16} parent=0 // pred_fallthru
    _
  %p27 = scmp.eq.s32.totalorder 0, 0
  // Predicated region
  $region30: #{gpt_forward.16} parent=0 // pred_check
    %p28 = pneg %p27
  $region31: #{gpt_forward.16} parent=0 // pred_check_branch
    %30 = sbr.rel (%p28) target = $region33
  $region32: #{gpt_forward.16} parent=0 // pred_region
    %v31 = vld [vmem:[%s0] sm:$0xff]
    %v32 = vld [vmem:[%s0 + $0x8] sm:$0xff]
    %33 = vadd.xlane.f32.xlu0 %v31
    %v34 = vpop.xlane.xlu0 %33
    %35 = vadd.xlane.f32.xlu0 %v32
    %v36 = vpop.xlane.xlu0 %35
    %v37 = vrcp.pop 128.0
    %v38 = vmul.f32 %v34, %v37
    %v39 = vmul.f32 %v36, %v37
    %v40 = vsub.f32 %v31, %v38
    %v41 = vsub.f32 %v32, %v39
    %v42 = vmul.f32 %v40, %v40
    %v43 = vmul.f32 %v41, %v41
    %44 = vadd.xlane.f32.xlu0 %v42
    %v45 = vpop.xlane.xlu0 %44
    %46 = vadd.xlane.f32.xlu0 %v43
    %v47 = vpop.xlane.xlu0 %46
    %v48 = vmul.f32 %v45, %v37
    %v49 = vmul.f32 %v47, %v37
    %v50 = vadd.f32 %v48, 1e-05
    %v51 = vadd.f32 %v49, 1e-05
    %v52 = vrsqrt.pop %v50
    %v53 = vrsqrt.pop %v51
    %v54 = vmul.f32 %v40, %v52
    %v55 = vmul.f32 %v41, %v53
    %v56 = vld [vmem:[%s1] sm:$0x1]
    %v58 = vlaneseq
    %v59 = vshrl.u32 %v58, 7
    %v60 = vsub.s32 0, %v59
    %v61 = vrot.slane %v56, %v60
    %v63 = vmul.f32 %v54, %v61
    %v64 = vmul.f32 %v55, %v61
    %v65 = vld [vmem:[%s2] sm:$0x1]
    %v67 = vlaneseq
    %v68 = vshrl.u32 %v67, 7
    %v69 = vsub.s32 0, %v68
    %v70 = vrot.slane %v65, %v69
    %v72 = vadd.f32 %v63, %v70
    %v73 = vadd.f32 %v64, %v70
    %v74 = vpack.c.bf16 %v73, %v72
    %75 = vst [vmem:[#allocation2] sm:$0xff] %v74
    %76 = vst [vmem:[#allocation3] sm:$0xff] 0.0
    %77 = vst [vmem:[#allocation3 + $0x8] sm:$0xff] 0.0
  $region33: #{gpt_forward.16} parent=0 // pred_fallthru
    _
  %v78 = vld [vmem:[#allocation2] sm:$0xff]
  %v79 = vld [vmem:[%s3] sm:$0xff]
  %v80 = vld [vmem:[%s3 + $0x8] sm:$0xff]
  %v81 = vld [vmem:[%s3 + $0x10] sm:$0xff]
  %v82 = vld [vmem:[%s3 + $0x18] sm:$0xff]
  %v83 = vld [vmem:[%s3 + $0x20] sm:$0xff]
  %v84 = vld [vmem:[%s3 + $0x28] sm:$0xff]
  %v85 = vld [vmem:[%s3 + $0x30] sm:$0xff]
  %v86 = vld [vmem:[%s3 + $0x38] sm:$0xff]
  %v87 = vld [vmem:[%s3 + $0x40] sm:$0xff]
  %v88 = vld [vmem:[%s3 + $0x48] sm:$0xff]
  %v89 = vld [vmem:[%s3 + $0x50] sm:$0xff]
  %v90 = vld [vmem:[%s3 + $0x58] sm:$0xff]
  %v91 = vld [vmem:[%s3 + $0x60] sm:$0xff]
  %v92 = vld [vmem:[%s3 + $0x68] sm:$0xff]
  %v93 = vld [vmem:[%s3 + $0x70] sm:$0xff]
  %v94 = vld [vmem:[%s3 + $0x78] sm:$0xff]
  %v95 = vld [vmem:[%s3 + $0x80] sm:$0xff]
  %v96 = vld [vmem:[%s3 + $0x88] sm:$0xff]
  %v97 = vld [vmem:[%s3 + $0x90] sm:$0xff]
  %v98 = vld [vmem:[%s3 + $0x98] sm:$0xff]
  %v99 = vld [vmem:[%s3 + $0xa0] sm:$0xff]
  %v100 = vld [vmem:[%s3 + $0xa8] sm:$0xff]
  %v101 = vld [vmem:[%s3 + $0xb0] sm:$0xff]
  %v102 = vld [vmem:[%s3 + $0xb8] sm:$0xff]
  %v103 = vld [vmem:[%s3 + $0xc0] sm:$0xff]
  %v104 = vld [vmem:[%s3 + $0xc8] sm:$0xff]
  %v105 = vld [vmem:[%s3 + $0xd0] sm:$0xff]
  %v106 = vld [vmem:[%s3 + $0xd8] sm:$0xff]
  %v107 = vld [vmem:[%s3 + $0xe0] sm:$0xff]
  %v108 = vld [vmem:[%s3 + $0xe8] sm:$0xff]
  %v109 = vld [vmem:[%s3 + $0xf0] sm:$0xff]
  %v110 = vld [vmem:[%s3 + $0xf8] sm:$0xff]
  %v111 = vld [vmem:[%s4] sm:$0xf]
  %v113 = vlaneseq
  %v114 = vshrl.u32 %v113, 7
  %v115 = vsub.s32 0, %v114
  %v116 = vrot.slane %v111, %v115
  %v117 = vlaneseq
  %v118 = vshrl.u32 %v117, 7
  %v119 = vsub.s32 1, %v118
  %v120 = vrot.slane %v111, %v119
  %v121 = vlaneseq
  %v122 = vshrl.u32 %v121, 7
  %v123 = vsub.s32 2, %v122
  %v124 = vrot.slane %v111, %v123
  %v125 = vlaneseq
  %v126 = vshrl.u32 %v125, 7
  %v127 = vsub.s32 3, %v126
  %v128 = vrot.slane %v111, %v127
  %v165 = vunpack.c.l.b16 %v79
  %v166 = vunpack.c.h.b16 %v79
  %v167 = vunpack.c.l.b16 %v80
  %v168 = vunpack.c.h.b16 %v80
  %v169 = vunpack.c.l.b16 %v81
  %v170 = vunpack.c.h.b16 %v81
  %v171 = vunpack.c.l.b16 %v82
  %v172 = vunpack.c.h.b16 %v82
  %v173 = vunpack.c.l.b16 %v83
  %v174 = vunpack.c.h.b16 %v83
  %v175 = vunpack.c.l.b16 %v84
  %v176 = vunpack.c.h.b16 %v84
  %v177 = vunpack.c.l.b16 %v85
  %v178 = vunpack.c.h.b16 %v85
  %v179 = vunpack.c.l.b16 %v86
  %v180 = vunpack.c.h.b16 %v86
  %v181 = vunpack.c.l.b16 %v87
  %v182 = vunpack.c.h.b16 %v87
  %v183 = vunpack.c.l.b16 %v88
  %v184 = vunpack.c.h.b16 %v88
  %v185 = vunpack.c.l.b16 %v89
  %v186 = vunpack.c.h.b16 %v89
  %v187 = vunpack.c.l.b16 %v90
  %v188 = vunpack.c.h.b16 %v90
  %v189 = vunpack.c.l.b16 %v91
  %v190 = vunpack.c.h.b16 %v91
  %v191 = vunpack.c.l.b16 %v92
  %v192 = vunpack.c.h.b16 %v92
  %v193 = vunpack.c.l.b16 %v93
  %v194 = vunpack.c.h.b16 %v93
  %v195 = vunpack.c.l.b16 %v94
  %v196 = vunpack.c.h.b16 %v94
  %v197 = vunpack.c.l.b16 %v95
  %v198 = vunpack.c.h.b16 %v95
  %v199 = vunpack.c.l.b16 %v96
  %v200 = vunpack.c.h.b16 %v96
  %v201 = vunpack.c.l.b16 %v97
  %v202 = vunpack.c.h.b16 %v97
  %v203 = vunpack.c.l.b16 %v98
  %v204 = vunpack.c.h.b16 %v98
  %v205 = vunpack.c.l.b16 %v99
  %v206 = vunpack.c.h.b16 %v99
  %v207 = vunpack.c.l.b16 %v100
  %v208 = vunpack.c.h.b16 %v100
  %v209 = vunpack.c.l.b16 %v101
  %v210 = vunpack.c.h.b16 %v101
  %v211 = vunpack.c.l.b16 %v102
  %v212 = vunpack.c.h.b16 %v102
  %v213 = vunpack.c.l.b16 %v103
  %v214 = vunpack.c.h.b16 %v103
  %v215 = vunpack.c.l.b16 %v104
  %v216 = vunpack.c.h.b16 %v104
  %v217 = vunpack.c.l.b16 %v105
  %v218 = vunpack.c.h.b16 %v105
  %v219 = vunpack.c.l.b16 %v106
  %v220 = vunpack.c.h.b16 %v106
  %v221 = vunpack.c.l.b16 %v107
  %v222 = vunpack.c.h.b16 %v107
  %v223 = vunpack.c.l.b16 %v108
  %v224 = vunpack.c.h.b16 %v108
  %v225 = vunpack.c.l.b16 %v109
  %v226 = vunpack.c.h.b16 %v109
  %v227 = vunpack.c.l.b16 %v110
  %v228 = vunpack.c.h.b16 %v110
  %v229 = vpack.c.b16 %v169, %v165
  %v230 = vpack.c.b16 %v170, %v166
  %v231 = vpack.c.b16 %v171, %v167
  %v232 = vpack.c.b16 %v172, %v168
  %v233 = vpack.c.b16 %v177, %v173
  %v234 = vpack.c.b16 %v178, %v174
  %v235 = vpack.c.b16 %v179, %v175
  %v236 = vpack.c.b16 %v180, %v176
  %v237 = vpack.c.b16 %v185, %v181
  %v238 = vpack.c.b16 %v186, %v182
  %v239 = vpack.c.b16 %v187, %v183
  %v240 = vpack.c.b16 %v188, %v184
  %v241 = vpack.c.b16 %v193, %v189
  %v242 = vpack.c.b16 %v194, %v190
  %v243 = vpack.c.b16 %v195, %v191
  %v244 = vpack.c.b16 %v196, %v192
  %v245 = vpack.c.b16 %v201, %v197
  %v246 = vpack.c.b16 %v202, %v198
  %v247 = vpack.c.b16 %v203, %v199
  %v248 = vpack.c.b16 %v204, %v200
  %v249 = vpack.c.b16 %v209, %v205
  %v250 = vpack.c.b16 %v210, %v206
  %v251 = vpack.c.b16 %v211, %v207
  %v252 = vpack.c.b16 %v212, %v208
  %v253 = vpack.c.b16 %v217, %v213
  %v254 = vpack.c.b16 %v218, %v214
  %v255 = vpack.c.b16 %v219, %v215
  %v256 = vpack.c.b16 %v220, %v216
  %v257 = vpack.c.b16 %v225, %v221
  %v258 = vpack.c.b16 %v226, %v222
  %v259 = vpack.c.b16 %v227, %v223
  %v260 = vpack.c.b16 %v228, %v224
  %293 = vmatprep.subr.bf16.mxu0 %v230
  %294 = vmatpush1.bf16.msra.mxu0 %v229
  %295 = vmatprep.subr.bf16.mxu0 %v234
  %296 = vmatpush1.bf16.msra.mxu0 %v233
  %297 = vmatprep.subr.bf16.mxu0 %v238
  %298 = vmatpush1.bf16.msra.mxu0 %v237
  %299 = vmatprep.subr.bf16.mxu0 %v242
  %300 = vmatpush1.bf16.msra.mxu0 %v241
  %301 = vmatprep.subr.bf16.mxu0 %v246
  %302 = vmatpush1.bf16.msra.mxu0 %v245
  %303 = vmatprep.subr.bf16.mxu0 %v250
  %304 = vmatpush1.bf16.msra.mxu0 %v249
  %305 = vmatprep.subr.bf16.mxu0 %v254
  %306 = vmatpush1.bf16.msra.mxu0 %v253
  %307 = vmatprep.subr.bf16.mxu0 %v258
  %308 = vmatpush1.bf16.msra.mxu0 %v257
  %309 = vmatprep.subr.bf16.mxu0 0
  %310 = vmatpush1.bf16.msra.mxu0 0
  %311 = vmatprep.subr.bf16.mxu0 0
  %312 = vmatpush1.bf16.msra.mxu0 0
  %313 = vmatprep.subr.bf16.mxu0 0
  %314 = vmatpush1.bf16.msra.mxu0 0
  %315 = vmatprep.subr.bf16.mxu0 0
  %316 = vmatpush1.bf16.msra.mxu0 0
  %317 = vmatprep.subr.bf16.mxu0 0
  %318 = vmatpush1.bf16.msra.mxu0 0
  %319 = vmatprep.subr.bf16.mxu0 0
  %320 = vmatpush1.bf16.msra.mxu0 0
  %321 = vmatprep.subr.bf16.mxu0 0
  %322 = vmatpush1.bf16.msra.mxu0 0
  %323 = vmatprep.subr.bf16.mxu0 0
  %324 = vmatpush1.bf16.msra.mxu0 0
  %325 = vmatprep.mubr.bf16.mxu0 0
  %326 = vmatmul.mubr.bf16.gmra.mrb[0].mxu0 %v78
  %v327 = vpop.f32.mrb[0].mxu0
  %v328 = vadd.f32 %v116, %v327
  %v329 = vpop.f32.mrb[0].mxu0
  %v330 = vadd.f32 %v120, %v329
  %v331 = vpop.f32.mrb[0].mxu0
  %v332 = vadd.f32 %v116, %v331
  %v333 = vpop.f32.mrb[0].mxu0
  %v334 = vadd.f32 %v120, %v333
  %335 = vdwg.mxu0
  %336 = vmatprep.subr.bf16.mxu0 %v232
  %337 = vmatpush1.bf16.msra.mxu0 %v231
  %338 = vmatprep.subr.bf16.mxu0 %v236
  %339 = vmatpush1.bf16.msra.mxu0 %v235
  %340 = vmatprep.subr.bf16.mxu0 %v240
  %341 = vmatpush1.bf16.msra.mxu0 %v239
  %342 = vmatprep.subr.bf16.mxu0 %v244
  %343 = vmatpush1.bf16.msra.mxu0 %v243
  %344 = vmatprep.subr.bf16.mxu0 %v248
  %345 = vmatpush1.bf16.msra.mxu0 %v247
  %346 = vmatprep.subr.bf16.mxu0 %v252
  %347 = vmatpush1.bf16.msra.mxu0 %v251
  %348 = vmatprep.subr.bf16.mxu0 %v256
  %349 = vmatpush1.bf16.msra.mxu0 %v255
  %350 = vmatprep.subr.bf16.mxu0 %v260
  %351 = vmatpush1.bf16.msra.mxu0 %v259
  %352 = vmatprep.subr.bf16.mxu0 0
  %353 = vmatpush1.bf16.msra.mxu0 0
  %354 = vmatprep.subr.bf16.mxu0 0
  %355 = vmatpush1.bf16.msra.mxu0 0
  %356 = vmatprep.subr.bf16.mxu0 0
  %357 = vmatpush1.bf16.msra.mxu0 0
  %358 = vmatprep.subr.bf16.mxu0 0
  %359 = vmatpush1.bf16.msra.mxu0 0
  %360 = vmatprep.subr.bf16.mxu0 0
  %361 = vmatpush1.bf16.msra.mxu0 0
  %362 = vmatprep.subr.bf16.mxu0 0
  %363 = vmatpush1.bf16.msra.mxu0 0
  %364 = vmatprep.subr.bf16.mxu0 0
  %365 = vmatpush1.bf16.msra.mxu0 0
  %366 = vmatprep.subr.bf16.mxu0 0
  %367 = vmatpush1.bf16.msra.mxu0 0
  %368 = vmatprep.mubr.bf16.mxu0 0
  %369 = vmatmul.mubr.bf16.gmra.mrb[0].mxu0 %v78
  %v370 = vpop.f32.mrb[0].mxu0
  %v371 = vadd.f32 %v124, %v370
  %v372 = vpop.f32.mrb[0].mxu0
  %v373 = vadd.f32 %v128, %v372
  %v374 = vpop.f32.mrb[0].mxu0
  %v375 = vadd.f32 %v124, %v374
  %v376 = vpop.f32.mrb[0].mxu0
  %v377 = vadd.f32 %v128, %v376
  %378 = vdwg.mxu0
  %v379 = vmul.f32 %v328, 0.5
  %v380 = vmul.f32 %v330, 0.5
  %v381 = vmul.f32 %v371, 0.5
  %v382 = vmul.f32 %v373, 0.5
  %v383 = vmul.f32 %v332, 0.5
  %v384 = vmul.f32 %v334, 0.5
  %v385 = vmul.f32 %v375, 0.5
  %v386 = vmul.f32 %v377, 0.5
  %v387 = vmul.f32 %v328, 0.044715
  %v388 = vmul.f32 %v330, 0.044715
  %v389 = vmul.f32 %v371, 0.044715
  %v390 = vmul.f32 %v373, 0.044715
  %v391 = vmul.f32 %v332, 0.044715
  %v392 = vmul.f32 %v334, 0.044715
  %v393 = vmul.f32 %v375, 0.044715
  %v394 = vmul.f32 %v377, 0.044715
  %v395 = vmul.f32 %v387, %v328
  %v396 = vmul.f32 %v388, %v330
  %v397 = vmul.f32 %v389, %v371
  %v398 = vmul.f32 %v390, %v373
  %v399 = vmul.f32 %v391, %v332
  %v400 = vmul.f32 %v392, %v334
  %v401 = vmul.f32 %v393, %v375
  %v402 = vmul.f32 %v394, %v377
  %v403 = vmul.f32 %v395, %v328
  %v404 = vmul.f32 %v396, %v330
  %v405 = vmul.f32 %v397, %v371
  %v406 = vmul.f32 %v398, %v373
  %v407 = vmul.f32 %v399, %v332
  %v408 = vmul.f32 %v400, %v334
  %v409 = vmul.f32 %v401, %v375
  %v410 = vmul.f32 %v402, %v377
  %v411 = vadd.f32 %v328, %v403
  %v412 = vadd.f32 %v330, %v404
  %v413 = vadd.f32 %v371, %v405
  %v414 = vadd.f32 %v373, %v406
  %v415 = vadd.f32 %v332, %v407
  %v416 = vadd.f32 %v334, %v408
  %v417 = vadd.f32 %v375, %v409
  %v418 = vadd.f32 %v377, %v410
  %v419 = vmul.f32 %v411, 0.7978846
  %v420 = vmul.f32 %v412, 0.7978846
  %v421 = vmul.f32 %v413, 0.7978846
  %v422 = vmul.f32 %v414, 0.7978846
  %v423 = vmul.f32 %v415, 0.7978846
  %v424 = vmul.f32 %v416, 0.7978846
  %v425 = vmul.f32 %v417, 0.7978846
  %v426 = vmul.f32 %v418, 0.7978846
  %v427 = vtanh.pop %v419
  %v428 = vtanh.pop %v420
  %v429 = vtanh.pop %v421
  %v430 = vtanh.pop %v422
  %v431 = vtanh.pop %v423
  %v432 = vtanh.pop %v424
  %v433 = vtanh.pop %v425
  %v434 = vtanh.pop %v426
  %v435 = vadd.f32 %v427, 1.0
  %v436 = vadd.f32 %v428, 1.0
  %v437 = vadd.f32 %v429, 1.0
  %v438 = vadd.f32 %v430, 1.0
  %v439 = vadd.f32 %v431, 1.0
  %v440 = vadd.f32 %v432, 1.0
  %v441 = vadd.f32 %v433, 1.0
  %v442 = vadd.f32 %v434, 1.0
  %v443 = vmul.f32 %v379, %v435
  %v444 = vmul.f32 %v380, %v436
  %v445 = vmul.f32 %v381, %v437
  %v446 = vmul.f32 %v382, %v438
  %v447 = vmul.f32 %v383, %v439
  %v448 = vmul.f32 %v384, %v440
  %v449 = vmul.f32 %v385, %v441
  %v450 = vmul.f32 %v386, %v442
  %v451 = vld [vmem:[#allocation3] sm:$0xff]
  %v452 = vld [vmem:[#allocation3 + $0x8] sm:$0xff]
  %v453 = vpack.c.bf16 %v447, %v443
  %v454 = vpack.c.bf16 %v448, %v444
  %v455 = vpack.c.bf16 %v449, %v445
  %v456 = vpack.c.bf16 %v450, %v446
  %v457 = vld [vmem:[%s5] sm:$0xf]
  %v458 = vld [vmem:[%s5 + $0x4] sm:$0xf]
  %v459 = vld [vmem:[%s5 + $0x8] sm:$0xf]
  %v460 = vld [vmem:[%s5 + $0xc] sm:$0xf]
  %v461 = vld [vmem:[%s5 + $0x10] sm:$0xf]
  %v462 = vld [vmem:[%s5 + $0x14] sm:$0xf]
  %v463 = vld [vmem:[%s5 + $0x18] sm:$0xf]
  %v464 = vld [vmem:[%s5 + $0x1c] sm:$0xf]
  %v465 = vld [vmem:[%s5 + $0x20] sm:$0xf]
  %v466 = vld [vmem:[%s5 + $0x24] sm:$0xf]
  %v467 = vld [vmem:[%s5 + $0x28] sm:$0xf]
  %v468 = vld [vmem:[%s5 + $0x2c] sm:$0xf]
  %v469 = vld [vmem:[%s5 + $0x30] sm:$0xf]
  %v470 = vld [vmem:[%s5 + $0x34] sm:$0xf]
  %v471 = vld [vmem:[%s5 + $0x38] sm:$0xf]
  %v472 = vld [vmem:[%s5 + $0x3c] sm:$0xf]
  %v473 = vld [vmem:[%s5 + $0x40] sm:$0xf]
  %v474 = vld [vmem:[%s5 + $0x44] sm:$0xf]
  %v475 = vld [vmem:[%s5 + $0x48] sm:$0xf]
  %v476 = vld [vmem:[%s5 + $0x4c] sm:$0xf]
  %v477 = vld [vmem:[%s5 + $0x50] sm:$0xf]
  %v478 = vld [vmem:[%s5 + $0x54] sm:$0xf]
  %v479 = vld [vmem:[%s5 + $0x58] sm:$0xf]
  %v480 = vld [vmem:[%s5 + $0x5c] sm:$0xf]
  %v481 = vld [vmem:[%s5 + $0x60] sm:$0xf]
  %v482 = vld [vmem:[%s5 + $0x64] sm:$0xf]
  %v483 = vld [vmem:[%s5 + $0x68] sm:$0xf]
  %v484 = vld [vmem:[%s5 + $0x6c] sm:$0xf]
  %v485 = vld [vmem:[%s5 + $0x70] sm:$0xf]
  %v486 = vld [vmem:[%s5 + $0x74] sm:$0xf]
  %v487 = vld [vmem:[%s5 + $0x78] sm:$0xf]
  %v488 = vld [vmem:[%s5 + $0x7c] sm:$0xf]
  %v489 = vld [vmem:[%s5 + $0x80] sm:$0xf]
  %v490 = vld [vmem:[%s5 + $0x84] sm:$0xf]
  %v491 = vld [vmem:[%s5 + $0x88] sm:$0xf]
  %v492 = vld [vmem:[%s5 + $0x8c] sm:$0xf]
  %v493 = vld [vmem:[%s5 + $0x90] sm:$0xf]
  %v494 = vld [vmem:[%s5 + $0x94] sm:$0xf]
  %v495 = vld [vmem:[%s5 + $0x98] sm:$0xf]
  %v496 = vld [vmem:[%s5 + $0x9c] sm:$0xf]
  %v497 = vld [vmem:[%s5 + $0xa0] sm:$0xf]
  %v498 = vld [vmem:[%s5 + $0xa4] sm:$0xf]
  %v499 = vld [vmem:[%s5 + $0xa8] sm:$0xf]
  %v500 = vld [vmem:[%s5 + $0xac] sm:$0xf]
  %v501 = vld [vmem:[%s5 + $0xb0] sm:$0xf]
  %v502 = vld [vmem:[%s5 + $0xb4] sm:$0xf]
  %v503 = vld [vmem:[%s5 + $0xb8] sm:$0xf]
  %v504 = vld [vmem:[%s5 + $0xbc] sm:$0xf]
  %v505 = vld [vmem:[%s5 + $0xc0] sm:$0xf]
  %v506 = vld [vmem:[%s5 + $0xc4] sm:$0xf]
  %v507 = vld [vmem:[%s5 + $0xc8] sm:$0xf]
  %v508 = vld [vmem:[%s5 + $0xcc] sm:$0xf]
  %v509 = vld [vmem:[%s5 + $0xd0] sm:$0xf]
  %v510 = vld [vmem:[%s5 + $0xd4] sm:$0xf]
  %v511 = vld [vmem:[%s5 + $0xd8] sm:$0xf]
  %v512 = vld [vmem:[%s5 + $0xdc] sm:$0xf]
  %v513 = vld [vmem:[%s5 + $0xe0] sm:$0xf]
  %v514 = vld [vmem:[%s5 + $0xe4] sm:$0xf]
  %v515 = vld [vmem:[%s5 + $0xe8] sm:$0xf]
  %v516 = vld [vmem:[%s5 + $0xec] sm:$0xf]
  %v517 = vld [vmem:[%s5 + $0xf0] sm:$0xf]
  %v518 = vld [vmem:[%s5 + $0xf4] sm:$0xf]
  %v519 = vld [vmem:[%s5 + $0xf8] sm:$0xf]
  %v520 = vld [vmem:[%s5 + $0xfc] sm:$0xf]
  %v585 = vunpack.c.l.b16 %v457
  %v586 = vunpack.c.l.b16 %v458
  %v587 = vunpack.c.l.b16 %v459
  %v588 = vunpack.c.l.b16 %v460
  %v589 = vunpack.c.l.b16 %v461
  %v590 = vunpack.c.l.b16 %v462
  %v591 = vunpack.c.l.b16 %v463
  %v592 = vunpack.c.l.b16 %v464
  %v593 = vunpack.c.l.b16 %v465
  %v594 = vunpack.c.l.b16 %v466
  %v595 = vunpack.c.l.b16 %v467
  %v596 = vunpack.c.l.b16 %v468
  %v597 = vunpack.c.l.b16 %v469
  %v598 = vunpack.c.l.b16 %v470
  %v599 = vunpack.c.l.b16 %v471
  %v600 = vunpack.c.l.b16 %v472
  %v601 = vunpack.c.l.b16 %v473
  %v602 = vunpack.c.l.b16 %v474
  %v603 = vunpack.c.l.b16 %v475
  %v604 = vunpack.c.l.b16 %v476
  %v605 = vunpack.c.l.b16 %v477
  %v606 = vunpack.c.l.b16 %v478
  %v607 = vunpack.c.l.b16 %v479
  %v608 = vunpack.c.l.b16 %v480
  %v609 = vunpack.c.l.b16 %v481
  %v610 = vunpack.c.l.b16 %v482
  %v611 = vunpack.c.l.b16 %v483
  %v612 = vunpack.c.l.b16 %v484
  %v613 = vunpack.c.l.b16 %v485
  %v614 = vunpack.c.l.b16 %v486
  %v615 = vunpack.c.l.b16 %v487
  %v616 = vunpack.c.l.b16 %v488
  %v617 = vunpack.c.l.b16 %v489
  %v618 = vunpack.c.l.b16 %v490
  %v619 = vunpack.c.l.b16 %v491
  %v620 = vunpack.c.l.b16 %v492
  %v621 = vunpack.c.l.b16 %v493
  %v622 = vunpack.c.l.b16 %v494
  %v623 = vunpack.c.l.b16 %v495
  %v624 = vunpack.c.l.b16 %v496
  %v625 = vunpack.c.l.b16 %v497
  %v626 = vunpack.c.l.b16 %v498
  %v627 = vunpack.c.l.b16 %v499
  %v628 = vunpack.c.l.b16 %v500
  %v629 = vunpack.c.l.b16 %v501
  %v630 = vunpack.c.l.b16 %v502
  %v631 = vunpack.c.l.b16 %v503
  %v632 = vunpack.c.l.b16 %v504
  %v633 = vunpack.c.l.b16 %v505
  %v634 = vunpack.c.l.b16 %v506
  %v635 = vunpack.c.l.b16 %v507
  %v636 = vunpack.c.l.b16 %v508
  %v637 = vunpack.c.l.b16 %v509
  %v638 = vunpack.c.l.b16 %v510
  %v639 = vunpack.c.l.b16 %v511
  %v640 = vunpack.c.l.b16 %v512
  %v641 = vunpack.c.l.b16 %v513
  %v642 = vunpack.c.l.b16 %v514
  %v643 = vunpack.c.l.b16 %v515
  %v644 = vunpack.c.l.b16 %v516
  %v645 = vunpack.c.l.b16 %v517
  %v646 = vunpack.c.l.b16 %v518
  %v647 = vunpack.c.l.b16 %v519
  %v648 = vunpack.c.l.b16 %v520
  %v649 = vpack.c.b16 %v586, %v585
  %v650 = vpack.c.b16 %v588, %v587
  %v651 = vpack.c.b16 %v590, %v589
  %v652 = vpack.c.b16 %v592, %v591
  %v653 = vpack.c.b16 %v594, %v593
  %v654 = vpack.c.b16 %v596, %v595
  %v655 = vpack.c.b16 %v598, %v597
  %v656 = vpack.c.b16 %v600, %v599
  %v657 = vpack.c.b16 %v602, %v601
  %v658 = vpack.c.b16 %v604, %v603
  %v659 = vpack.c.b16 %v606, %v605
  %v660 = vpack.c.b16 %v608, %v607
  %v661 = vpack.c.b16 %v610, %v609
  %v662 = vpack.c.b16 %v612, %v611
  %v663 = vpack.c.b16 %v614, %v613
  %v664 = vpack.c.b16 %v616, %v615
  %v665 = vpack.c.b16 %v618, %v617
  %v666 = vpack.c.b16 %v620, %v619
  %v667 = vpack.c.b16 %v622, %v621
  %v668 = vpack.c.b16 %v624, %v623
  %v669 = vpack.c.b16 %v626, %v625
  %v670 = vpack.c.b16 %v628, %v627
  %v671 = vpack.c.b16 %v630, %v629
  %v672 = vpack.c.b16 %v632, %v631
  %v673 = vpack.c.b16 %v634, %v633
  %v674 = vpack.c.b16 %v636, %v635
  %v675 = vpack.c.b16 %v638, %v637
  %v676 = vpack.c.b16 %v640, %v639
  %v677 = vpack.c.b16 %v642, %v641
  %v678 = vpack.c.b16 %v644, %v643
  %v679 = vpack.c.b16 %v646, %v645
  %v680 = vpack.c.b16 %v648, %v647
  %713 = vmatprep.subr.bf16.mxu0 0
  %714 = vmatpush1.bf16.msra.mxu0 %v649
  %715 = vmatprep.subr.bf16.mxu0 0
  %716 = vmatpush1.bf16.msra.mxu0 %v650
  %717 = vmatprep.subr.bf16.mxu0 0
  %718 = vmatpush1.bf16.msra.mxu0 %v651
  %719 = vmatprep.subr.bf16.mxu0 0
  %720 = vmatpush1.bf16.msra.mxu0 %v652
  %721 = vmatprep.subr.bf16.mxu0 0
  %722 = vmatpush1.bf16.msra.mxu0 %v653
  %723 = vmatprep.subr.bf16.mxu0 0
  %724 = vmatpush1.bf16.msra.mxu0 %v654
  %725 = vmatprep.subr.bf16.mxu0 0
  %726 = vmatpush1.bf16.msra.mxu0 %v655
  %727 = vmatprep.subr.bf16.mxu0 0
  %728 = vmatpush1.bf16.msra.mxu0 %v656
  %729 = vmatprep.subr.bf16.mxu0 0
  %730 = vmatpush1.bf16.msra.mxu0 %v657
  %731 = vmatprep.subr.bf16.mxu0 0
  %732 = vmatpush1.bf16.msra.mxu0 %v658
  %733 = vmatprep.subr.bf16.mxu0 0
  %734 = vmatpush1.bf16.msra.mxu0 %v659
  %735 = vmatprep.subr.bf16.mxu0 0
  %736 = vmatpush1.bf16.msra.mxu0 %v660
  %737 = vmatprep.subr.bf16.mxu0 0
  %738 = vmatpush1.bf16.msra.mxu0 %v661
  %739 = vmatprep.subr.bf16.mxu0 0
  %740 = vmatpush1.bf16.msra.mxu0 %v662
  %741 = vmatprep.subr.bf16.mxu0 0
  %742 = vmatpush1.bf16.msra.mxu0 %v663
  %743 = vmatprep.subr.bf16.mxu0 0
  %744 = vmatpush1.bf16.msra.mxu0 %v664
  %745 = vmatprep.mubr.bf16.mxu0 %v454
  %746 = vmatmul.mubr.bf16.gmra.mrb[0].mxu0 %v453
  %v747 = vpop.f32.mrb[0].mxu0
  %v748 = vadd.f32 0.0, %v747
  %v749 = vpop.f32.mrb[0].mxu0
  %v750 = vpop.f32.mrb[0].mxu0
  %v751 = vadd.f32 0.0, %v750
  %v752 = vpop.f32.mrb[0].mxu0
  %753 = vdwg.mxu0
  %754 = vmatprep.subr.bf16.mxu0 0
  %755 = vmatpush1.bf16.msra.mxu0 %v665
  %756 = vmatprep.subr.bf16.mxu0 0
  %757 = vmatpush1.bf16.msra.mxu0 %v666
  %758 = vmatprep.subr.bf16.mxu0 0
  %759 = vmatpush1.bf16.msra.mxu0 %v667
  %760 = vmatprep.subr.bf16.mxu0 0
  %761 = vmatpush1.bf16.msra.mxu0 %v668
  %762 = vmatprep.subr.bf16.mxu0 0
  %763 = vmatpush1.bf16.msra.mxu0 %v669
  %764 = vmatprep.subr.bf16.mxu0 0
  %765 = vmatpush1.bf16.msra.mxu0 %v670
  %766 = vmatprep.subr.bf16.mxu0 0
  %767 = vmatpush1.bf16.msra.mxu0 %v671
  %768 = vmatprep.subr.bf16.mxu0 0
  %769 = vmatpush1.bf16.msra.mxu0 %v672
  %770 = vmatprep.subr.bf16.mxu0 0
  %771 = vmatpush1.bf16.msra.mxu0 %v673
  %772 = vmatprep.subr.bf16.mxu0 0
  %773 = vmatpush1.bf16.msra.mxu0 %v674
  %774 = vmatprep.subr.bf16.mxu0 0
  %775 = vmatpush1.bf16.msra.mxu0 %v675
  %776 = vmatprep.subr.bf16.mxu0 0
  %777 = vmatpush1.bf16.msra.mxu0 %v676
  %778 = vmatprep.subr.bf16.mxu0 0
  %779 = vmatpush1.bf16.msra.mxu0 %v677
  %780 = vmatprep.subr.bf16.mxu0 0
  %781 = vmatpush1.bf16.msra.mxu0 %v678
  %782 = vmatprep.subr.bf16.mxu0 0
  %783 = vmatpush1.bf16.msra.mxu0 %v679
  %784 = vmatprep.subr.bf16.mxu0 0
  %785 = vmatpush1.bf16.msra.mxu0 %v680
  %786 = vmatprep.mubr.bf16.mxu0 %v456
  %787 = vmatmul.mubr.bf16.gmra.mrb[0].mxu0 %v455
  %v788 = vpop.f32.mrb[0].mxu0
  %v789 = vadd.f32 %v748, %v788
  %v790 = vpop.f32.mrb[0].mxu0
  %v791 = vpop.f32.mrb[0].mxu0
  %v792 = vadd.f32 %v751, %v791
  %v793 = vpop.f32.mrb[0].mxu0
  %794 = vdwg.mxu0
  %v795 = vadd.f32 %v451, %v789
  %v796 = vadd.f32 %v452, %v792
  %797 = vst [vmem:[#allocation3] sm:$0xff] %v795
  %798 = vst [vmem:[#allocation3 + $0x8] sm:$0xff] %v796
  // Predicated region
  $region34: #{gpt_forward.16} parent=0 // pred_check
    %p799 = pneg %p27
  $region35: #{gpt_forward.16} parent=0 // pred_check_branch
    %801 = sbr.rel (%p799) target = $region37
  $region36: #{gpt_forward.16} parent=0 // pred_region
    %v802 = vld [vmem:[#allocation3] sm:$0xff]
    %v803 = vld [vmem:[#allocation3 + $0x8] sm:$0xff]
    %v804 = vld [vmem:[%s6] sm:$0x1]
    %v806 = vlaneseq
    %v807 = vshrl.u32 %v806, 7
    %v808 = vsub.s32 0, %v807
    %v809 = vrot.slane %v804, %v808
    %v811 = vadd.f32 %v802, %v809
    %v812 = vadd.f32 %v803, %v809
    %v813 = vld [vmem:[%s0] sm:$0xff]
    %v814 = vld [vmem:[%s0 + $0x8] sm:$0xff]
    %v815 = vadd.f32 %v811, %v813
    %v816 = vadd.f32 %v812, %v814
    %817 = vst [vmem:[%s7] sm:$0xff] %v815
    %818 = vst [vmem:[%s7 + $0x8] sm:$0xff] %v816
  $region37: #{gpt_forward.16} parent=0 // pred_fallthru
    _
  // Predicated region
  $region38: #{gpt_forward.16} parent=0 // pred_check
    _
  $region39: #{gpt_forward.16} parent=0 // pred_check_branch
    %820 = sbr.rel (0) target = $region41
  $region40: #{gpt_forward.16} parent=0 // pred_region
    _
  $region41: #{gpt_forward.16} parent=0 // pred_fallthru
    _
  // Predicated region
  $region42: #{gpt_forward.16} parent=0 // pred_check
    _
  $region43: #{gpt_forward.16} parent=0 // pred_check_branch
    %822 = sbr.rel (0) target = $region45
  $region44: #{gpt_forward.16} parent=0 // pred_region
    _
  $region45: #{gpt_forward.16} parent=0 // pred_fallthru
    _

</llo_original>
